<compile_context>
chip_gen: v7x
topology: tpu7x:2x2x1
jax: 0.10.0
libtpu: 0.0.40
codegen_flags: <defaults>
</compile_context>

<pallas_src>
from functools import partial

import jax
import jax.numpy as jnp
from jax import lax
from jax.experimental import pallas as pl
from jax.experimental.pallas import tpu as pltpu


def _pick_tile(dim, target):
    """Largest multiple-of-8 divisor of `dim` that is <= target; falls back to the
    full dim (full-extent blocks are always legal)."""
    if dim <= target:
        return dim
    t = (target // 8) * 8
    while t >= 8:
        if dim % t == 0:
            return t
        t -= 8
    return dim


# ----------------------- kernel A: fused QKV projection ---------------------- #

def _qkv_proj_kernel(x_ref, w_ref, b_ref, qkv_ref, *, heads, dim_head):
    # x_ref: (tm, C)  w_ref: (C, 3*H*D) bf16  b_ref: (1, 3*H*D) f32
    # qkv_ref: (3, H, tm, D)  — head split folded into the store pattern.
    y = jnp.dot(x_ref[...], w_ref[...], preferred_element_type=jnp.float32)
    y = (y + b_ref[...]).astype(qkv_ref.dtype)          # (tm, 3*H*D)
    for t in range(3):                                   # static, unrolled scatter:
        for h in range(heads):                           # 'n (three h d) -> three h n d'
            j = (t * heads + h) * dim_head
            qkv_ref[t, h] = y[:, j:j + dim_head]


# --------------- kernel B: fused multi-head attention + out proj ------------- #

def _mha_kernel(q_ref, k_ref, v_ref, wo_ref, bo_ref, o_ref, acc_ref, *, scale, heads):
    # q_ref: (H, tq, D)  k_ref/v_ref: (H, N, D)  wo_ref: (H, D, out)
    # bo_ref: (1, out) f32  o_ref: (tq, out)  acc_ref: (tq, out) f32 scratch
    acc_ref[...] = jnp.zeros_like(acc_ref)

    def head_body(h, carry):
        q = q_ref[h] * scale                                            # pre-scale q (N*D, not N*N)
        s = lax.dot_general(q, k_ref[h], (((1,), (1,)), ((), ())),      # QK^T on MXU, no k.T copy
                            preferred_element_type=jnp.float32)         # (tq, N) f32
        s = s - jnp.max(s, axis=-1, keepdims=True)                      # f32 softmax
        p = jnp.exp(s)
        p = p * pl.reciprocal(jnp.sum(p, axis=-1, keepdims=True), approx=True)
        # TODO(synk): attention dropout omitted (attn_drop_out_rate = 0.0 -> identity)
        ctx = jnp.dot(p.astype(v_ref.dtype), v_ref[h],
                      preferred_element_type=jnp.float32)               # (tq, D) f32
        # fused output projection: out += ctx_h @ W_out[h*D:(h+1)*D, :]
        acc_ref[...] += jnp.dot(ctx.astype(wo_ref.dtype), wo_ref[h],
                                preferred_element_type=jnp.float32)
        return carry

    lax.fori_loop(0, heads, head_body, 0, unroll=True)
    # TODO(synk): output dropout omitted (drop_out_rate = 0.0 -> identity)
    o_ref[...] = (acc_ref[...] + bo_ref[...]).astype(o_ref.dtype)


# ------------------------------ module wrapper ------------------------------ #

def attention_forward(x, params, *, heads, dim_head,
                      q_tile=256, m_tile=512,
                      compute_dtype=jnp.bfloat16,
                      vmem_limit_bytes=48 * 1024 * 1024):
    """x: (B, N, input_dim) float32 -> (B, N, output_dim)."""
    B, N, C = x.shape
    inner = heads * dim_head
    out_dim = params["w_out"].shape[-1]
    scale = dim_head ** (-0.5)

    # bf16 MXU inputs, f32 accumulation / bias / softmax.
    xc = x.astype(compute_dtype)
    w_qkv = params["w_qkv"].astype(compute_dtype)                       # (C, 3*inner)
    b_qkv = params["b_qkv"].reshape(1, 3 * inner).astype(jnp.float32)
    w_out = params["w_out"].reshape(heads, dim_head, out_dim).astype(compute_dtype)  # free reshape
    b_out = params["b_out"].reshape(1, out_dim).astype(jnp.float32)

    cp = pltpu.CompilerParams(dimension_semantics=("parallel", "parallel"),
                              vmem_limit_bytes=vmem_limit_bytes)

    # ---- kernel A: qkv = x @ W_qkv + b, written directly as (B, 3, H, N, D) ----
    tm = _pick_tile(N, m_tile)
    qkv = pl.pallas_call(
        partial(_qkv_proj_kernel, heads=heads, dim_head=dim_head),
        grid=(B, N // tm),
        in_specs=[
            pl.BlockSpec((None, tm, C), lambda b, m: (b, m, 0)),
            pl.BlockSpec((C, 3 * inner), lambda b, m: (0, 0)),   # weight resident across grid
            pl.BlockSpec((1, 3 * inner), lambda b, m: (0, 0)),
        ],
        out_specs=pl.BlockSpec((None, 3, heads, tm, dim_head),
                               lambda b, m: (b, 0, 0, m, 0)),
        out_shape=jax.ShapeDtypeStruct((B, 3, heads, N, dim_head), compute_dtype),
        compiler_params=cp,
    )(xc, w_qkv, b_qkv)

    # ---- kernel B: per-(batch, q-tile) attention over all heads + fused out proj ----
    tq = _pick_tile(N, q_tile)
    out = pl.pallas_call(
        partial(_mha_kernel, scale=scale, heads=heads),
        grid=(B, N // tq),
        in_specs=[
            # same qkv array, indexed at offsets 0/1/2 of the "3" axis:
            pl.BlockSpec((None, None, heads, tq, dim_head), lambda b, i: (b, 0, 0, i, 0)),
            pl.BlockSpec((None, None, heads, N, dim_head), lambda b, i: (b, 1, 0, 0, 0)),
            pl.BlockSpec((None, None, heads, N, dim_head), lambda b, i: (b, 2, 0, 0, 0)),
            pl.BlockSpec((heads, dim_head, out_dim), lambda b, i: (0, 0, 0)),
            pl.BlockSpec((1, out_dim), lambda b, i: (0, 0)),
        ],
        out_specs=pl.BlockSpec((None, tq, out_dim), lambda b, i: (b, i, 0)),
        out_shape=jax.ShapeDtypeStruct((B, N, out_dim), x.dtype),
        scratch_shapes=[pltpu.VMEM((tq, out_dim), jnp.float32)],
        compiler_params=cp,
    )(qkv, qkv, qkv, w_out, b_out)

    return out


def init_params(key, input_dim, output_dim, heads, dim_head):
    inner = heads * dim_head
    k1, k2, k3, k4 = jax.random.split(key, 4)
    return {
        # stored transposed relative to torch nn.Linear: (in, out)
        "w_qkv": 0.02 * jax.random.normal(k1, (input_dim, 3 * inner), jnp.float32),
        "b_qkv": 0.02 * jax.random.normal(k2, (3 * inner,), jnp.float32),
        "w_out": 0.02 * jax.random.normal(k3, (inner, output_dim), jnp.float32),
        "b_out": 0.02 * jax.random.normal(k4, (output_dim,), jnp.float32),
    }


# plain-JAX f32 reference for a sanity check
def attention_reference(x, params, *, heads, dim_head):
    B, N, C = x.shape
    inner = heads * dim_head
    scale = dim_head ** (-0.5)
    qkv = x @ params["w_qkv"] + params["b_qkv"]
    q, k, v = jnp.split(qkv, 3, axis=-1)
    q, k, v = (t.reshape(B, N, heads, dim_head).transpose(0, 2, 1, 3) for t in (q, k, v))
    dots = jnp.einsum("bhnd,bhmd->bhnm", q, k) * scale
    attn = jax.nn.softmax(dots, axis=-1)
    out = jnp.einsum("bhnm,bhmd->bhnd", attn, v)
    out = out.transpose(0, 2, 1, 3).reshape(B, N, inner)
    return out @ params["w_out"] + params["b_out"]


# TODO(synk): project_out=False (Identity instead of to_out) branch of the torch
#             module (heads==1 and dim_head==input_dim) is not exercised here.

if __name__ == "__main__":
    B, N = 2, 8
    input_dim, output_dim = 32, 32
    heads, dim_head = 8, 64

    key = jax.random.PRNGKey(0)
    kx, kp = jax.random.split(key)
    x = jax.random.normal(kx, (B, N, input_dim), jnp.float32)
    params = init_params(kp, input_dim, output_dim, heads, dim_head)

    fwd = jax.jit(partial(attention_forward, heads=heads, dim_head=dim_head))
    out = jax.block_until_ready(fwd(x, params))

    ref = attention_reference(x, params, heads=heads, dim_head=dim_head)
    assert out.shape == (B, N, output_dim)
    # bf16 matmul path + approx reciprocal -> compare vs f32 reference with loose tol
    max_err = float(jnp.max(jnp.abs(out - ref)))
    assert jnp.allclose(out, ref, atol=2e-2, rtol=2e-2), f"mismatch vs reference: {max_err}"

    print("KERNEL_OK")
</pallas_src>

<mosaic_0001>
module attributes {stable_mosaic.version = 11 : i64} {
  func.func @_qkv_proj_kernel(%arg0: i32, %arg1: i32, %arg2: memref<1x8x32xbf16, #tpu.memory_space<vmem>>, %arg3: memref<32x1536xbf16, #tpu.memory_space<vmem>>, %arg4: memref<1x1536xf32, #tpu.memory_space<vmem>>, %arg5: memref<1x3x8x8x64xbf16, #tpu.memory_space<vmem>>) attributes {dimension_semantics = [#tpu.dimension_semantics<parallel>, #tpu.dimension_semantics<parallel>], iteration_bounds = array<i64: 2, 1>, scalar_prefetch = 0 : i64, scratch_operands = 0 : i64, tpu.core_type = #tpu.core_type<tc>, window_params = [{transform_indices = @transform_0, window_bounds = array<i64: 1, 8, 32>}, {pipeline_mode = #tpu.pipeline_mode<synchronous>, transform_indices = @transform_1, window_bounds = array<i64: 32, 1536>}, {pipeline_mode = #tpu.pipeline_mode<synchronous>, transform_indices = @transform_2, window_bounds = array<i64: 1, 1536>}, {transform_indices = @transform_3, window_bounds = array<i64: 1, 3, 8, 8, 64>}]} {
    %c0 = arith.constant 0 : index
    %c0_0 = arith.constant 0 : index
    %c0_1 = arith.constant 0 : index
    %0 = vector.load %arg2[%c0, %c0_0, %c0_1] : memref<1x8x32xbf16, #tpu.memory_space<vmem>>, vector<1x8x32xbf16>
    %1 = vector.shape_cast %0 : vector<1x8x32xbf16> to vector<8x32xbf16>
    %c0_2 = arith.constant 0 : index
    %c0_3 = arith.constant 0 : index
    %2 = vector.load %arg3[%c0_2, %c0_3] : memref<32x1536xbf16, #tpu.memory_space<vmem>>, vector<32x1536xbf16>
    %cst = arith.constant dense<0.000000e+00> : vector<8x1536xf32>
    %3 = tpu.matmul %1, %2, %cst {dimension_numbers = #tpu.dot_dimension_numbers<[1], [0], [0], [1], [0, 0, 1, 1], [], []>} : vector<8x32xbf16>, vector<32x1536xbf16>, vector<8x1536xf32> -> vector<8x1536xf32>
    %c0_4 = arith.constant 0 : index
    %c0_5 = arith.constant 0 : index
    %4 = vector.load %arg4[%c0_4, %c0_5] : memref<1x1536xf32, #tpu.memory_space<vmem>>, vector<1x1536xf32>
    %5 = vector.broadcast %4 : vector<1x1536xf32> to vector<8x1536xf32>
    %6 = arith.addf %3, %5 : vector<8x1536xf32>
    %7 = arith.truncf %6 : vector<8x1536xf32> to vector<8x1536xbf16>
    %8 = vector.extract_strided_slice %7 {offsets = [0, 0], sizes = [8, 64], strides = [1, 1]} : vector<8x1536xbf16> to vector<8x64xbf16>
    %c0_6 = arith.constant 0 : index
    %c0_7 = arith.constant 0 : index
    %c0_8 = arith.constant 0 : index
    %c0_9 = arith.constant 0 : index
    %c0_10 = arith.constant 0 : index
    %9 = vector.load %arg5[%c0_6, %c0_7, %c0_8, %c0_9, %c0_10] : memref<1x3x8x8x64xbf16, #tpu.memory_space<vmem>>, vector<1x1x1x8x64xbf16>
    %10 = vector.shape_cast %9 : vector<1x1x1x8x64xbf16> to vector<8x64xbf16>
    %11 = vector.shape_cast %8 : vector<8x64xbf16> to vector<1x1x1x8x64xbf16>
    tpu.vector_store %arg5[%c0_6, %c0_7, %c0_8, %c0_9, %c0_10], %11 {strides = array<i32>} : memref<1x3x8x8x64xbf16, #tpu.memory_space<vmem>>, vector<1x1x1x8x64xbf16>,
    %12 = vector.extract_strided_slice %7 {offsets = [0, 64], sizes = [8, 64], strides = [1, 1]} : vector<8x1536xbf16> to vector<8x64xbf16>
    %c0_11 = arith.constant 0 : index
    %c0_12 = arith.constant 0 : index
    %c1 = arith.constant 1 : index
    %c0_13 = arith.constant 0 : index
    %c0_14 = arith.constant 0 : index
    %13 = vector.load %arg5[%c0_11, %c0_12, %c1, %c0_13, %c0_14] : memref<1x3x8x8x64xbf16, #tpu.memory_space<vmem>>, vector<1x1x1x8x64xbf16>
    %14 = vector.shape_cast %13 : vector<1x1x1x8x64xbf16> to vector<8x64xbf16>
    %15 = vector.shape_cast %12 : vector<8x64xbf16> to vector<1x1x1x8x64xbf16>
    tpu.vector_store %arg5[%c0_11, %c0_12, %c1, %c0_13, %c0_14], %15 {strides = array<i32>} : memref<1x3x8x8x64xbf16, #tpu.memory_space<vmem>>, vector<1x1x1x8x64xbf16>,
    %16 = vector.extract_strided_slice %7 {offsets = [0, 128], sizes = [8, 64], strides = [1, 1]} : vector<8x1536xbf16> to vector<8x64xbf16>
    %c0_15 = arith.constant 0 : index
    %c0_16 = arith.constant 0 : index
    %c2 = arith.constant 2 : index
    %c0_17 = arith.constant 0 : index
    %c0_18 = arith.constant 0 : index
    %17 = vector.load %arg5[%c0_15, %c0_16, %c2, %c0_17, %c0_18] : memref<1x3x8x8x64xbf16, #tpu.memory_space<vmem>>, vector<1x1x1x8x64xbf16>
    %18 = vector.shape_cast %17 : vector<1x1x1x8x64xbf16> to vector<8x64xbf16>
    %19 = vector.shape_cast %16 : vector<8x64xbf16> to vector<1x1x1x8x64xbf16>
    tpu.vector_store %arg5[%c0_15, %c0_16, %c2, %c0_17, %c0_18], %19 {strides = array<i32>} : memref<1x3x8x8x64xbf16, #tpu.memory_space<vmem>>, vector<1x1x1x8x64xbf16>,
    %20 = vector.extract_strided_slice %7 {offsets = [0, 192], sizes = [8, 64], strides = [1, 1]} : vector<8x1536xbf16> to vector<8x64xbf16>
    %c0_19 = arith.constant 0 : index
    %c0_20 = arith.constant 0 : index
    %c3 = arith.constant 3 : index
    %c0_21 = arith.constant 0 : index
    %c0_22 = arith.constant 0 : index
    %21 = vector.load %arg5[%c0_19, %c0_20, %c3, %c0_21, %c0_22] : memref<1x3x8x8x64xbf16, #tpu.memory_space<vmem>>, vector<1x1x1x8x64xbf16>
    %22 = vector.shape_cast %21 : vector<1x1x1x8x64xbf16> to vector<8x64xbf16>
    %23 = vector.shape_cast %20 : vector<8x64xbf16> to vector<1x1x1x8x64xbf16>
    tpu.vector_store %arg5[%c0_19, %c0_20, %c3, %c0_21, %c0_22], %23 {strides = array<i32>} : memref<1x3x8x8x64xbf16, #tpu.memory_space<vmem>>, vector<1x1x1x8x64xbf16>,
    %24 = vector.extract_strided_slice %7 {offsets = [0, 256], sizes = [8, 64], strides = [1, 1]} : vector<8x1536xbf16> to vector<8x64xbf16>
    %c0_23 = arith.constant 0 : index
    %c0_24 = arith.constant 0 : index
    %c4 = arith.constant 4 : index
    %c0_25 = arith.constant 0 : index
    %c0_26 = arith.constant 0 : index
    %25 = vector.load %arg5[%c0_23, %c0_24, %c4, %c0_25, %c0_26] : memref<1x3x8x8x64xbf16, #tpu.memory_space<vmem>>, vector<1x1x1x8x64xbf16>
    %26 = vector.shape_cast %25 : vector<1x1x1x8x64xbf16> to vector<8x64xbf16>
    %27 = vector.shape_cast %24 : vector<8x64xbf16> to vector<1x1x1x8x64xbf16>
    tpu.vector_store %arg5[%c0_23, %c0_24, %c4, %c0_25, %c0_26], %27 {strides = array<i32>} : memref<1x3x8x8x64xbf16, #tpu.memory_space<vmem>>, vector<1x1x1x8x64xbf16>,
    %28 = vector.extract_strided_slice %7 {offsets = [0, 320], sizes = [8, 64], strides = [1, 1]} : vector<8x1536xbf16> to vector<8x64xbf16>
    %c0_27 = arith.constant 0 : index
    %c0_28 = arith.constant 0 : index
    %c5 = arith.constant 5 : index
    %c0_29 = arith.constant 0 : index
    %c0_30 = arith.constant 0 : index
    %29 = vector.load %arg5[%c0_27, %c0_28, %c5, %c0_29, %c0_30] : memref<1x3x8x8x64xbf16, #tpu.memory_space<vmem>>, vector<1x1x1x8x64xbf16>
    %30 = vector.shape_cast %29 : vector<1x1x1x8x64xbf16> to vector<8x64xbf16>
    %31 = vector.shape_cast %28 : vector<8x64xbf16> to vector<1x1x1x8x64xbf16>
    tpu.vector_store %arg5[%c0_27, %c0_28, %c5, %c0_29, %c0_30], %31 {strides = array<i32>} : memref<1x3x8x8x64xbf16, #tpu.memory_space<vmem>>, vector<1x1x1x8x64xbf16>,
    %32 = vector.extract_strided_slice %7 {offsets = [0, 384], sizes = [8, 64], strides = [1, 1]} : vector<8x1536xbf16> to vector<8x64xbf16>
    %c0_31 = arith.constant 0 : index
    %c0_32 = arith.constant 0 : index
    %c6 = arith.constant 6 : index
    %c0_33 = arith.constant 0 : index
    %c0_34 = arith.constant 0 : index
    %33 = vector.load %arg5[%c0_31, %c0_32, %c6, %c0_33, %c0_34] : memref<1x3x8x8x64xbf16, #tpu.memory_space<vmem>>, vector<1x1x1x8x64xbf16>
    %34 = vector.shape_cast %33 : vector<1x1x1x8x64xbf16> to vector<8x64xbf16>
    %35 = vector.shape_cast %32 : vector<8x64xbf16> to vector<1x1x1x8x64xbf16>
    tpu.vector_store %arg5[%c0_31, %c0_32, %c6, %c0_33, %c0_34], %35 {strides = array<i32>} : memref<1x3x8x8x64xbf16, #tpu.memory_space<vmem>>, vector<1x1x1x8x64xbf16>,
    %36 = vector.extract_strided_slice %7 {offsets = [0, 448], sizes = [8, 64], strides = [1, 1]} : vector<8x1536xbf16> to vector<8x64xbf16>
    %c0_35 = arith.constant 0 : index
    %c0_36 = arith.constant 0 : index
    %c7 = arith.constant 7 : index
    %c0_37 = arith.constant 0 : index
    %c0_38 = arith.constant 0 : index
    %37 = vector.load %arg5[%c0_35, %c0_36, %c7, %c0_37, %c0_38] : memref<1x3x8x8x64xbf16, #tpu.memory_space<vmem>>, vector<1x1x1x8x64xbf16>
    %38 = vector.shape_cast %37 : vector<1x1x1x8x64xbf16> to vector<8x64xbf16>
    %39 = vector.shape_cast %36 : vector<8x64xbf16> to vector<1x1x1x8x64xbf16>
    tpu.vector_store %arg5[%c0_35, %c0_36, %c7, %c0_37, %c0_38], %39 {strides = array<i32>} : memref<1x3x8x8x64xbf16, #tpu.memory_space<vmem>>, vector<1x1x1x8x64xbf16>,
    %40 = vector.extract_strided_slice %7 {offsets = [0, 512], sizes = [8, 64], strides = [1, 1]} : vector<8x1536xbf16> to vector<8x64xbf16>
    %c0_39 = arith.constant 0 : index
    %c1_40 = arith.constant 1 : index
    %c0_41 = arith.constant 0 : index
    %c0_42 = arith.constant 0 : index
    %c0_43 = arith.constant 0 : index
    %41 = vector.load %arg5[%c0_39, %c1_40, %c0_41, %c0_42, %c0_43] : memref<1x3x8x8x64xbf16, #tpu.memory_space<vmem>>, vector<1x1x1x8x64xbf16>
    %42 = vector.shape_cast %41 : vector<1x1x1x8x64xbf16> to vector<8x64xbf16>
    %43 = vector.shape_cast %40 : vector<8x64xbf16> to vector<1x1x1x8x64xbf16>
    tpu.vector_store %arg5[%c0_39, %c1_40, %c0_41, %c0_42, %c0_43], %43 {strides = array<i32>} : memref<1x3x8x8x64xbf16, #tpu.memory_space<vmem>>, vector<1x1x1x8x64xbf16>,
    %44 = vector.extract_strided_slice %7 {offsets = [0, 576], sizes = [8, 64], strides = [1, 1]} : vector<8x1536xbf16> to vector<8x64xbf16>
    %c0_44 = arith.constant 0 : index
    %c1_45 = arith.constant 1 : index
    %c1_46 = arith.constant 1 : index
    %c0_47 = arith.constant 0 : index
    %c0_48 = arith.constant 0 : index
    %45 = vector.load %arg5[%c0_44, %c1_45, %c1_46, %c0_47, %c0_48] : memref<1x3x8x8x64xbf16, #tpu.memory_space<vmem>>, vector<1x1x1x8x64xbf16>
    %46 = vector.shape_cast %45 : vector<1x1x1x8x64xbf16> to vector<8x64xbf16>
    %47 = vector.shape_cast %44 : vector<8x64xbf16> to vector<1x1x1x8x64xbf16>
    tpu.vector_store %arg5[%c0_44, %c1_45, %c1_46, %c0_47, %c0_48], %47 {strides = array<i32>} : memref<1x3x8x8x64xbf16, #tpu.memory_space<vmem>>, vector<1x1x1x8x64xbf16>,
    %48 = vector.extract_strided_slice %7 {offsets = [0, 640], sizes = [8, 64], strides = [1, 1]} : vector<8x1536xbf16> to vector<8x64xbf16>
    %c0_49 = arith.constant 0 : index
    %c1_50 = arith.constant 1 : index
    %c2_51 = arith.constant 2 : index
    %c0_52 = arith.constant 0 : index
    %c0_53 = arith.constant 0 : index
    %49 = vector.load %arg5[%c0_49, %c1_50, %c2_51, %c0_52, %c0_53] : memref<1x3x8x8x64xbf16, #tpu.memory_space<vmem>>, vector<1x1x1x8x64xbf16>
    %50 = vector.shape_cast %49 : vector<1x1x1x8x64xbf16> to vector<8x64xbf16>
    %51 = vector.shape_cast %48 : vector<8x64xbf16> to vector<1x1x1x8x64xbf16>
    tpu.vector_store %arg5[%c0_49, %c1_50, %c2_51, %c0_52, %c0_53], %51 {strides = array<i32>} : memref<1x3x8x8x64xbf16, #tpu.memory_space<vmem>>, vector<1x1x1x8x64xbf16>,
    %52 = vector.extract_strided_slice %7 {offsets = [0, 704], sizes = [8, 64], strides = [1, 1]} : vector<8x1536xbf16> to vector<8x64xbf16>
    %c0_54 = arith.constant 0 : index
    %c1_55 = arith.constant 1 : index
    %c3_56 = arith.constant 3 : index
    %c0_57 = arith.constant 0 : index
    %c0_58 = arith.constant 0 : index
    %53 = vector.load %arg5[%c0_54, %c1_55, %c3_56, %c0_57, %c0_58] : memref<1x3x8x8x64xbf16, #tpu.memory_space<vmem>>, vector<1x1x1x8x64xbf16>
    %54 = vector.shape_cast %53 : vector<1x1x1x8x64xbf16> to vector<8x64xbf16>
    %55 = vector.shape_cast %52 : vector<8x64xbf16> to vector<1x1x1x8x64xbf16>
    tpu.vector_store %arg5[%c0_54, %c1_55, %c3_56, %c0_57, %c0_58], %55 {strides = array<i32>} : memref<1x3x8x8x64xbf16, #tpu.memory_space<vmem>>, vector<1x1x1x8x64xbf16>,
    %56 = vector.extract_strided_slice %7 {offsets = [0, 768], sizes = [8, 64], strides = [1, 1]} : vector<8x1536xbf16> to vector<8x64xbf16>
    %c0_59 = arith.constant 0 : index
    %c1_60 = arith.constant 1 : index
    %c4_61 = arith.constant 4 : index
    %c0_62 = arith.constant 0 : index
    %c0_63 = arith.constant 0 : index
    %57 = vector.load %arg5[%c0_59, %c1_60, %c4_61, %c0_62, %c0_63] : memref<1x3x8x8x64xbf16, #tpu.memory_space<vmem>>, vector<1x1x1x8x64xbf16>
    %58 = vector.shape_cast %57 : vector<1x1x1x8x64xbf16> to vector<8x64xbf16>
    %59 = vector.shape_cast %56 : vector<8x64xbf16> to vector<1x1x1x8x64xbf16>
    tpu.vector_store %arg5[%c0_59, %c1_60, %c4_61, %c0_62, %c0_63], %59 {strides = array<i32>} : memref<1x3x8x8x64xbf16, #tpu.memory_space<vmem>>, vector<1x1x1x8x64xbf16>,
    %60 = vector.extract_strided_slice %7 {offsets = [0, 832], sizes = [8, 64], strides = [1, 1]} : vector<8x1536xbf16> to vector<8x64xbf16>
    %c0_64 = arith.constant 0 : index
    %c1_65 = arith.constant 1 : index
    %c5_66 = arith.constant 5 : index
    %c0_67 = arith.constant 0 : index
    %c0_68 = arith.constant 0 : index
    %61 = vector.load %arg5[%c0_64, %c1_65, %c5_66, %c0_67, %c0_68] : memref<1x3x8x8x64xbf16, #tpu.memory_space<vmem>>, vector<1x1x1x8x64xbf16>
    %62 = vector.shape_cast %61 : vector<1x1x1x8x64xbf16> to vector<8x64xbf16>
    %63 = vector.shape_cast %60 : vector<8x64xbf16> to vector<1x1x1x8x64xbf16>
    tpu.vector_store %arg5[%c0_64, %c1_65, %c5_66, %c0_67, %c0_68], %63 {strides = array<i32>} : memref<1x3x8x8x64xbf16, #tpu.memory_space<vmem>>, vector<1x1x1x8x64xbf16>,
    %64 = vector.extract_strided_slice %7 {offsets = [0, 896], sizes = [8, 64], strides = [1, 1]} : vector<8x1536xbf16> to vector<8x64xbf16>
    %c0_69 = arith.constant 0 : index
    %c1_70 = arith.constant 1 : index
    %c6_71 = arith.constant 6 : index
    %c0_72 = arith.constant 0 : index
    %c0_73 = arith.constant 0 : index
    %65 = vector.load %arg5[%c0_69, %c1_70, %c6_71, %c0_72, %c0_73] : memref<1x3x8x8x64xbf16, #tpu.memory_space<vmem>>, vector<1x1x1x8x64xbf16>
    %66 = vector.shape_cast %65 : vector<1x1x1x8x64xbf16> to vector<8x64xbf16>
    %67 = vector.shape_cast %64 : vector<8x64xbf16> to vector<1x1x1x8x64xbf16>
    tpu.vector_store %arg5[%c0_69, %c1_70, %c6_71, %c0_72, %c0_73], %67 {strides = array<i32>} : memref<1x3x8x8x64xbf16, #tpu.memory_space<vmem>>, vector<1x1x1x8x64xbf16>,
    %68 = vector.extract_strided_slice %7 {offsets = [0, 960], sizes = [8, 64], strides = [1, 1]} : vector<8x1536xbf16> to vector<8x64xbf16>
    %c0_74 = arith.constant 0 : index
    %c1_75 = arith.constant 1 : index
    %c7_76 = arith.constant 7 : index
    %c0_77 = arith.constant 0 : index
    %c0_78 = arith.constant 0 : index
    %69 = vector.load %arg5[%c0_74, %c1_75, %c7_76, %c0_77, %c0_78] : memref<1x3x8x8x64xbf16, #tpu.memory_space<vmem>>, vector<1x1x1x8x64xbf16>
    %70 = vector.shape_cast %69 : vector<1x1x1x8x64xbf16> to vector<8x64xbf16>
    %71 = vector.shape_cast %68 : vector<8x64xbf16> to vector<1x1x1x8x64xbf16>
    tpu.vector_store %arg5[%c0_74, %c1_75, %c7_76, %c0_77, %c0_78], %71 {strides = array<i32>} : memref<1x3x8x8x64xbf16, #tpu.memory_space<vmem>>, vector<1x1x1x8x64xbf16>,
    %72 = vector.extract_strided_slice %7 {offsets = [0, 1024], sizes = [8, 64], strides = [1, 1]} : vector<8x1536xbf16> to vector<8x64xbf16>
    %c0_79 = arith.constant 0 : index
    %c2_80 = arith.constant 2 : index
    %c0_81 = arith.constant 0 : index
    %c0_82 = arith.constant 0 : index
    %c0_83 = arith.constant 0 : index
    %73 = vector.load %arg5[%c0_79, %c2_80, %c0_81, %c0_82, %c0_83] : memref<1x3x8x8x64xbf16, #tpu.memory_space<vmem>>, vector<1x1x1x8x64xbf16>
    %74 = vector.shape_cast %73 : vector<1x1x1x8x64xbf16> to vector<8x64xbf16>
    %75 = vector.shape_cast %72 : vector<8x64xbf16> to vector<1x1x1x8x64xbf16>
    tpu.vector_store %arg5[%c0_79, %c2_80, %c0_81, %c0_82, %c0_83], %75 {strides = array<i32>} : memref<1x3x8x8x64xbf16, #tpu.memory_space<vmem>>, vector<1x1x1x8x64xbf16>,
    %76 = vector.extract_strided_slice %7 {offsets = [0, 1088], sizes = [8, 64], strides = [1, 1]} : vector<8x1536xbf16> to vector<8x64xbf16>
    %c0_84 = arith.constant 0 : index
    %c2_85 = arith.constant 2 : index
    %c1_86 = arith.constant 1 : index
    %c0_87 = arith.constant 0 : index
    %c0_88 = arith.constant 0 : index
    %77 = vector.load %arg5[%c0_84, %c2_85, %c1_86, %c0_87, %c0_88] : memref<1x3x8x8x64xbf16, #tpu.memory_space<vmem>>, vector<1x1x1x8x64xbf16>
    %78 = vector.shape_cast %77 : vector<1x1x1x8x64xbf16> to vector<8x64xbf16>
    %79 = vector.shape_cast %76 : vector<8x64xbf16> to vector<1x1x1x8x64xbf16>
    tpu.vector_store %arg5[%c0_84, %c2_85, %c1_86, %c0_87, %c0_88], %79 {strides = array<i32>} : memref<1x3x8x8x64xbf16, #tpu.memory_space<vmem>>, vector<1x1x1x8x64xbf16>,
    %80 = vector.extract_strided_slice %7 {offsets = [0, 1152], sizes = [8, 64], strides = [1, 1]} : vector<8x1536xbf16> to vector<8x64xbf16>
    %c0_89 = arith.constant 0 : index
    %c2_90 = arith.constant 2 : index
    %c2_91 = arith.constant 2 : index
    %c0_92 = arith.constant 0 : index
    %c0_93 = arith.constant 0 : index
    %81 = vector.load %arg5[%c0_89, %c2_90, %c2_91, %c0_92, %c0_93] : memref<1x3x8x8x64xbf16, #tpu.memory_space<vmem>>, vector<1x1x1x8x64xbf16>
    %82 = vector.shape_cast %81 : vector<1x1x1x8x64xbf16> to vector<8x64xbf16>
    %83 = vector.shape_cast %80 : vector<8x64xbf16> to vector<1x1x1x8x64xbf16>
    tpu.vector_store %arg5[%c0_89, %c2_90, %c2_91, %c0_92, %c0_93], %83 {strides = array<i32>} : memref<1x3x8x8x64xbf16, #tpu.memory_space<vmem>>, vector<1x1x1x8x64xbf16>,
    %84 = vector.extract_strided_slice %7 {offsets = [0, 1216], sizes = [8, 64], strides = [1, 1]} : vector<8x1536xbf16> to vector<8x64xbf16>
    %c0_94 = arith.constant 0 : index
    %c2_95 = arith.constant 2 : index
    %c3_96 = arith.constant 3 : index
    %c0_97 = arith.constant 0 : index
    %c0_98 = arith.constant 0 : index
    %85 = vector.load %arg5[%c0_94, %c2_95, %c3_96, %c0_97, %c0_98] : memref<1x3x8x8x64xbf16, #tpu.memory_space<vmem>>, vector<1x1x1x8x64xbf16>
    %86 = vector.shape_cast %85 : vector<1x1x1x8x64xbf16> to vector<8x64xbf16>
    %87 = vector.shape_cast %84 : vector<8x64xbf16> to vector<1x1x1x8x64xbf16>
    tpu.vector_store %arg5[%c0_94, %c2_95, %c3_96, %c0_97, %c0_98], %87 {strides = array<i32>} : memref<1x3x8x8x64xbf16, #tpu.memory_space<vmem>>, vector<1x1x1x8x64xbf16>,
    %88 = vector.extract_strided_slice %7 {offsets = [0, 1280], sizes = [8, 64], strides = [1, 1]} : vector<8x1536xbf16> to vector<8x64xbf16>
    %c0_99 = arith.constant 0 : index
    %c2_100 = arith.constant 2 : index
    %c4_101 = arith.constant 4 : index
    %c0_102 = arith.constant 0 : index
    %c0_103 = arith.constant 0 : index
    %89 = vector.load %arg5[%c0_99, %c2_100, %c4_101, %c0_102, %c0_103] : memref<1x3x8x8x64xbf16, #tpu.memory_space<vmem>>, vector<1x1x1x8x64xbf16>
    %90 = vector.shape_cast %89 : vector<1x1x1x8x64xbf16> to vector<8x64xbf16>
    %91 = vector.shape_cast %88 : vector<8x64xbf16> to vector<1x1x1x8x64xbf16>
    tpu.vector_store %arg5[%c0_99, %c2_100, %c4_101, %c0_102, %c0_103], %91 {strides = array<i32>} : memref<1x3x8x8x64xbf16, #tpu.memory_space<vmem>>, vector<1x1x1x8x64xbf16>,
    %92 = vector.extract_strided_slice %7 {offsets = [0, 1344], sizes = [8, 64], strides = [1, 1]} : vector<8x1536xbf16> to vector<8x64xbf16>
    %c0_104 = arith.constant 0 : index
    %c2_105 = arith.constant 2 : index
    %c5_106 = arith.constant 5 : index
    %c0_107 = arith.constant 0 : index
    %c0_108 = arith.constant 0 : index
    %93 = vector.load %arg5[%c0_104, %c2_105, %c5_106, %c0_107, %c0_108] : memref<1x3x8x8x64xbf16, #tpu.memory_space<vmem>>, vector<1x1x1x8x64xbf16>
    %94 = vector.shape_cast %93 : vector<1x1x1x8x64xbf16> to vector<8x64xbf16>
    %95 = vector.shape_cast %92 : vector<8x64xbf16> to vector<1x1x1x8x64xbf16>
    tpu.vector_store %arg5[%c0_104, %c2_105, %c5_106, %c0_107, %c0_108], %95 {strides = array<i32>} : memref<1x3x8x8x64xbf16, #tpu.memory_space<vmem>>, vector<1x1x1x8x64xbf16>,
    %96 = vector.extract_strided_slice %7 {offsets = [0, 1408], sizes = [8, 64], strides = [1, 1]} : vector<8x1536xbf16> to vector<8x64xbf16>
    %c0_109 = arith.constant 0 : index
    %c2_110 = arith.constant 2 : index
    %c6_111 = arith.constant 6 : index
    %c0_112 = arith.constant 0 : index
    %c0_113 = arith.constant 0 : index
    %97 = vector.load %arg5[%c0_109, %c2_110, %c6_111, %c0_112, %c0_113] : memref<1x3x8x8x64xbf16, #tpu.memory_space<vmem>>, vector<1x1x1x8x64xbf16>
    %98 = vector.shape_cast %97 : vector<1x1x1x8x64xbf16> to vector<8x64xbf16>
    %99 = vector.shape_cast %96 : vector<8x64xbf16> to vector<1x1x1x8x64xbf16>
    tpu.vector_store %arg5[%c0_109, %c2_110, %c6_111, %c0_112, %c0_113], %99 {strides = array<i32>} : memref<1x3x8x8x64xbf16, #tpu.memory_space<vmem>>, vector<1x1x1x8x64xbf16>,
    %100 = vector.extract_strided_slice %7 {offsets = [0, 1472], sizes = [8, 64], strides = [1, 1]} : vector<8x1536xbf16> to vector<8x64xbf16>
    %c0_114 = arith.constant 0 : index
    %c2_115 = arith.constant 2 : index
    %c7_116 = arith.constant 7 : index
    %c0_117 = arith.constant 0 : index
    %c0_118 = arith.constant 0 : index
    %101 = vector.load %arg5[%c0_114, %c2_115, %c7_116, %c0_117, %c0_118] : memref<1x3x8x8x64xbf16, #tpu.memory_space<vmem>>, vector<1x1x1x8x64xbf16>
    %102 = vector.shape_cast %101 : vector<1x1x1x8x64xbf16> to vector<8x64xbf16>
    %103 = vector.shape_cast %100 : vector<8x64xbf16> to vector<1x1x1x8x64xbf16>
    tpu.vector_store %arg5[%c0_114, %c2_115, %c7_116, %c0_117, %c0_118], %103 {strides = array<i32>} : memref<1x3x8x8x64xbf16, #tpu.memory_space<vmem>>, vector<1x1x1x8x64xbf16>,
    return
  }
  func.func @transform_0(%arg0: i32, %arg1: i32) -> (i32, i32, i32) {
    %c0_i32 = arith.constant 0 : i32
    %c0_i32_0 = arith.constant 0 : i32
    return %arg0, %arg1, %c0_i32 : i32, i32, i32
  }
  func.func @transform_1(%arg0: i32, %arg1: i32) -> (i32, i32) {
    %c0_i32 = arith.constant 0 : i32
    %c0_i32_0 = arith.constant 0 : i32
    %c0_i32_1 = arith.constant 0 : i32
    return %c0_i32, %c0_i32_0 : i32, i32
  }
  func.func @transform_2(%arg0: i32, %arg1: i32) -> (i32, i32) {
    %c0_i32 = arith.constant 0 : i32
    %c0_i32_0 = arith.constant 0 : i32
    %c0_i32_1 = arith.constant 0 : i32
    return %c0_i32, %c0_i32_0 : i32, i32
  }
  func.func @transform_3(%arg0: i32, %arg1: i32) -> (i32, i32, i32, i32, i32) {
    %c0_i32 = arith.constant 0 : i32
    %c0_i32_0 = arith.constant 0 : i32
    %c0_i32_1 = arith.constant 0 : i32
    %c0_i32_2 = arith.constant 0 : i32
    return %arg0, %c0_i32, %c0_i32_0, %arg1, %c0_i32_1 : i32, i32, i32, i32, i32
  }
}

module attributes {stable_mosaic.version = 11 : i64} {
  func.func @_mha_kernel(%arg0: i32, %arg1: i32, %arg2: memref<1x1x8x8x64xbf16, #tpu.memory_space<vmem>>, %arg3: memref<1x1x8x8x64xbf16, #tpu.memory_space<vmem>>, %arg4: memref<1x1x8x8x64xbf16, #tpu.memory_space<vmem>>, %arg5: memref<8x64x32xbf16, #tpu.memory_space<vmem>>, %arg6: memref<1x32xf32, #tpu.memory_space<vmem>>, %arg7: memref<1x8x32xf32, #tpu.memory_space<vmem>>, %arg8: memref<8x32xf32, #tpu.memory_space<vmem>>) attributes {dimension_semantics = [#tpu.dimension_semantics<parallel>, #tpu.dimension_semantics<parallel>], iteration_bounds = array<i64: 2, 1>, scalar_prefetch = 0 : i64, scratch_operands = 1 : i64, tpu.core_type = #tpu.core_type<tc>, window_params = [{transform_indices = @transform_0, window_bounds = array<i64: 1, 1, 8, 8, 64>}, {transform_indices = @transform_1, window_bounds = array<i64: 1, 1, 8, 8, 64>}, {transform_indices = @transform_2, window_bounds = array<i64: 1, 1, 8, 8, 64>}, {pipeline_mode = #tpu.pipeline_mode<synchronous>, transform_indices = @transform_3, window_bounds = array<i64: 8, 64, 32>}, {pipeline_mode = #tpu.pipeline_mode<synchronous>, transform_indices = @transform_4, window_bounds = array<i64: 1, 32>}, {transform_indices = @transform_5, window_bounds = array<i64: 1, 8, 32>}]} {
    %cst = arith.constant 0.000000e+00 : f32
    %0 = vector.broadcast %cst : f32 to vector<8x32xf32>
    %c0 = arith.constant 0 : index
    %c0_0 = arith.constant 0 : index
    %1 = vector.load %arg8[%c0, %c0_0] : memref<8x32xf32, #tpu.memory_space<vmem>>, vector<8x32xf32>
    tpu.vector_store %arg8[%c0, %c0_0], %0 {strides = array<i32>} : memref<8x32xf32, #tpu.memory_space<vmem>>, vector<8x32xf32>,
    %c0_i32 = arith.constant 0 : i32
    %c0_1 = arith.constant 0 : index
    %c0_2 = arith.constant 0 : index
    %2 = arith.index_cast %c0_i32 : i32 to index
    %c0_3 = arith.constant 0 : index
    %c0_4 = arith.constant 0 : index
    %3 = vector.load %arg2[%c0_1, %c0_2, %2, %c0_3, %c0_4] : memref<1x1x8x8x64xbf16, #tpu.memory_space<vmem>>, vector<1x1x1x8x64xbf16>
    %4 = vector.shape_cast %3 : vector<1x1x1x8x64xbf16> to vector<8x64xbf16>
    %cst_5 = arith.constant 1.250000e-01 : bf16
    %5 = vector.broadcast %cst_5 : bf16 to vector<8x64xbf16>
    %6 = arith.mulf %4, %5 : vector<8x64xbf16>
    %c0_6 = arith.constant 0 : index
    %c0_7 = arith.constant 0 : index
    %7 = arith.index_cast %c0_i32 : i32 to index
    %c0_8 = arith.constant 0 : index
    %c0_9 = arith.constant 0 : index
    %8 = vector.load %arg3[%c0_6, %c0_7, %7, %c0_8, %c0_9] : memref<1x1x8x8x64xbf16, #tpu.memory_space<vmem>>, vector<1x1x1x8x64xbf16>
    %9 = vector.shape_cast %8 : vector<1x1x1x8x64xbf16> to vector<8x64xbf16>
    %cst_10 = arith.constant dense<0.000000e+00> : vector<8x8xf32>
    %10 = tpu.matmul %6, %9, %cst_10 {dimension_numbers = #tpu.dot_dimension_numbers<[1], [1], [0], [0], [0, 0, 1, 0], [], []>} : vector<8x64xbf16>, vector<8x64xbf16>, vector<8x8xf32> -> vector<8x8xf32>
    %cst_11 = arith.constant dense<0xFF800000> : vector<8xf32>
    %11 = vector.multi_reduction <maximumf>, %10, %cst_11 [1] : vector<8x8xf32> to vector<8xf32>
    %12 = vector.shape_cast %11 : vector<8xf32> to vector<8x1xf32>
    %13 = vector.broadcast %12 : vector<8x1xf32> to vector<8x8xf32>
    %14 = arith.subf %10, %13 : vector<8x8xf32>
    %15 = math.exp %14 : vector<8x8xf32>
    %cst_12 = arith.constant dense<0.000000e+00> : vector<8xf32>
    %16 = vector.multi_reduction <add>, %15, %cst_12 [1] : vector<8x8xf32> to vector<8xf32>
    %17 = vector.shape_cast %16 : vector<8xf32> to vector<8x1xf32>
    %18 = tpu.reciprocal %17 {approx = true} : vector<8x1xf32> -> vector<8x1xf32>
    %19 = vector.broadcast %18 : vector<8x1xf32> to vector<8x8xf32>
    %20 = arith.mulf %15, %19 : vector<8x8xf32>
    %21 = arith.truncf %20 : vector<8x8xf32> to vector<8x8xbf16>
    %c0_13 = arith.constant 0 : index
    %c0_14 = arith.constant 0 : index
    %22 = arith.index_cast %c0_i32 : i32 to index
    %c0_15 = arith.constant 0 : index
    %c0_16 = arith.constant 0 : index
    %23 = vector.load %arg4[%c0_13, %c0_14, %22, %c0_15, %c0_16] : memref<1x1x8x8x64xbf16, #tpu.memory_space<vmem>>, vector<1x1x1x8x64xbf16>
    %24 = vector.shape_cast %23 : vector<1x1x1x8x64xbf16> to vector<8x64xbf16>
    %cst_17 = arith.constant dense<0.000000e+00> : vector<8x64xf32>
    %25 = tpu.matmul %21, %24, %cst_17 {dimension_numbers = #tpu.dot_dimension_numbers<[1], [0], [0], [1], [0, 0, 1, 1], [], []>} : vector<8x8xbf16>, vector<8x64xbf16>, vector<8x64xf32> -> vector<8x64xf32>
    %c0_18 = arith.constant 0 : index
    %c0_19 = arith.constant 0 : index
    %26 = vector.load %arg8[%c0_18, %c0_19] : memref<8x32xf32, #tpu.memory_space<vmem>>, vector<8x32xf32>
    %27 = arith.truncf %25 : vector<8x64xf32> to vector<8x64xbf16>
    %28 = arith.index_cast %c0_i32 : i32 to index
    %c0_20 = arith.constant 0 : index
    %c0_21 = arith.constant 0 : index
    %29 = vector.load %arg5[%28, %c0_20, %c0_21] : memref<8x64x32xbf16, #tpu.memory_space<vmem>>, vector<1x64x32xbf16>
    %30 = vector.shape_cast %29 : vector<1x64x32xbf16> to vector<64x32xbf16>
    %cst_22 = arith.constant dense<0.000000e+00> : vector<8x32xf32>
    %31 = tpu.matmul %27, %30, %cst_22 {dimension_numbers = #tpu.dot_dimension_numbers<[1], [0], [0], [1], [0, 0, 1, 1], [], []>} : vector<8x64xbf16>, vector<64x32xbf16>, vector<8x32xf32> -> vector<8x32xf32>
    %32 = arith.addf %26, %31 : vector<8x32xf32>
    %c0_23 = arith.constant 0 : index
    %c0_24 = arith.constant 0 : index
    %33 = vector.load %arg8[%c0_23, %c0_24] : memref<8x32xf32, #tpu.memory_space<vmem>>, vector<8x32xf32>
    tpu.vector_store %arg8[%c0_23, %c0_24], %32 {strides = array<i32>} : memref<8x32xf32, #tpu.memory_space<vmem>>, vector<8x32xf32>,
    %c1_i32 = arith.constant 1 : i32
    %c0_25 = arith.constant 0 : index
    %c0_26 = arith.constant 0 : index
    %34 = arith.index_cast %c1_i32 : i32 to index
    %c0_27 = arith.constant 0 : index
    %c0_28 = arith.constant 0 : index
    %35 = vector.load %arg2[%c0_25, %c0_26, %34, %c0_27, %c0_28] : memref<1x1x8x8x64xbf16, #tpu.memory_space<vmem>>, vector<1x1x1x8x64xbf16>
    %36 = vector.shape_cast %35 : vector<1x1x1x8x64xbf16> to vector<8x64xbf16>
    %cst_29 = arith.constant 1.250000e-01 : bf16
    %37 = vector.broadcast %cst_29 : bf16 to vector<8x64xbf16>
    %38 = arith.mulf %36, %37 : vector<8x64xbf16>
    %c0_30 = arith.constant 0 : index
    %c0_31 = arith.constant 0 : index
    %39 = arith.index_cast %c1_i32 : i32 to index
    %c0_32 = arith.constant 0 : index
    %c0_33 = arith.constant 0 : index
    %40 = vector.load %arg3[%c0_30, %c0_31, %39, %c0_32, %c0_33] : memref<1x1x8x8x64xbf16, #tpu.memory_space<vmem>>, vector<1x1x1x8x64xbf16>
    %41 = vector.shape_cast %40 : vector<1x1x1x8x64xbf16> to vector<8x64xbf16>
    %cst_34 = arith.constant dense<0.000000e+00> : vector<8x8xf32>
    %42 = tpu.matmul %38, %41, %cst_34 {dimension_numbers = #tpu.dot_dimension_numbers<[1], [1], [0], [0], [0, 0, 1, 0], [], []>} : vector<8x64xbf16>, vector<8x64xbf16>, vector<8x8xf32> -> vector<8x8xf32>
    %cst_35 = arith.constant dense<0xFF800000> : vector<8xf32>
    %43 = vector.multi_reduction <maximumf>, %42, %cst_35 [1] : vector<8x8xf32> to vector<8xf32>
    %44 = vector.shape_cast %43 : vector<8xf32> to vector<8x1xf32>
    %45 = vector.broadcast %44 : vector<8x1xf32> to vector<8x8xf32>
    %46 = arith.subf %42, %45 : vector<8x8xf32>
    %47 = math.exp %46 : vector<8x8xf32>
    %cst_36 = arith.constant dense<0.000000e+00> : vector<8xf32>
    %48 = vector.multi_reduction <add>, %47, %cst_36 [1] : vector<8x8xf32> to vector<8xf32>
    %49 = vector.shape_cast %48 : vector<8xf32> to vector<8x1xf32>
    %50 = tpu.reciprocal %49 {approx = true} : vector<8x1xf32> -> vector<8x1xf32>
    %51 = vector.broadcast %50 : vector<8x1xf32> to vector<8x8xf32>
    %52 = arith.mulf %47, %51 : vector<8x8xf32>
    %53 = arith.truncf %52 : vector<8x8xf32> to vector<8x8xbf16>
    %c0_37 = arith.constant 0 : index
    %c0_38 = arith.constant 0 : index
    %54 = arith.index_cast %c1_i32 : i32 to index
    %c0_39 = arith.constant 0 : index
    %c0_40 = arith.constant 0 : index
    %55 = vector.load %arg4[%c0_37, %c0_38, %54, %c0_39, %c0_40] : memref<1x1x8x8x64xbf16, #tpu.memory_space<vmem>>, vector<1x1x1x8x64xbf16>
    %56 = vector.shape_cast %55 : vector<1x1x1x8x64xbf16> to vector<8x64xbf16>
    %cst_41 = arith.constant dense<0.000000e+00> : vector<8x64xf32>
    %57 = tpu.matmul %53, %56, %cst_41 {dimension_numbers = #tpu.dot_dimension_numbers<[1], [0], [0], [1], [0, 0, 1, 1], [], []>} : vector<8x8xbf16>, vector<8x64xbf16>, vector<8x64xf32> -> vector<8x64xf32>
    %c0_42 = arith.constant 0 : index
    %c0_43 = arith.constant 0 : index
    %58 = vector.load %arg8[%c0_42, %c0_43] : memref<8x32xf32, #tpu.memory_space<vmem>>, vector<8x32xf32>
    %59 = arith.truncf %57 : vector<8x64xf32> to vector<8x64xbf16>
    %60 = arith.index_cast %c1_i32 : i32 to index
    %c0_44 = arith.constant 0 : index
    %c0_45 = arith.constant 0 : index
    %61 = vector.load %arg5[%60, %c0_44, %c0_45] : memref<8x64x32xbf16, #tpu.memory_space<vmem>>, vector<1x64x32xbf16>
    %62 = vector.shape_cast %61 : vector<1x64x32xbf16> to vector<64x32xbf16>
    %cst_46 = arith.constant dense<0.000000e+00> : vector<8x32xf32>
    %63 = tpu.matmul %59, %62, %cst_46 {dimension_numbers = #tpu.dot_dimension_numbers<[1], [0], [0], [1], [0, 0, 1, 1], [], []>} : vector<8x64xbf16>, vector<64x32xbf16>, vector<8x32xf32> -> vector<8x32xf32>
    %64 = arith.addf %58, %63 : vector<8x32xf32>
    %c0_47 = arith.constant 0 : index
    %c0_48 = arith.constant 0 : index
    %65 = vector.load %arg8[%c0_47, %c0_48] : memref<8x32xf32, #tpu.memory_space<vmem>>, vector<8x32xf32>
    tpu.vector_store %arg8[%c0_47, %c0_48], %64 {strides = array<i32>} : memref<8x32xf32, #tpu.memory_space<vmem>>, vector<8x32xf32>,
    %c2_i32 = arith.constant 2 : i32
    %c0_49 = arith.constant 0 : index
    %c0_50 = arith.constant 0 : index
    %66 = arith.index_cast %c2_i32 : i32 to index
    %c0_51 = arith.constant 0 : index
    %c0_52 = arith.constant 0 : index
    %67 = vector.load %arg2[%c0_49, %c0_50, %66, %c0_51, %c0_52] : memref<1x1x8x8x64xbf16, #tpu.memory_space<vmem>>, vector<1x1x1x8x64xbf16>
    %68 = vector.shape_cast %67 : vector<1x1x1x8x64xbf16> to vector<8x64xbf16>
    %cst_53 = arith.constant 1.250000e-01 : bf16
    %69 = vector.broadcast %cst_53 : bf16 to vector<8x64xbf16>
    %70 = arith.mulf %68, %69 : vector<8x64xbf16>
    %c0_54 = arith.constant 0 : index
    %c0_55 = arith.constant 0 : index
    %71 = arith.index_cast %c2_i32 : i32 to index
    %c0_56 = arith.constant 0 : index
    %c0_57 = arith.constant 0 : index
    %72 = vector.load %arg3[%c0_54, %c0_55, %71, %c0_56, %c0_57] : memref<1x1x8x8x64xbf16, #tpu.memory_space<vmem>>, vector<1x1x1x8x64xbf16>
    %73 = vector.shape_cast %72 : vector<1x1x1x8x64xbf16> to vector<8x64xbf16>
    %cst_58 = arith.constant dense<0.000000e+00> : vector<8x8xf32>
    %74 = tpu.matmul %70, %73, %cst_58 {dimension_numbers = #tpu.dot_dimension_numbers<[1], [1], [0], [0], [0, 0, 1, 0], [], []>} : vector<8x64xbf16>, vector<8x64xbf16>, vector<8x8xf32> -> vector<8x8xf32>
    %cst_59 = arith.constant dense<0xFF800000> : vector<8xf32>
    %75 = vector.multi_reduction <maximumf>, %74, %cst_59 [1] : vector<8x8xf32> to vector<8xf32>
    %76 = vector.shape_cast %75 : vector<8xf32> to vector<8x1xf32>
    %77 = vector.broadcast %76 : vector<8x1xf32> to vector<8x8xf32>
    %78 = arith.subf %74, %77 : vector<8x8xf32>
    %79 = math.exp %78 : vector<8x8xf32>
    %cst_60 = arith.constant dense<0.000000e+00> : vector<8xf32>
    %80 = vector.multi_reduction <add>, %79, %cst_60 [1] : vector<8x8xf32> to vector<8xf32>
    %81 = vector.shape_cast %80 : vector<8xf32> to vector<8x1xf32>
    %82 = tpu.reciprocal %81 {approx = true} : vector<8x1xf32> -> vector<8x1xf32>
    %83 = vector.broadcast %82 : vector<8x1xf32> to vector<8x8xf32>
    %84 = arith.mulf %79, %83 : vector<8x8xf32>
    %85 = arith.truncf %84 : vector<8x8xf32> to vector<8x8xbf16>
    %c0_61 = arith.constant 0 : index
    %c0_62 = arith.constant 0 : index
    %86 = arith.index_cast %c2_i32 : i32 to index
    %c0_63 = arith.constant 0 : index
    %c0_64 = arith.constant 0 : index
    %87 = vector.load %arg4[%c0_61, %c0_62, %86, %c0_63, %c0_64] : memref<1x1x8x8x64xbf16, #tpu.memory_space<vmem>>, vector<1x1x1x8x64xbf16>
    %88 = vector.shape_cast %87 : vector<1x1x1x8x64xbf16> to vector<8x64xbf16>
    %cst_65 = arith.constant dense<0.000000e+00> : vector<8x64xf32>
    %89 = tpu.matmul %85, %88, %cst_65 {dimension_numbers = #tpu.dot_dimension_numbers<[1], [0], [0], [1], [0, 0, 1, 1], [], []>} : vector<8x8xbf16>, vector<8x64xbf16>, vector<8x64xf32> -> vector<8x64xf32>
    %c0_66 = arith.constant 0 : index
    %c0_67 = arith.constant 0 : index
    %90 = vector.load %arg8[%c0_66, %c0_67] : memref<8x32xf32, #tpu.memory_space<vmem>>, vector<8x32xf32>
    %91 = arith.truncf %89 : vector<8x64xf32> to vector<8x64xbf16>
    %92 = arith.index_cast %c2_i32 : i32 to index
    %c0_68 = arith.constant 0 : index
    %c0_69 = arith.constant 0 : index
    %93 = vector.load %arg5[%92, %c0_68, %c0_69] : memref<8x64x32xbf16, #tpu.memory_space<vmem>>, vector<1x64x32xbf16>
    %94 = vector.shape_cast %93 : vector<1x64x32xbf16> to vector<64x32xbf16>
    %cst_70 = arith.constant dense<0.000000e+00> : vector<8x32xf32>
    %95 = tpu.matmul %91, %94, %cst_70 {dimension_numbers = #tpu.dot_dimension_numbers<[1], [0], [0], [1], [0, 0, 1, 1], [], []>} : vector<8x64xbf16>, vector<64x32xbf16>, vector<8x32xf32> -> vector<8x32xf32>
    %96 = arith.addf %90, %95 : vector<8x32xf32>
    %c0_71 = arith.constant 0 : index
    %c0_72 = arith.constant 0 : index
    %97 = vector.load %arg8[%c0_71, %c0_72] : memref<8x32xf32, #tpu.memory_space<vmem>>, vector<8x32xf32>
    tpu.vector_store %arg8[%c0_71, %c0_72], %96 {strides = array<i32>} : memref<8x32xf32, #tpu.memory_space<vmem>>, vector<8x32xf32>,
    %c3_i32 = arith.constant 3 : i32
    %c0_73 = arith.constant 0 : index
    %c0_74 = arith.constant 0 : index
    %98 = arith.index_cast %c3_i32 : i32 to index
    %c0_75 = arith.constant 0 : index
    %c0_76 = arith.constant 0 : index
    %99 = vector.load %arg2[%c0_73, %c0_74, %98, %c0_75, %c0_76] : memref<1x1x8x8x64xbf16, #tpu.memory_space<vmem>>, vector<1x1x1x8x64xbf16>
    %100 = vector.shape_cast %99 : vector<1x1x1x8x64xbf16> to vector<8x64xbf16>
    %cst_77 = arith.constant 1.250000e-01 : bf16
    %101 = vector.broadcast %cst_77 : bf16 to vector<8x64xbf16>
    %102 = arith.mulf %100, %101 : vector<8x64xbf16>
    %c0_78 = arith.constant 0 : index
    %c0_79 = arith.constant 0 : index
    %103 = arith.index_cast %c3_i32 : i32 to index
    %c0_80 = arith.constant 0 : index
    %c0_81 = arith.constant 0 : index
    %104 = vector.load %arg3[%c0_78, %c0_79, %103, %c0_80, %c0_81] : memref<1x1x8x8x64xbf16, #tpu.memory_space<vmem>>, vector<1x1x1x8x64xbf16>
    %105 = vector.shape_cast %104 : vector<1x1x1x8x64xbf16> to vector<8x64xbf16>
    %cst_82 = arith.constant dense<0.000000e+00> : vector<8x8xf32>
    %106 = tpu.matmul %102, %105, %cst_82 {dimension_numbers = #tpu.dot_dimension_numbers<[1], [1], [0], [0], [0, 0, 1, 0], [], []>} : vector<8x64xbf16>, vector<8x64xbf16>, vector<8x8xf32> -> vector<8x8xf32>
    %cst_83 = arith.constant dense<0xFF800000> : vector<8xf32>
    %107 = vector.multi_reduction <maximumf>, %106, %cst_83 [1] : vector<8x8xf32> to vector<8xf32>
    %108 = vector.shape_cast %107 : vector<8xf32> to vector<8x1xf32>
    %109 = vector.broadcast %108 : vector<8x1xf32> to vector<8x8xf32>
    %110 = arith.subf %106, %109 : vector<8x8xf32>
    %111 = math.exp %110 : vector<8x8xf32>
    %cst_84 = arith.constant dense<0.000000e+00> : vector<8xf32>
    %112 = vector.multi_reduction <add>, %111, %cst_84 [1] : vector<8x8xf32> to vector<8xf32>
    %113 = vector.shape_cast %112 : vector<8xf32> to vector<8x1xf32>
    %114 = tpu.reciprocal %113 {approx = true} : vector<8x1xf32> -> vector<8x1xf32>
    %115 = vector.broadcast %114 : vector<8x1xf32> to vector<8x8xf32>
    %116 = arith.mulf %111, %115 : vector<8x8xf32>
    %117 = arith.truncf %116 : vector<8x8xf32> to vector<8x8xbf16>
    %c0_85 = arith.constant 0 : index
    %c0_86 = arith.constant 0 : index
    %118 = arith.index_cast %c3_i32 : i32 to index
    %c0_87 = arith.constant 0 : index
    %c0_88 = arith.constant 0 : index
    %119 = vector.load %arg4[%c0_85, %c0_86, %118, %c0_87, %c0_88] : memref<1x1x8x8x64xbf16, #tpu.memory_space<vmem>>, vector<1x1x1x8x64xbf16>
    %120 = vector.shape_cast %119 : vector<1x1x1x8x64xbf16> to vector<8x64xbf16>
    %cst_89 = arith.constant dense<0.000000e+00> : vector<8x64xf32>
    %121 = tpu.matmul %117, %120, %cst_89 {dimension_numbers = #tpu.dot_dimension_numbers<[1], [0], [0], [1], [0, 0, 1, 1], [], []>} : vector<8x8xbf16>, vector<8x64xbf16>, vector<8x64xf32> -> vector<8x64xf32>
    %c0_90 = arith.constant 0 : index
    %c0_91 = arith.constant 0 : index
    %122 = vector.load %arg8[%c0_90, %c0_91] : memref<8x32xf32, #tpu.memory_space<vmem>>, vector<8x32xf32>
    %123 = arith.truncf %121 : vector<8x64xf32> to vector<8x64xbf16>
    %124 = arith.index_cast %c3_i32 : i32 to index
    %c0_92 = arith.constant 0 : index
    %c0_93 = arith.constant 0 : index
    %125 = vector.load %arg5[%124, %c0_92, %c0_93] : memref<8x64x32xbf16, #tpu.memory_space<vmem>>, vector<1x64x32xbf16>
    %126 = vector.shape_cast %125 : vector<1x64x32xbf16> to vector<64x32xbf16>
    %cst_94 = arith.constant dense<0.000000e+00> : vector<8x32xf32>
    %127 = tpu.matmul %123, %126, %cst_94 {dimension_numbers = #tpu.dot_dimension_numbers<[1], [0], [0], [1], [0, 0, 1, 1], [], []>} : vector<8x64xbf16>, vector<64x32xbf16>, vector<8x32xf32> -> vector<8x32xf32>
    %128 = arith.addf %122, %127 : vector<8x32xf32>
    %c0_95 = arith.constant 0 : index
    %c0_96 = arith.constant 0 : index
    %129 = vector.load %arg8[%c0_95, %c0_96] : memref<8x32xf32, #tpu.memory_space<vmem>>, vector<8x32xf32>
    tpu.vector_store %arg8[%c0_95, %c0_96], %128 {strides = array<i32>} : memref<8x32xf32, #tpu.memory_space<vmem>>, vector<8x32xf32>,
    %c4_i32 = arith.constant 4 : i32
    %c0_97 = arith.constant 0 : index
    %c0_98 = arith.constant 0 : index
    %130 = arith.index_cast %c4_i32 : i32 to index
    %c0_99 = arith.constant 0 : index
    %c0_100 = arith.constant 0 : index
    %131 = vector.load %arg2[%c0_97, %c0_98, %130, %c0_99, %c0_100] : memref<1x1x8x8x64xbf16, #tpu.memory_space<vmem>>, vector<1x1x1x8x64xbf16>
    %132 = vector.shape_cast %131 : vector<1x1x1x8x64xbf16> to vector<8x64xbf16>
    %cst_101 = arith.constant 1.250000e-01 : bf16
    %133 = vector.broadcast %cst_101 : bf16 to vector<8x64xbf16>
    %134 = arith.mulf %132, %133 : vector<8x64xbf16>
    %c0_102 = arith.constant 0 : index
    %c0_103 = arith.constant 0 : index
    %135 = arith.index_cast %c4_i32 : i32 to index
    %c0_104 = arith.constant 0 : index
    %c0_105 = arith.constant 0 : index
    %136 = vector.load %arg3[%c0_102, %c0_103, %135, %c0_104, %c0_105] : memref<1x1x8x8x64xbf16, #tpu.memory_space<vmem>>, vector<1x1x1x8x64xbf16>
    %137 = vector.shape_cast %136 : vector<1x1x1x8x64xbf16> to vector<8x64xbf16>
    %cst_106 = arith.constant dense<0.000000e+00> : vector<8x8xf32>
    %138 = tpu.matmul %134, %137, %cst_106 {dimension_numbers = #tpu.dot_dimension_numbers<[1], [1], [0], [0], [0, 0, 1, 0], [], []>} : vector<8x64xbf16>, vector<8x64xbf16>, vector<8x8xf32> -> vector<8x8xf32>
    %cst_107 = arith.constant dense<0xFF800000> : vector<8xf32>
    %139 = vector.multi_reduction <maximumf>, %138, %cst_107 [1] : vector<8x8xf32> to vector<8xf32>
    %140 = vector.shape_cast %139 : vector<8xf32> to vector<8x1xf32>
    %141 = vector.broadcast %140 : vector<8x1xf32> to vector<8x8xf32>
    %142 = arith.subf %138, %141 : vector<8x8xf32>
    %143 = math.exp %142 : vector<8x8xf32>
    %cst_108 = arith.constant dense<0.000000e+00> : vector<8xf32>
    %144 = vector.multi_reduction <add>, %143, %cst_108 [1] : vector<8x8xf32> to vector<8xf32>
    %145 = vector.shape_cast %144 : vector<8xf32> to vector<8x1xf32>
    %146 = tpu.reciprocal %145 {approx = true} : vector<8x1xf32> -> vector<8x1xf32>
    %147 = vector.broadcast %146 : vector<8x1xf32> to vector<8x8xf32>
    %148 = arith.mulf %143, %147 : vector<8x8xf32>
    %149 = arith.truncf %148 : vector<8x8xf32> to vector<8x8xbf16>
    %c0_109 = arith.constant 0 : index
    %c0_110 = arith.constant 0 : index
    %150 = arith.index_cast %c4_i32 : i32 to index
    %c0_111 = arith.constant 0 : index
    %c0_112 = arith.constant 0 : index
    %151 = vector.load %arg4[%c0_109, %c0_110, %150, %c0_111, %c0_112] : memref<1x1x8x8x64xbf16, #tpu.memory_space<vmem>>, vector<1x1x1x8x64xbf16>
    %152 = vector.shape_cast %151 : vector<1x1x1x8x64xbf16> to vector<8x64xbf16>
    %cst_113 = arith.constant dense<0.000000e+00> : vector<8x64xf32>
    %153 = tpu.matmul %149, %152, %cst_113 {dimension_numbers = #tpu.dot_dimension_numbers<[1], [0], [0], [1], [0, 0, 1, 1], [], []>} : vector<8x8xbf16>, vector<8x64xbf16>, vector<8x64xf32> -> vector<8x64xf32>
    %c0_114 = arith.constant 0 : index
    %c0_115 = arith.constant 0 : index
    %154 = vector.load %arg8[%c0_114, %c0_115] : memref<8x32xf32, #tpu.memory_space<vmem>>, vector<8x32xf32>
    %155 = arith.truncf %153 : vector<8x64xf32> to vector<8x64xbf16>
    %156 = arith.index_cast %c4_i32 : i32 to index
    %c0_116 = arith.constant 0 : index
    %c0_117 = arith.constant 0 : index
    %157 = vector.load %arg5[%156, %c0_116, %c0_117] : memref<8x64x32xbf16, #tpu.memory_space<vmem>>, vector<1x64x32xbf16>
    %158 = vector.shape_cast %157 : vector<1x64x32xbf16> to vector<64x32xbf16>
    %cst_118 = arith.constant dense<0.000000e+00> : vector<8x32xf32>
    %159 = tpu.matmul %155, %158, %cst_118 {dimension_numbers = #tpu.dot_dimension_numbers<[1], [0], [0], [1], [0, 0, 1, 1], [], []>} : vector<8x64xbf16>, vector<64x32xbf16>, vector<8x32xf32> -> vector<8x32xf32>
    %160 = arith.addf %154, %159 : vector<8x32xf32>
    %c0_119 = arith.constant 0 : index
    %c0_120 = arith.constant 0 : index
    %161 = vector.load %arg8[%c0_119, %c0_120] : memref<8x32xf32, #tpu.memory_space<vmem>>, vector<8x32xf32>
    tpu.vector_store %arg8[%c0_119, %c0_120], %160 {strides = array<i32>} : memref<8x32xf32, #tpu.memory_space<vmem>>, vector<8x32xf32>,
    %c5_i32 = arith.constant 5 : i32
    %c0_121 = arith.constant 0 : index
    %c0_122 = arith.constant 0 : index
    %162 = arith.index_cast %c5_i32 : i32 to index
    %c0_123 = arith.constant 0 : index
    %c0_124 = arith.constant 0 : index
    %163 = vector.load %arg2[%c0_121, %c0_122, %162, %c0_123, %c0_124] : memref<1x1x8x8x64xbf16, #tpu.memory_space<vmem>>, vector<1x1x1x8x64xbf16>
    %164 = vector.shape_cast %163 : vector<1x1x1x8x64xbf16> to vector<8x64xbf16>
    %cst_125 = arith.constant 1.250000e-01 : bf16
    %165 = vector.broadcast %cst_125 : bf16 to vector<8x64xbf16>
    %166 = arith.mulf %164, %165 : vector<8x64xbf16>
    %c0_126 = arith.constant 0 : index
    %c0_127 = arith.constant 0 : index
    %167 = arith.index_cast %c5_i32 : i32 to index
    %c0_128 = arith.constant 0 : index
    %c0_129 = arith.constant 0 : index
    %168 = vector.load %arg3[%c0_126, %c0_127, %167, %c0_128, %c0_129] : memref<1x1x8x8x64xbf16, #tpu.memory_space<vmem>>, vector<1x1x1x8x64xbf16>
    %169 = vector.shape_cast %168 : vector<1x1x1x8x64xbf16> to vector<8x64xbf16>
    %cst_130 = arith.constant dense<0.000000e+00> : vector<8x8xf32>
    %170 = tpu.matmul %166, %169, %cst_130 {dimension_numbers = #tpu.dot_dimension_numbers<[1], [1], [0], [0], [0, 0, 1, 0], [], []>} : vector<8x64xbf16>, vector<8x64xbf16>, vector<8x8xf32> -> vector<8x8xf32>
    %cst_131 = arith.constant dense<0xFF800000> : vector<8xf32>
    %171 = vector.multi_reduction <maximumf>, %170, %cst_131 [1] : vector<8x8xf32> to vector<8xf32>
    %172 = vector.shape_cast %171 : vector<8xf32> to vector<8x1xf32>
    %173 = vector.broadcast %172 : vector<8x1xf32> to vector<8x8xf32>
    %174 = arith.subf %170, %173 : vector<8x8xf32>
    %175 = math.exp %174 : vector<8x8xf32>
    %cst_132 = arith.constant dense<0.000000e+00> : vector<8xf32>
    %176 = vector.multi_reduction <add>, %175, %cst_132 [1] : vector<8x8xf32> to vector<8xf32>
    %177 = vector.shape_cast %176 : vector<8xf32> to vector<8x1xf32>
    %178 = tpu.reciprocal %177 {approx = true} : vector<8x1xf32> -> vector<8x1xf32>
    %179 = vector.broadcast %178 : vector<8x1xf32> to vector<8x8xf32>
    %180 = arith.mulf %175, %179 : vector<8x8xf32>
    %181 = arith.truncf %180 : vector<8x8xf32> to vector<8x8xbf16>
    %c0_133 = arith.constant 0 : index
    %c0_134 = arith.constant 0 : index
    %182 = arith.index_cast %c5_i32 : i32 to index
    %c0_135 = arith.constant 0 : index
    %c0_136 = arith.constant 0 : index
    %183 = vector.load %arg4[%c0_133, %c0_134, %182, %c0_135, %c0_136] : memref<1x1x8x8x64xbf16, #tpu.memory_space<vmem>>, vector<1x1x1x8x64xbf16>
    %184 = vector.shape_cast %183 : vector<1x1x1x8x64xbf16> to vector<8x64xbf16>
    %cst_137 = arith.constant dense<0.000000e+00> : vector<8x64xf32>
    %185 = tpu.matmul %181, %184, %cst_137 {dimension_numbers = #tpu.dot_dimension_numbers<[1], [0], [0], [1], [0, 0, 1, 1], [], []>} : vector<8x8xbf16>, vector<8x64xbf16>, vector<8x64xf32> -> vector<8x64xf32>
    %c0_138 = arith.constant 0 : index
    %c0_139 = arith.constant 0 : index
    %186 = vector.load %arg8[%c0_138, %c0_139] : memref<8x32xf32, #tpu.memory_space<vmem>>, vector<8x32xf32>
    %187 = arith.truncf %185 : vector<8x64xf32> to vector<8x64xbf16>
    %188 = arith.index_cast %c5_i32 : i32 to index
    %c0_140 = arith.constant 0 : index
    %c0_141 = arith.constant 0 : index
    %189 = vector.load %arg5[%188, %c0_140, %c0_141] : memref<8x64x32xbf16, #tpu.memory_space<vmem>>, vector<1x64x32xbf16>
    %190 = vector.shape_cast %189 : vector<1x64x32xbf16> to vector<64x32xbf16>
    %cst_142 = arith.constant dense<0.000000e+00> : vector<8x32xf32>
    %191 = tpu.matmul %187, %190, %cst_142 {dimension_numbers = #tpu.dot_dimension_numbers<[1], [0], [0], [1], [0, 0, 1, 1], [], []>} : vector<8x64xbf16>, vector<64x32xbf16>, vector<8x32xf32> -> vector<8x32xf32>
    %192 = arith.addf %186, %191 : vector<8x32xf32>
    %c0_143 = arith.constant 0 : index
    %c0_144 = arith.constant 0 : index
    %193 = vector.load %arg8[%c0_143, %c0_144] : memref<8x32xf32, #tpu.memory_space<vmem>>, vector<8x32xf32>
    tpu.vector_store %arg8[%c0_143, %c0_144], %192 {strides = array<i32>} : memref<8x32xf32, #tpu.memory_space<vmem>>, vector<8x32xf32>,
    %c6_i32 = arith.constant 6 : i32
    %c0_145 = arith.constant 0 : index
    %c0_146 = arith.constant 0 : index
    %194 = arith.index_cast %c6_i32 : i32 to index
    %c0_147 = arith.constant 0 : index
    %c0_148 = arith.constant 0 : index
    %195 = vector.load %arg2[%c0_145, %c0_146, %194, %c0_147, %c0_148] : memref<1x1x8x8x64xbf16, #tpu.memory_space<vmem>>, vector<1x1x1x8x64xbf16>
    %196 = vector.shape_cast %195 : vector<1x1x1x8x64xbf16> to vector<8x64xbf16>
    %cst_149 = arith.constant 1.250000e-01 : bf16
    %197 = vector.broadcast %cst_149 : bf16 to vector<8x64xbf16>
    %198 = arith.mulf %196, %197 : vector<8x64xbf16>
    %c0_150 = arith.constant 0 : index
    %c0_151 = arith.constant 0 : index
    %199 = arith.index_cast %c6_i32 : i32 to index
    %c0_152 = arith.constant 0 : index
    %c0_153 = arith.constant 0 : index
    %200 = vector.load %arg3[%c0_150, %c0_151, %199, %c0_152, %c0_153] : memref<1x1x8x8x64xbf16, #tpu.memory_space<vmem>>, vector<1x1x1x8x64xbf16>
    %201 = vector.shape_cast %200 : vector<1x1x1x8x64xbf16> to vector<8x64xbf16>
    %cst_154 = arith.constant dense<0.000000e+00> : vector<8x8xf32>
    %202 = tpu.matmul %198, %201, %cst_154 {dimension_numbers = #tpu.dot_dimension_numbers<[1], [1], [0], [0], [0, 0, 1, 0], [], []>} : vector<8x64xbf16>, vector<8x64xbf16>, vector<8x8xf32> -> vector<8x8xf32>
    %cst_155 = arith.constant dense<0xFF800000> : vector<8xf32>
    %203 = vector.multi_reduction <maximumf>, %202, %cst_155 [1] : vector<8x8xf32> to vector<8xf32>
    %204 = vector.shape_cast %203 : vector<8xf32> to vector<8x1xf32>
    %205 = vector.broadcast %204 : vector<8x1xf32> to vector<8x8xf32>
    %206 = arith.subf %202, %205 : vector<8x8xf32>
    %207 = math.exp %206 : vector<8x8xf32>
    %cst_156 = arith.constant dense<0.000000e+00> : vector<8xf32>
    %208 = vector.multi_reduction <add>, %207, %cst_156 [1] : vector<8x8xf32> to vector<8xf32>
    %209 = vector.shape_cast %208 : vector<8xf32> to vector<8x1xf32>
    %210 = tpu.reciprocal %209 {approx = true} : vector<8x1xf32> -> vector<8x1xf32>
    %211 = vector.broadcast %210 : vector<8x1xf32> to vector<8x8xf32>
    %212 = arith.mulf %207, %211 : vector<8x8xf32>
    %213 = arith.truncf %212 : vector<8x8xf32> to vector<8x8xbf16>
    %c0_157 = arith.constant 0 : index
    %c0_158 = arith.constant 0 : index
    %214 = arith.index_cast %c6_i32 : i32 to index
    %c0_159 = arith.constant 0 : index
    %c0_160 = arith.constant 0 : index
    %215 = vector.load %arg4[%c0_157, %c0_158, %214, %c0_159, %c0_160] : memref<1x1x8x8x64xbf16, #tpu.memory_space<vmem>>, vector<1x1x1x8x64xbf16>
    %216 = vector.shape_cast %215 : vector<1x1x1x8x64xbf16> to vector<8x64xbf16>
    %cst_161 = arith.constant dense<0.000000e+00> : vector<8x64xf32>
    %217 = tpu.matmul %213, %216, %cst_161 {dimension_numbers = #tpu.dot_dimension_numbers<[1], [0], [0], [1], [0, 0, 1, 1], [], []>} : vector<8x8xbf16>, vector<8x64xbf16>, vector<8x64xf32> -> vector<8x64xf32>
    %c0_162 = arith.constant 0 : index
    %c0_163 = arith.constant 0 : index
    %218 = vector.load %arg8[%c0_162, %c0_163] : memref<8x32xf32, #tpu.memory_space<vmem>>, vector<8x32xf32>
    %219 = arith.truncf %217 : vector<8x64xf32> to vector<8x64xbf16>
    %220 = arith.index_cast %c6_i32 : i32 to index
    %c0_164 = arith.constant 0 : index
    %c0_165 = arith.constant 0 : index
    %221 = vector.load %arg5[%220, %c0_164, %c0_165] : memref<8x64x32xbf16, #tpu.memory_space<vmem>>, vector<1x64x32xbf16>
    %222 = vector.shape_cast %221 : vector<1x64x32xbf16> to vector<64x32xbf16>
    %cst_166 = arith.constant dense<0.000000e+00> : vector<8x32xf32>
    %223 = tpu.matmul %219, %222, %cst_166 {dimension_numbers = #tpu.dot_dimension_numbers<[1], [0], [0], [1], [0, 0, 1, 1], [], []>} : vector<8x64xbf16>, vector<64x32xbf16>, vector<8x32xf32> -> vector<8x32xf32>
    %224 = arith.addf %218, %223 : vector<8x32xf32>
    %c0_167 = arith.constant 0 : index
    %c0_168 = arith.constant 0 : index
    %225 = vector.load %arg8[%c0_167, %c0_168] : memref<8x32xf32, #tpu.memory_space<vmem>>, vector<8x32xf32>
    tpu.vector_store %arg8[%c0_167, %c0_168], %224 {strides = array<i32>} : memref<8x32xf32, #tpu.memory_space<vmem>>, vector<8x32xf32>,
    %c7_i32 = arith.constant 7 : i32
    %c0_169 = arith.constant 0 : index
    %c0_170 = arith.constant 0 : index
    %226 = arith.index_cast %c7_i32 : i32 to index
    %c0_171 = arith.constant 0 : index
    %c0_172 = arith.constant 0 : index
    %227 = vector.load %arg2[%c0_169, %c0_170, %226, %c0_171, %c0_172] : memref<1x1x8x8x64xbf16, #tpu.memory_space<vmem>>, vector<1x1x1x8x64xbf16>
    %228 = vector.shape_cast %227 : vector<1x1x1x8x64xbf16> to vector<8x64xbf16>
    %cst_173 = arith.constant 1.250000e-01 : bf16
    %229 = vector.broadcast %cst_173 : bf16 to vector<8x64xbf16>
    %230 = arith.mulf %228, %229 : vector<8x64xbf16>
    %c0_174 = arith.constant 0 : index
    %c0_175 = arith.constant 0 : index
    %231 = arith.index_cast %c7_i32 : i32 to index
    %c0_176 = arith.constant 0 : index
    %c0_177 = arith.constant 0 : index
    %232 = vector.load %arg3[%c0_174, %c0_175, %231, %c0_176, %c0_177] : memref<1x1x8x8x64xbf16, #tpu.memory_space<vmem>>, vector<1x1x1x8x64xbf16>
    %233 = vector.shape_cast %232 : vector<1x1x1x8x64xbf16> to vector<8x64xbf16>
    %cst_178 = arith.constant dense<0.000000e+00> : vector<8x8xf32>
    %234 = tpu.matmul %230, %233, %cst_178 {dimension_numbers = #tpu.dot_dimension_numbers<[1], [1], [0], [0], [0, 0, 1, 0], [], []>} : vector<8x64xbf16>, vector<8x64xbf16>, vector<8x8xf32> -> vector<8x8xf32>
    %cst_179 = arith.constant dense<0xFF800000> : vector<8xf32>
    %235 = vector.multi_reduction <maximumf>, %234, %cst_179 [1] : vector<8x8xf32> to vector<8xf32>
    %236 = vector.shape_cast %235 : vector<8xf32> to vector<8x1xf32>
    %237 = vector.broadcast %236 : vector<8x1xf32> to vector<8x8xf32>
    %238 = arith.subf %234, %237 : vector<8x8xf32>
    %239 = math.exp %238 : vector<8x8xf32>
    %cst_180 = arith.constant dense<0.000000e+00> : vector<8xf32>
    %240 = vector.multi_reduction <add>, %239, %cst_180 [1] : vector<8x8xf32> to vector<8xf32>
    %241 = vector.shape_cast %240 : vector<8xf32> to vector<8x1xf32>
    %242 = tpu.reciprocal %241 {approx = true} : vector<8x1xf32> -> vector<8x1xf32>
    %243 = vector.broadcast %242 : vector<8x1xf32> to vector<8x8xf32>
    %244 = arith.mulf %239, %243 : vector<8x8xf32>
    %245 = arith.truncf %244 : vector<8x8xf32> to vector<8x8xbf16>
    %c0_181 = arith.constant 0 : index
    %c0_182 = arith.constant 0 : index
    %246 = arith.index_cast %c7_i32 : i32 to index
    %c0_183 = arith.constant 0 : index
    %c0_184 = arith.constant 0 : index
    %247 = vector.load %arg4[%c0_181, %c0_182, %246, %c0_183, %c0_184] : memref<1x1x8x8x64xbf16, #tpu.memory_space<vmem>>, vector<1x1x1x8x64xbf16>
    %248 = vector.shape_cast %247 : vector<1x1x1x8x64xbf16> to vector<8x64xbf16>
    %cst_185 = arith.constant dense<0.000000e+00> : vector<8x64xf32>
    %249 = tpu.matmul %245, %248, %cst_185 {dimension_numbers = #tpu.dot_dimension_numbers<[1], [0], [0], [1], [0, 0, 1, 1], [], []>} : vector<8x8xbf16>, vector<8x64xbf16>, vector<8x64xf32> -> vector<8x64xf32>
    %c0_186 = arith.constant 0 : index
    %c0_187 = arith.constant 0 : index
    %250 = vector.load %arg8[%c0_186, %c0_187] : memref<8x32xf32, #tpu.memory_space<vmem>>, vector<8x32xf32>
    %251 = arith.truncf %249 : vector<8x64xf32> to vector<8x64xbf16>
    %252 = arith.index_cast %c7_i32 : i32 to index
    %c0_188 = arith.constant 0 : index
    %c0_189 = arith.constant 0 : index
    %253 = vector.load %arg5[%252, %c0_188, %c0_189] : memref<8x64x32xbf16, #tpu.memory_space<vmem>>, vector<1x64x32xbf16>
    %254 = vector.shape_cast %253 : vector<1x64x32xbf16> to vector<64x32xbf16>
    %cst_190 = arith.constant dense<0.000000e+00> : vector<8x32xf32>
    %255 = tpu.matmul %251, %254, %cst_190 {dimension_numbers = #tpu.dot_dimension_numbers<[1], [0], [0], [1], [0, 0, 1, 1], [], []>} : vector<8x64xbf16>, vector<64x32xbf16>, vector<8x32xf32> -> vector<8x32xf32>
    %256 = arith.addf %250, %255 : vector<8x32xf32>
    %c0_191 = arith.constant 0 : index
    %c0_192 = arith.constant 0 : index
    %257 = vector.load %arg8[%c0_191, %c0_192] : memref<8x32xf32, #tpu.memory_space<vmem>>, vector<8x32xf32>
    tpu.vector_store %arg8[%c0_191, %c0_192], %256 {strides = array<i32>} : memref<8x32xf32, #tpu.memory_space<vmem>>, vector<8x32xf32>,
    %c8_i32 = arith.constant 8 : i32
    %c0_193 = arith.constant 0 : index
    %c0_194 = arith.constant 0 : index
    %258 = vector.load %arg8[%c0_193, %c0_194] : memref<8x32xf32, #tpu.memory_space<vmem>>, vector<8x32xf32>
    %c0_195 = arith.constant 0 : index
    %c0_196 = arith.constant 0 : index
    %259 = vector.load %arg6[%c0_195, %c0_196] : memref<1x32xf32, #tpu.memory_space<vmem>>, vector<1x32xf32>
    %260 = vector.broadcast %259 : vector<1x32xf32> to vector<8x32xf32>
    %261 = arith.addf %258, %260 : vector<8x32xf32>
    %c0_197 = arith.constant 0 : index
    %c0_198 = arith.constant 0 : index
    %c0_199 = arith.constant 0 : index
    %262 = vector.load %arg7[%c0_197, %c0_198, %c0_199] : memref<1x8x32xf32, #tpu.memory_space<vmem>>, vector<1x8x32xf32>
    %263 = vector.shape_cast %262 : vector<1x8x32xf32> to vector<8x32xf32>
    %264 = vector.shape_cast %261 : vector<8x32xf32> to vector<1x8x32xf32>
    tpu.vector_store %arg7[%c0_197, %c0_198, %c0_199], %264 {strides = array<i32>} : memref<1x8x32xf32, #tpu.memory_space<vmem>>, vector<1x8x32xf32>,
    return
  }
  func.func @transform_0(%arg0: i32, %arg1: i32) -> (i32, i32, i32, i32, i32) {
    %c0_i32 = arith.constant 0 : i32
    %c0_i32_0 = arith.constant 0 : i32
    %c0_i32_1 = arith.constant 0 : i32
    %c0_i32_2 = arith.constant 0 : i32
    return %arg0, %c0_i32, %c0_i32_0, %arg1, %c0_i32_1 : i32, i32, i32, i32, i32
  }
  func.func @transform_1(%arg0: i32, %arg1: i32) -> (i32, i32, i32, i32, i32) {
    %c1_i32 = arith.constant 1 : i32
    %c0_i32 = arith.constant 0 : i32
    %c0_i32_0 = arith.constant 0 : i32
    %c0_i32_1 = arith.constant 0 : i32
    %c0_i32_2 = arith.constant 0 : i32
    return %arg0, %c1_i32, %c0_i32, %c0_i32_0, %c0_i32_1 : i32, i32, i32, i32, i32
  }
  func.func @transform_2(%arg0: i32, %arg1: i32) -> (i32, i32, i32, i32, i32) {
    %c2_i32 = arith.constant 2 : i32
    %c0_i32 = arith.constant 0 : i32
    %c0_i32_0 = arith.constant 0 : i32
    %c0_i32_1 = arith.constant 0 : i32
    %c0_i32_2 = arith.constant 0 : i32
    return %arg0, %c2_i32, %c0_i32, %c0_i32_0, %c0_i32_1 : i32, i32, i32, i32, i32
  }
  func.func @transform_3(%arg0: i32, %arg1: i32) -> (i32, i32, i32) {
    %c0_i32 = arith.constant 0 : i32
    %c0_i32_0 = arith.constant 0 : i32
    %c0_i32_1 = arith.constant 0 : i32
    %c0_i32_2 = arith.constant 0 : i32
    return %c0_i32, %c0_i32_0, %c0_i32_1 : i32, i32, i32
  }
  func.func @transform_4(%arg0: i32, %arg1: i32) -> (i32, i32) {
    %c0_i32 = arith.constant 0 : i32
    %c0_i32_0 = arith.constant 0 : i32
    %c0_i32_1 = arith.constant 0 : i32
    return %c0_i32, %c0_i32_0 : i32, i32
  }
  func.func @transform_5(%arg0: i32, %arg1: i32) -> (i32, i32, i32) {
    %c0_i32 = arith.constant 0 : i32
    %c0_i32_0 = arith.constant 0 : i32
    return %arg0, %arg1, %c0_i32 : i32, i32, i32
  }
}

</mosaic_0001>

<llo_original>
// kernel: attention_forward.2
$region0: #{attention_forward.2}
  #allocation0 [shape = 'u32[]', space=smem, size = 0x4, offset = 0x4, fixed_abs, tag = 'smem constant byte address 0x4 - core index']
  #allocation1 [shape = 'u32[144,128]{1,0:T(1,128)}', space=vmem, size = 0x12000, scoped, tag = 'internal scratch']
  %s0 = inlined_call_operand.vmem [shape: bf16[2,8,32], index: 0, kind: input, shape index: {}]
  %s1 = inlined_call_operand.vmem [shape: bf16[32,1536], index: 1, kind: input, shape index: {}]
  %s2 = inlined_call_operand.vmem [shape: f32[1,1536], index: 2, kind: input, shape index: {}]
  %s3 = inlined_call_operand.vmem [shape: bf16[2,3,8,8,64], index: 3, kind: output, shape index: {}]
  %s4 = sld [smem:[#allocation0]]
  $region45: #{attention_forward.2} parent=0
    _
  %s6 = ssub.s32 1, %s4
  %s7 = scalar_select 0, %s6, %s4
  loop: start=0, step=1, limit=4
  $region2: #{attention_forward.2} parent=0 // loop_pre_header
    _
  $region3: #{attention_forward.2} parent=0 // loop_header
    %s9 = sphi 0, %s13
    %p10 = scmp.ge.s32.totalorder %s9, 4
    %s16 = sphi 0, %s28
    %s17 = sphi 0, %s24
    %s18 = sphi 0, %s16
    %s19 = sphi 0, %s17
    %s20 = sphi 0, %s18
    %s21 = sphi 0, %s19
    %s33 = sphi 0, %s35
    %s36 = sphi 0, %s33
    %s37 = sphi 0, %s36
    %s53 = sphi 0, %s37
    %s57 = sphi 0, %s57
    %s59 = sphi 0, %s57
    %s60 = sphi 0, %s59
    %s74 = sphi 0, %s60
    %s78 = sphi 0, %s78
    %s80 = sphi 0, %s78
    %s81 = sphi 0, %s80
    %s95 = sphi 0, %s81
    %s103 = sphi 0, %s105
    %s106 = sphi 0, %s103
    %s107 = sphi 0, %s106
    %s123 = sphi 0, %s107
  $region4: #{attention_forward.2} parent=0 // loop_header_branch
    %12 = sbr.rel (%p10) target = $region8
  $region5: #{attention_forward.2} parent=0 // loop_body
    %s14 = ssub.s32 %s9, 1
    %s15 = ssub.s32 %s9, 2
    %s22 = sadd.s32 1, %s17
    %p23 = scmp.ge.s32.totalorder %s22, 1
    %s24 = scalar_select %p23, 0, %s22
    %s25 = sadd.s32 1, %s16
    %s26 = scalar_select %p23, %s25, %s16
    %p27 = scmp.ge.s32.totalorder %s26, 2
    %s28 = scalar_select %p27, 0, %s26
    %s29 = ssub.s32 %s16, %s28
    %s30 = ssub.s32 %s17, %s24
    %s31 = sor.u32 %s29, %s30
    %p32 = scmp.eq.s32.totalorder %s31, 0
    %s34 = sadd.s32 %s33, 1
    %s35 = scalar_select %p32, %s33, %s34
    %p38 = pneg %p32
    %p39 = scmp.eq.s32.totalorder %s9, 1
    %p40 = por %p38, %p39
    %p41 = scmp.ne.s32.totalorder %s33, %s36
    %p42 = scmp.eq.s32.totalorder %s9, 0
    %p43 = por %p41, %p42
    %p44 = scmp.ne.s32.totalorder %s33, %s36
    %p45 = scmp.eq.s32.totalorder %s14, 1
    %p46 = por %p44, %p45
    %p47 = scmp.ne.s32.totalorder %s36, %s37
    %p48 = scmp.eq.s32.totalorder %s14, 0
    %p49 = por %p47, %p48
    %p50 = scmp.ne.s32.totalorder %s36, %s37
    %p51 = scmp.eq.s32.totalorder %s15, 1
    %p52 = por %p50, %p51
    %p54 = scmp.ne.s32.totalorder %s37, %s53
    %p55 = scmp.eq.s32.totalorder %s15, 0
    %p56 = por %p54, %p55
    %s58 = sadd.s32 %s57, 1
    %p61 = scmp.eq.s32.totalorder %s9, 1
    %p62 = scmp.ne.s32.totalorder %s57, %s59
    %p63 = scmp.eq.s32.totalorder %s9, 0
    %p64 = por %p62, %p63
    %p65 = scmp.ne.s32.totalorder %s57, %s59
    %p66 = scmp.eq.s32.totalorder %s14, 1
    %p67 = por %p65, %p66
    %p68 = scmp.ne.s32.totalorder %s59, %s60
    %p69 = scmp.eq.s32.totalorder %s14, 0
    %p70 = por %p68, %p69
    %p71 = scmp.ne.s32.totalorder %s59, %s60
    %p72 = scmp.eq.s32.totalorder %s15, 1
    %p73 = por %p71, %p72
    %p75 = scmp.ne.s32.totalorder %s60, %s74
    %p76 = scmp.eq.s32.totalorder %s15, 0
    %p77 = por %p75, %p76
    %s79 = sadd.s32 %s78, 1
    %p82 = scmp.eq.s32.totalorder %s9, 1
    %p83 = scmp.ne.s32.totalorder %s78, %s80
    %p84 = scmp.eq.s32.totalorder %s9, 0
    %p85 = por %p83, %p84
    %p86 = scmp.ne.s32.totalorder %s78, %s80
    %p87 = scmp.eq.s32.totalorder %s14, 1
    %p88 = por %p86, %p87
    %p89 = scmp.ne.s32.totalorder %s80, %s81
    %p90 = scmp.eq.s32.totalorder %s14, 0
    %p91 = por %p89, %p90
    %p92 = scmp.ne.s32.totalorder %s80, %s81
    %p93 = scmp.eq.s32.totalorder %s15, 1
    %p94 = por %p92, %p93
    %p96 = scmp.ne.s32.totalorder %s81, %s95
    %p97 = scmp.eq.s32.totalorder %s15, 0
    %p98 = por %p96, %p97
    %s99 = ssub.s32 %s16, %s28
    %s100 = ssub.s32 %s17, %s24
    %s101 = sor.u32 %s99, %s100
    %p102 = scmp.eq.s32.totalorder %s101, 0
    %s104 = sadd.s32 %s103, 1
    %s105 = scalar_select %p102, %s103, %s104
    %p108 = pneg %p102
    %p109 = scmp.eq.s32.totalorder %s9, 1
    %p110 = por %p108, %p109
    %p111 = scmp.ne.s32.totalorder %s103, %s106
    %p112 = scmp.eq.s32.totalorder %s9, 0
    %p113 = por %p111, %p112
    %p114 = scmp.ne.s32.totalorder %s103, %s106
    %p115 = scmp.eq.s32.totalorder %s14, 1
    %p116 = por %p114, %p115
    %p117 = scmp.ne.s32.totalorder %s106, %s107
    %p118 = scmp.eq.s32.totalorder %s14, 0
    %p119 = por %p117, %p118
    %p120 = scmp.ne.s32.totalorder %s106, %s107
    %p121 = scmp.eq.s32.totalorder %s15, 1
    %p122 = por %p120, %p121
    %p124 = scmp.ne.s32.totalorder %s107, %s123
    %p125 = scmp.eq.s32.totalorder %s15, 0
    %p126 = por %p124, %p125
    %p127 = scmp.le.s32.totalorder 1, %s9
    %p128 = scmp.lt.s32.totalorder %s9, 3
    %p129 = pnand %p127, %p128
    %p130 = pneg %p129
    // Predicated region
    $region9: #{attention_forward.2} parent=5 // pred_check
      _
    $region10: #{attention_forward.2} parent=5 // pred_check_branch
      %132 = sbr.rel (%p129) target = $region12
    $region11: #{attention_forward.2} parent=5 // pred_region
      %s133 = ssub.s32 %s9, 1
      // Predicated region
      $region13: #{attention_forward.2} parent=11 // pred_check
        %p134 = pneg %p70
      $region14: #{attention_forward.2} parent=11 // pred_check_branch
        %136 = sbr.rel (%p134) target = $region16
      $region15: #{attention_forward.2} parent=11 // pred_region
        _
      $region16: #{attention_forward.2} parent=11 // pred_fallthru
        _
      // Predicated region
      $region17: #{attention_forward.2} parent=11 // pred_check
        %p137 = pneg %p91
      $region18: #{attention_forward.2} parent=11 // pred_check_branch
        %139 = sbr.rel (%p137) target = $region20
      $region19: #{attention_forward.2} parent=11 // pred_region
        _
      $region20: #{attention_forward.2} parent=11 // pred_fallthru
        _
    $region12: #{attention_forward.2} parent=5 // pred_fallthru
      _
    %p140 = scmp.lt.s32.totalorder %s9, 2
    // Predicated region
    $region21: #{attention_forward.2} parent=5 // pred_check
      %p141 = pneg %p140
    $region22: #{attention_forward.2} parent=5 // pred_check_branch
      %143 = sbr.rel (%p141) target = $region24
    $region23: #{attention_forward.2} parent=5 // pred_region
      // Predicated region
      $region25: #{attention_forward.2} parent=23 // pred_check
        %p144 = pneg %p43
      $region26: #{attention_forward.2} parent=23 // pred_check_branch
        %146 = sbr.rel (%p144) target = $region28
      $region27: #{attention_forward.2} parent=23 // pred_region
        %p147 = scmp.lt.s32.totalorder %s16, 1
        %s148 = scalar_select %p147, %s16, 1
        %p149 = scmp.lt.s32.totalorder %s17, 0
        %s150 = scalar_select %p149, %s17, 0
        %s151 = sadd.s32 %s150, %s148
        %s152 = smul.addr %s151, 4
        %s153 = scalar_lea.vmem %s0, %s152
      $region28: #{attention_forward.2} parent=23 // pred_fallthru
        _
    $region24: #{attention_forward.2} parent=5 // pred_fallthru
      _
    %p154 = scmp.le.s32.totalorder 1, %s9
    %p155 = scmp.lt.s32.totalorder %s9, 3
    %p156 = pnand %p154, %p155
    %p157 = pneg %p156
    // Predicated region
    $region29: #{attention_forward.2} parent=5 // pred_check
      _
    $region30: #{attention_forward.2} parent=5 // pred_check_branch
      %159 = sbr.rel (%p156) target = $region32
    $region31: #{attention_forward.2} parent=5 // pred_region
      %s160 = ssub.s32 %s9, 1
      %p161 = scmp.lt.s32.totalorder %s18, 1
      %s162 = scalar_select %p161, %s18, 1
      %p163 = scmp.lt.s32.totalorder %s19, 0
      %s164 = scalar_select %p163, %s19, 0
      %s165 = sadd.s32 %s164, %s162
      %s166 = smul.addr %s165, 4
      %s167 = scalar_lea.vmem %s0, %s166
      %p168 = pneg %p49
      %p169 = pneg %p46
      %p170 = pneg %p70
      %p171 = pneg %p67
      %p172 = pneg %p91
      %p173 = pneg %p88
      %p174 = pneg %p119
      %p175 = pneg %p116
      %p176 = scmp.lt.s32.totalorder %s18, 1
      %s177 = scalar_select %p176, %s18, 1
      %p178 = scmp.lt.s32.totalorder %s19, 0
      %s179 = scalar_select %p178, %s19, 0
      %s180 = smul.addr %s177, 24
      %s181 = sadd.s32 %s179, %s180
      %s182 = smul.addr %s181, 4
      %s183 = scalar_lea.vmem %s3, %s182
      %p184 = scmp.lt.s32.totalorder %s18, 1
      %s185 = scalar_select %p184, %s18, 1
      %p186 = scmp.lt.s32.totalorder %s19, 0
      %s187 = scalar_select %p186, %s19, 0
      %s188 = sadd.s32 %s187, %s185
      %s189 = smul.addr %s188, 4
      %s190 = scalar_lea.vmem %s0, %s189
      %p191 = scmp.lt.s32.totalorder %s18, 1
      %s192 = scalar_select %p191, %s18, 1
      %p193 = scmp.lt.s32.totalorder %s19, 0
      %s194 = scalar_select %p193, %s19, 0
      %s195 = smul.addr %s192, 24
      %s196 = sadd.s32 %s194, %s195
      %s197 = smul.addr %s196, 4
      %s198 = scalar_lea.vmem %s3, %s197
      %v200 = vld [vmem:[%s190] sm:$0xf]
      %v201 = vld [vmem:[%s1] sm:$0xff]
      %v202 = vld [vmem:[%s1 + $0x8] sm:$0xff]
      %v203 = vld [vmem:[%s1 + $0x10] sm:$0xff]
      %v204 = vld [vmem:[%s1 + $0x18] sm:$0xff]
      %v205 = vld [vmem:[%s1 + $0x20] sm:$0xff]
      %v206 = vld [vmem:[%s1 + $0x28] sm:$0xff]
      %v207 = vld [vmem:[%s1 + $0x30] sm:$0xff]
      %v208 = vld [vmem:[%s1 + $0x38] sm:$0xff]
      %v209 = vld [vmem:[%s1 + $0x40] sm:$0xff]
      %v210 = vld [vmem:[%s1 + $0x48] sm:$0xff]
      %v211 = vld [vmem:[%s1 + $0x50] sm:$0xff]
      %v212 = vld [vmem:[%s1 + $0x58] sm:$0xff]
      %v213 = vld [vmem:[%s1 + $0x60] sm:$0xff]
      %v214 = vld [vmem:[%s1 + $0x68] sm:$0xff]
      %v215 = vld [vmem:[%s1 + $0x70] sm:$0xff]
      %v216 = vld [vmem:[%s1 + $0x78] sm:$0xff]
      %v217 = vld [vmem:[%s1 + $0x80] sm:$0xff]
      %v218 = vld [vmem:[%s1 + $0x88] sm:$0xff]
      %v219 = vld [vmem:[%s1 + $0x90] sm:$0xff]
      %v220 = vld [vmem:[%s1 + $0x98] sm:$0xff]
      %v221 = vld [vmem:[%s1 + $0xa0] sm:$0xff]
      %v222 = vld [vmem:[%s1 + $0xa8] sm:$0xff]
      %v223 = vld [vmem:[%s1 + $0xb0] sm:$0xff]
      %v224 = vld [vmem:[%s1 + $0xb8] sm:$0xff]
      %v225 = vld [vmem:[%s2] sm:$0xff]
      %v226 = vld [vmem:[%s2 + $0x8] sm:$0xf]
      %v229 = vlaneseq
      %v230 = vshrl.u32 %v229, 7
      %v231 = vsub.s32 0, %v230
      %v232 = vrot.slane %v225, %v231
      %v233 = vlaneseq
      %v234 = vshrl.u32 %v233, 7
      %v235 = vsub.s32 1, %v234
      %v236 = vrot.slane %v225, %v235
      %v237 = vlaneseq
      %v238 = vshrl.u32 %v237, 7
      %v239 = vsub.s32 2, %v238
      %v240 = vrot.slane %v225, %v239
      %v241 = vlaneseq
      %v242 = vshrl.u32 %v241, 7
      %v243 = vsub.s32 3, %v242
      %v244 = vrot.slane %v225, %v243
      %v245 = vlaneseq
      %v246 = vshrl.u32 %v245, 7
      %v247 = vsub.s32 4, %v246
      %v248 = vrot.slane %v225, %v247
      %v249 = vlaneseq
      %v250 = vshrl.u32 %v249, 7
      %v251 = vsub.s32 5, %v250
      %v252 = vrot.slane %v225, %v251
      %v253 = vlaneseq
      %v254 = vshrl.u32 %v253, 7
      %v255 = vsub.s32 6, %v254
      %v256 = vrot.slane %v225, %v255
      %v257 = vlaneseq
      %v258 = vshrl.u32 %v257, 7
      %v259 = vsub.s32 7, %v258
      %v260 = vrot.slane %v225, %v259
      %v261 = vlaneseq
      %v262 = vshrl.u32 %v261, 7
      %v263 = vsub.s32 0, %v262
      %v264 = vrot.slane %v226, %v263
      %v265 = vlaneseq
      %v266 = vshrl.u32 %v265, 7
      %v267 = vsub.s32 1, %v266
      %v268 = vrot.slane %v226, %v267
      %v269 = vlaneseq
      %v270 = vshrl.u32 %v269, 7
      %v271 = vsub.s32 2, %v270
      %v272 = vrot.slane %v226, %v271
      %v273 = vlaneseq
      %v274 = vshrl.u32 %v273, 7
      %v275 = vsub.s32 3, %v274
      %v276 = vrot.slane %v226, %v275
      %v313 = vunpack.c.l.b16 %v201
      %v314 = vunpack.c.h.b16 %v201
      %v315 = vunpack.c.l.b16 %v202
      %v316 = vunpack.c.h.b16 %v202
      %v317 = vunpack.c.l.b16 %v203
      %v318 = vunpack.c.h.b16 %v203
      %v319 = vunpack.c.l.b16 %v204
      %v320 = vunpack.c.h.b16 %v204
      %v321 = vunpack.c.l.b16 %v205
      %v322 = vunpack.c.h.b16 %v205
      %v323 = vunpack.c.l.b16 %v206
      %v324 = vunpack.c.h.b16 %v206
      %v325 = vunpack.c.l.b16 %v207
      %v326 = vunpack.c.h.b16 %v207
      %v327 = vunpack.c.l.b16 %v208
      %v328 = vunpack.c.h.b16 %v208
      %v329 = vunpack.c.l.b16 %v209
      %v330 = vunpack.c.h.b16 %v209
      %v331 = vunpack.c.l.b16 %v210
      %v332 = vunpack.c.h.b16 %v210
      %v333 = vunpack.c.l.b16 %v211
      %v334 = vunpack.c.h.b16 %v211
      %v335 = vunpack.c.l.b16 %v212
      %v336 = vunpack.c.h.b16 %v212
      %v337 = vunpack.c.l.b16 %v213
      %v338 = vunpack.c.h.b16 %v213
      %v339 = vunpack.c.l.b16 %v214
      %v340 = vunpack.c.h.b16 %v214
      %v341 = vunpack.c.l.b16 %v215
      %v342 = vunpack.c.h.b16 %v215
      %v343 = vunpack.c.l.b16 %v216
      %v344 = vunpack.c.h.b16 %v216
      %v345 = vunpack.c.l.b16 %v217
      %v346 = vunpack.c.h.b16 %v217
      %v347 = vunpack.c.l.b16 %v218
      %v348 = vunpack.c.h.b16 %v218
      %v349 = vunpack.c.l.b16 %v219
      %v350 = vunpack.c.h.b16 %v219
      %v351 = vunpack.c.l.b16 %v220
      %v352 = vunpack.c.h.b16 %v220
      %v353 = vunpack.c.l.b16 %v221
      %v354 = vunpack.c.h.b16 %v221
      %v355 = vunpack.c.l.b16 %v222
      %v356 = vunpack.c.h.b16 %v222
      %v357 = vunpack.c.l.b16 %v223
      %v358 = vunpack.c.h.b16 %v223
      %v359 = vunpack.c.l.b16 %v224
      %v360 = vunpack.c.h.b16 %v224
      %v361 = vpack.c.b16 %v325, %v313
      %v362 = vpack.c.b16 %v326, %v314
      %v363 = vpack.c.b16 %v327, %v315
      %v364 = vpack.c.b16 %v328, %v316
      %v365 = vpack.c.b16 %v329, %v317
      %v366 = vpack.c.b16 %v330, %v318
      %v367 = vpack.c.b16 %v331, %v319
      %v368 = vpack.c.b16 %v332, %v320
      %v369 = vpack.c.b16 %v333, %v321
      %v370 = vpack.c.b16 %v334, %v322
      %v371 = vpack.c.b16 %v335, %v323
      %v372 = vpack.c.b16 %v336, %v324
      %v373 = vpack.c.b16 %v349, %v337
      %v374 = vpack.c.b16 %v350, %v338
      %v375 = vpack.c.b16 %v351, %v339
      %v376 = vpack.c.b16 %v352, %v340
      %v377 = vpack.c.b16 %v353, %v341
      %v378 = vpack.c.b16 %v354, %v342
      %v379 = vpack.c.b16 %v355, %v343
      %v380 = vpack.c.b16 %v356, %v344
      %v381 = vpack.c.b16 %v357, %v345
      %v382 = vpack.c.b16 %v358, %v346
      %v383 = vpack.c.b16 %v359, %v347
      %v384 = vpack.c.b16 %v360, %v348
      %vm409 = vcmask 261120
      %v411 = vsel %vm409, %v200, 0
      %413 = vmatprep.subr.bf16.mxu0 %v362
      %414 = vmatpush1.bf16.msra.mxu0 %v361
      %415 = vmatprep.subr.bf16.mxu0 %v374
      %416 = vmatpush1.bf16.msra.mxu0 %v373
      %417 = vmatprep.subr.bf16.mxu0 0
      %418 = vmatpush1.bf16.msra.mxu0 0
      %419 = vmatprep.subr.bf16.mxu0 0
      %420 = vmatpush1.bf16.msra.mxu0 0
      %421 = vmatprep.subr.bf16.mxu0 0
      %422 = vmatpush1.bf16.msra.mxu0 0
      %423 = vmatprep.subr.bf16.mxu0 0
      %424 = vmatpush1.bf16.msra.mxu0 0
      %425 = vmatprep.subr.bf16.mxu0 0
      %426 = vmatpush1.bf16.msra.mxu0 0
      %427 = vmatprep.subr.bf16.mxu0 0
      %428 = vmatpush1.bf16.msra.mxu0 0
      %429 = vmatprep.subr.bf16.mxu0 0
      %430 = vmatpush1.bf16.msra.mxu0 0
      %431 = vmatprep.subr.bf16.mxu0 0
      %432 = vmatpush1.bf16.msra.mxu0 0
      %433 = vmatprep.subr.bf16.mxu0 0
      %434 = vmatpush1.bf16.msra.mxu0 0
      %435 = vmatprep.subr.bf16.mxu0 0
      %436 = vmatpush1.bf16.msra.mxu0 0
      %437 = vmatprep.subr.bf16.mxu0 0
      %438 = vmatpush1.bf16.msra.mxu0 0
      %439 = vmatprep.subr.bf16.mxu0 0
      %440 = vmatpush1.bf16.msra.mxu0 0
      %441 = vmatprep.subr.bf16.mxu0 0
      %442 = vmatpush1.bf16.msra.mxu0 0
      %443 = vmatprep.subr.bf16.mxu0 0
      %444 = vmatpush1.bf16.msra.mxu0 0
      %445 = vmatprep.mubr.bf16.mxu0 0
      %446 = vmatmul.mubr.bf16.gmra.mrb[0].mxu0 %v411
      %v447 = vpop.f32.mrb[0].mxu0
      %v448 = vadd.f32 %v232, %v447
      %v449 = vpop.f32.mrb[0].mxu0
      %v450 = vadd.f32 %v236, %v449
      %v451 = vpop.f32.mrb[0].mxu0
      %v452 = vpop.f32.mrb[0].mxu0
      %453 = vdwg.mxu0
      %454 = vmatprep.subr.bf16.mxu0 %v364
      %455 = vmatpush1.bf16.msra.mxu0 %v363
      %456 = vmatprep.subr.bf16.mxu0 %v376
      %457 = vmatpush1.bf16.msra.mxu0 %v375
      %458 = vmatprep.subr.bf16.mxu0 0
      %459 = vmatpush1.bf16.msra.mxu0 0
      %460 = vmatprep.subr.bf16.mxu0 0
      %461 = vmatpush1.bf16.msra.mxu0 0
      %462 = vmatprep.subr.bf16.mxu0 0
      %463 = vmatpush1.bf16.msra.mxu0 0
      %464 = vmatprep.subr.bf16.mxu0 0
      %465 = vmatpush1.bf16.msra.mxu0 0
      %466 = vmatprep.subr.bf16.mxu0 0
      %467 = vmatpush1.bf16.msra.mxu0 0
      %468 = vmatprep.subr.bf16.mxu0 0
      %469 = vmatpush1.bf16.msra.mxu0 0
      %470 = vmatprep.subr.bf16.mxu0 0
      %471 = vmatpush1.bf16.msra.mxu0 0
      %472 = vmatprep.subr.bf16.mxu0 0
      %473 = vmatpush1.bf16.msra.mxu0 0
      %474 = vmatprep.subr.bf16.mxu0 0
      %475 = vmatpush1.bf16.msra.mxu0 0
      %476 = vmatprep.subr.bf16.mxu0 0
      %477 = vmatpush1.bf16.msra.mxu0 0
      %478 = vmatprep.subr.bf16.mxu0 0
      %479 = vmatpush1.bf16.msra.mxu0 0
      %480 = vmatprep.subr.bf16.mxu0 0
      %481 = vmatpush1.bf16.msra.mxu0 0
      %482 = vmatprep.subr.bf16.mxu0 0
      %483 = vmatpush1.bf16.msra.mxu0 0
      %484 = vmatprep.subr.bf16.mxu0 0
      %485 = vmatpush1.bf16.msra.mxu0 0
      %486 = vmatprep.mubr.bf16.mxu0 0
      %487 = vmatmul.mubr.bf16.gmra.mrb[0].mxu0 %v411
      %v488 = vpop.f32.mrb[0].mxu0
      %v489 = vadd.f32 %v240, %v488
      %v490 = vpop.f32.mrb[0].mxu0
      %v491 = vadd.f32 %v244, %v490
      %v492 = vpop.f32.mrb[0].mxu0
      %v493 = vpop.f32.mrb[0].mxu0
      %494 = vdwg.mxu0
      %495 = vmatprep.subr.bf16.mxu0 %v366
      %496 = vmatpush1.bf16.msra.mxu0 %v365
      %497 = vmatprep.subr.bf16.mxu0 %v378
      %498 = vmatpush1.bf16.msra.mxu0 %v377
      %499 = vmatprep.subr.bf16.mxu0 0
      %500 = vmatpush1.bf16.msra.mxu0 0
      %501 = vmatprep.subr.bf16.mxu0 0
      %502 = vmatpush1.bf16.msra.mxu0 0
      %503 = vmatprep.subr.bf16.mxu0 0
      %504 = vmatpush1.bf16.msra.mxu0 0
      %505 = vmatprep.subr.bf16.mxu0 0
      %506 = vmatpush1.bf16.msra.mxu0 0
      %507 = vmatprep.subr.bf16.mxu0 0
      %508 = vmatpush1.bf16.msra.mxu0 0
      %509 = vmatprep.subr.bf16.mxu0 0
      %510 = vmatpush1.bf16.msra.mxu0 0
      %511 = vmatprep.subr.bf16.mxu0 0
      %512 = vmatpush1.bf16.msra.mxu0 0
      %513 = vmatprep.subr.bf16.mxu0 0
      %514 = vmatpush1.bf16.msra.mxu0 0
      %515 = vmatprep.subr.bf16.mxu0 0
      %516 = vmatpush1.bf16.msra.mxu0 0
      %517 = vmatprep.subr.bf16.mxu0 0
      %518 = vmatpush1.bf16.msra.mxu0 0
      %519 = vmatprep.subr.bf16.mxu0 0
      %520 = vmatpush1.bf16.msra.mxu0 0
      %521 = vmatprep.subr.bf16.mxu0 0
      %522 = vmatpush1.bf16.msra.mxu0 0
      %523 = vmatprep.subr.bf16.mxu0 0
      %524 = vmatpush1.bf16.msra.mxu0 0
      %525 = vmatprep.subr.bf16.mxu0 0
      %526 = vmatpush1.bf16.msra.mxu0 0
      %527 = vmatprep.mubr.bf16.mxu0 0
      %528 = vmatmul.mubr.bf16.gmra.mrb[0].mxu0 %v411
      %v529 = vpop.f32.mrb[0].mxu0
      %v530 = vadd.f32 %v248, %v529
      %v531 = vpop.f32.mrb[0].mxu0
      %v532 = vadd.f32 %v252, %v531
      %v533 = vpop.f32.mrb[0].mxu0
      %v534 = vpop.f32.mrb[0].mxu0
      %535 = vdwg.mxu0
      %536 = vmatprep.subr.bf16.mxu0 %v368
      %537 = vmatpush1.bf16.msra.mxu0 %v367
      %538 = vmatprep.subr.bf16.mxu0 %v380
      %539 = vmatpush1.bf16.msra.mxu0 %v379
      %540 = vmatprep.subr.bf16.mxu0 0
      %541 = vmatpush1.bf16.msra.mxu0 0
      %542 = vmatprep.subr.bf16.mxu0 0
      %543 = vmatpush1.bf16.msra.mxu0 0
      %544 = vmatprep.subr.bf16.mxu0 0
      %545 = vmatpush1.bf16.msra.mxu0 0
      %546 = vmatprep.subr.bf16.mxu0 0
      %547 = vmatpush1.bf16.msra.mxu0 0
      %548 = vmatprep.subr.bf16.mxu0 0
      %549 = vmatpush1.bf16.msra.mxu0 0
      %550 = vmatprep.subr.bf16.mxu0 0
      %551 = vmatpush1.bf16.msra.mxu0 0
      %552 = vmatprep.subr.bf16.mxu0 0
      %553 = vmatpush1.bf16.msra.mxu0 0
      %554 = vmatprep.subr.bf16.mxu0 0
      %555 = vmatpush1.bf16.msra.mxu0 0
      %556 = vmatprep.subr.bf16.mxu0 0
      %557 = vmatpush1.bf16.msra.mxu0 0
      %558 = vmatprep.subr.bf16.mxu0 0
      %559 = vmatpush1.bf16.msra.mxu0 0
      %560 = vmatprep.subr.bf16.mxu0 0
      %561 = vmatpush1.bf16.msra.mxu0 0
      %562 = vmatprep.subr.bf16.mxu0 0
      %563 = vmatpush1.bf16.msra.mxu0 0
      %564 = vmatprep.subr.bf16.mxu0 0
      %565 = vmatpush1.bf16.msra.mxu0 0
      %566 = vmatprep.subr.bf16.mxu0 0
      %567 = vmatpush1.bf16.msra.mxu0 0
      %568 = vmatprep.mubr.bf16.mxu0 0
      %569 = vmatmul.mubr.bf16.gmra.mrb[0].mxu0 %v411
      %v570 = vpop.f32.mrb[0].mxu0
      %v571 = vadd.f32 %v256, %v570
      %v572 = vpop.f32.mrb[0].mxu0
      %v573 = vadd.f32 %v260, %v572
      %v574 = vpop.f32.mrb[0].mxu0
      %v575 = vpop.f32.mrb[0].mxu0
      %576 = vdwg.mxu0
      %577 = vmatprep.subr.bf16.mxu0 %v370
      %578 = vmatpush1.bf16.msra.mxu0 %v369
      %579 = vmatprep.subr.bf16.mxu0 %v382
      %580 = vmatpush1.bf16.msra.mxu0 %v381
      %581 = vmatprep.subr.bf16.mxu0 0
      %582 = vmatpush1.bf16.msra.mxu0 0
      %583 = vmatprep.subr.bf16.mxu0 0
      %584 = vmatpush1.bf16.msra.mxu0 0
      %585 = vmatprep.subr.bf16.mxu0 0
      %586 = vmatpush1.bf16.msra.mxu0 0
      %587 = vmatprep.subr.bf16.mxu0 0
      %588 = vmatpush1.bf16.msra.mxu0 0
      %589 = vmatprep.subr.bf16.mxu0 0
      %590 = vmatpush1.bf16.msra.mxu0 0
      %591 = vmatprep.subr.bf16.mxu0 0
      %592 = vmatpush1.bf16.msra.mxu0 0
      %593 = vmatprep.subr.bf16.mxu0 0
      %594 = vmatpush1.bf16.msra.mxu0 0
      %595 = vmatprep.subr.bf16.mxu0 0
      %596 = vmatpush1.bf16.msra.mxu0 0
      %597 = vmatprep.subr.bf16.mxu0 0
      %598 = vmatpush1.bf16.msra.mxu0 0
      %599 = vmatprep.subr.bf16.mxu0 0
      %600 = vmatpush1.bf16.msra.mxu0 0
      %601 = vmatprep.subr.bf16.mxu0 0
      %602 = vmatpush1.bf16.msra.mxu0 0
      %603 = vmatprep.subr.bf16.mxu0 0
      %604 = vmatpush1.bf16.msra.mxu0 0
      %605 = vmatprep.subr.bf16.mxu0 0
      %606 = vmatpush1.bf16.msra.mxu0 0
      %607 = vmatprep.subr.bf16.mxu0 0
      %608 = vmatpush1.bf16.msra.mxu0 0
      %609 = vmatprep.mubr.bf16.mxu0 0
      %610 = vmatmul.mubr.bf16.gmra.mrb[0].mxu0 %v411
      %v611 = vpop.f32.mrb[0].mxu0
      %v612 = vadd.f32 %v264, %v611
      %v613 = vpop.f32.mrb[0].mxu0
      %v614 = vadd.f32 %v268, %v613
      %v615 = vpop.f32.mrb[0].mxu0
      %v616 = vpop.f32.mrb[0].mxu0
      %617 = vdwg.mxu0
      %618 = vmatprep.subr.bf16.mxu0 %v372
      %619 = vmatpush1.bf16.msra.mxu0 %v371
      %620 = vmatprep.subr.bf16.mxu0 %v384
      %621 = vmatpush1.bf16.msra.mxu0 %v383
      %622 = vmatprep.subr.bf16.mxu0 0
      %623 = vmatpush1.bf16.msra.mxu0 0
      %624 = vmatprep.subr.bf16.mxu0 0
      %625 = vmatpush1.bf16.msra.mxu0 0
      %626 = vmatprep.subr.bf16.mxu0 0
      %627 = vmatpush1.bf16.msra.mxu0 0
      %628 = vmatprep.subr.bf16.mxu0 0
      %629 = vmatpush1.bf16.msra.mxu0 0
      %630 = vmatprep.subr.bf16.mxu0 0
      %631 = vmatpush1.bf16.msra.mxu0 0
      %632 = vmatprep.subr.bf16.mxu0 0
      %633 = vmatpush1.bf16.msra.mxu0 0
      %634 = vmatprep.subr.bf16.mxu0 0
      %635 = vmatpush1.bf16.msra.mxu0 0
      %636 = vmatprep.subr.bf16.mxu0 0
      %637 = vmatpush1.bf16.msra.mxu0 0
      %638 = vmatprep.subr.bf16.mxu0 0
      %639 = vmatpush1.bf16.msra.mxu0 0
      %640 = vmatprep.subr.bf16.mxu0 0
      %641 = vmatpush1.bf16.msra.mxu0 0
      %642 = vmatprep.subr.bf16.mxu0 0
      %643 = vmatpush1.bf16.msra.mxu0 0
      %644 = vmatprep.subr.bf16.mxu0 0
      %645 = vmatpush1.bf16.msra.mxu0 0
      %646 = vmatprep.subr.bf16.mxu0 0
      %647 = vmatpush1.bf16.msra.mxu0 0
      %648 = vmatprep.subr.bf16.mxu0 0
      %649 = vmatpush1.bf16.msra.mxu0 0
      %650 = vmatprep.mubr.bf16.mxu0 0
      %651 = vmatmul.mubr.bf16.gmra.mrb[0].mxu0 %v411
      %v652 = vpop.f32.mrb[0].mxu0
      %v653 = vadd.f32 %v272, %v652
      %v654 = vpop.f32.mrb[0].mxu0
      %v655 = vadd.f32 %v276, %v654
      %v656 = vpop.f32.mrb[0].mxu0
      %v657 = vpop.f32.mrb[0].mxu0
      %658 = vdwg.mxu0
      %v659 = vpack.c.bf16 %v448, %v448
      %v660 = vpack.c.bf16 %v450, %v450
      %v661 = vpack.c.bf16 %v489, %v489
      %v662 = vpack.c.bf16 %v491, %v491
      %v663 = vpack.c.bf16 %v530, %v530
      %v664 = vpack.c.bf16 %v532, %v532
      %v665 = vpack.c.bf16 %v571, %v571
      %v666 = vpack.c.bf16 %v573, %v573
      %v667 = vpack.c.bf16 %v612, %v612
      %v668 = vpack.c.bf16 %v614, %v614
      %v669 = vpack.c.bf16 %v653, %v653
      %v670 = vpack.c.bf16 %v655, %v655
      %vm671 = vcmask 519168
      %672 = vst.msk [vmem:[%s198] sm:$0xf] %vm671, %v659
      %v674 = vunpack.c.l.b16 %v659
      %v675 = vpack.c.b16 %v674, %v674
      %676 = vrot.lane.b32.xlu0 %v675, 64
      %v677 = vpop.permute.xlu0 %676
      %s679 = scalar_lea.vmem %s198, 4
      %680 = vst.msk [vmem:[%s679] sm:$0xf] %vm671, %v677
      %s681 = scalar_lea.vmem %s198, 8
      %682 = vst.msk [vmem:[%s681] sm:$0xf] %vm671, %v660
      %v684 = vunpack.c.l.b16 %v660
      %v685 = vpack.c.b16 %v684, %v684
      %686 = vrot.lane.b32.xlu0 %v685, 64
      %v687 = vpop.permute.xlu0 %686
      %s689 = scalar_lea.vmem %s198, 12
      %690 = vst.msk [vmem:[%s689] sm:$0xf] %vm671, %v687
      %s691 = scalar_lea.vmem %s198, 16
      %692 = vst.msk [vmem:[%s691] sm:$0xf] %vm671, %v661
      %v694 = vunpack.c.l.b16 %v661
      %v695 = vpack.c.b16 %v694, %v694
      %696 = vrot.lane.b32.xlu0 %v695, 64
      %v697 = vpop.permute.xlu0 %696
      %s699 = scalar_lea.vmem %s198, 20
      %700 = vst.msk [vmem:[%s699] sm:$0xf] %vm671, %v697
      %s701 = scalar_lea.vmem %s198, 24
      %702 = vst.msk [vmem:[%s701] sm:$0xf] %vm671, %v662
      %v704 = vunpack.c.l.b16 %v662
      %v705 = vpack.c.b16 %v704, %v704
      %706 = vrot.lane.b32.xlu0 %v705, 64
      %v707 = vpop.permute.xlu0 %706
      %s709 = scalar_lea.vmem %s198, 28
      %710 = vst.msk [vmem:[%s709] sm:$0xf] %vm671, %v707
      %s711 = scalar_lea.vmem %s198, 32
      %712 = vst.msk [vmem:[%s711] sm:$0xf] %vm671, %v663
      %v714 = vunpack.c.l.b16 %v663
      %v715 = vpack.c.b16 %v714, %v714
      %716 = vrot.lane.b32.xlu0 %v715, 64
      %v717 = vpop.permute.xlu0 %716
      %s719 = scalar_lea.vmem %s198, 36
      %720 = vst.msk [vmem:[%s719] sm:$0xf] %vm671, %v717
      %s721 = scalar_lea.vmem %s198, 40
      %722 = vst.msk [vmem:[%s721] sm:$0xf] %vm671, %v664
      %v724 = vunpack.c.l.b16 %v664
      %v725 = vpack.c.b16 %v724, %v724
      %726 = vrot.lane.b32.xlu0 %v725, 64
      %v727 = vpop.permute.xlu0 %726
      %s729 = scalar_lea.vmem %s198, 44
      %730 = vst.msk [vmem:[%s729] sm:$0xf] %vm671, %v727
      %s731 = scalar_lea.vmem %s198, 48
      %732 = vst.msk [vmem:[%s731] sm:$0xf] %vm671, %v665
      %v734 = vunpack.c.l.b16 %v665
      %v735 = vpack.c.b16 %v734, %v734
      %736 = vrot.lane.b32.xlu0 %v735, 64
      %v737 = vpop.permute.xlu0 %736
      %s739 = scalar_lea.vmem %s198, 52
      %740 = vst.msk [vmem:[%s739] sm:$0xf] %vm671, %v737
      %s741 = scalar_lea.vmem %s198, 56
      %742 = vst.msk [vmem:[%s741] sm:$0xf] %vm671, %v666
      %v744 = vunpack.c.l.b16 %v666
      %v745 = vpack.c.b16 %v744, %v744
      %746 = vrot.lane.b32.xlu0 %v745, 64
      %v747 = vpop.permute.xlu0 %746
      %s749 = scalar_lea.vmem %s198, 60
      %750 = vst.msk [vmem:[%s749] sm:$0xf] %vm671, %v747
      %s751 = scalar_lea.vmem %s198, 64
      %752 = vst.msk [vmem:[%s751] sm:$0xf] %vm671, %v667
      %v754 = vunpack.c.l.b16 %v667
      %v755 = vpack.c.b16 %v754, %v754
      %756 = vrot.lane.b32.xlu0 %v755, 64
      %v757 = vpop.permute.xlu0 %756
      %s759 = scalar_lea.vmem %s198, 68
      %760 = vst.msk [vmem:[%s759] sm:$0xf] %vm671, %v757
      %s761 = scalar_lea.vmem %s198, 72
      %762 = vst.msk [vmem:[%s761] sm:$0xf] %vm671, %v668
      %v764 = vunpack.c.l.b16 %v668
      %v765 = vpack.c.b16 %v764, %v764
      %766 = vrot.lane.b32.xlu0 %v765, 64
      %v767 = vpop.permute.xlu0 %766
      %s769 = scalar_lea.vmem %s198, 76
      %770 = vst.msk [vmem:[%s769] sm:$0xf] %vm671, %v767
      %s771 = scalar_lea.vmem %s198, 80
      %772 = vst.msk [vmem:[%s771] sm:$0xf] %vm671, %v669
      %v774 = vunpack.c.l.b16 %v669
      %v775 = vpack.c.b16 %v774, %v774
      %776 = vrot.lane.b32.xlu0 %v775, 64
      %v777 = vpop.permute.xlu0 %776
      %s779 = scalar_lea.vmem %s198, 84
      %780 = vst.msk [vmem:[%s779] sm:$0xf] %vm671, %v777
      %s781 = scalar_lea.vmem %s198, 88
      %782 = vst.msk [vmem:[%s781] sm:$0xf] %vm671, %v670
      %v784 = vunpack.c.l.b16 %v670
      %v785 = vpack.c.b16 %v784, %v784
      %786 = vrot.lane.b32.xlu0 %v785, 64
      %v787 = vpop.permute.xlu0 %786
      %s789 = scalar_lea.vmem %s198, 92
      %790 = vst.msk [vmem:[%s789] sm:$0xf] %vm671, %v787
      %p791 = scmp.lt.s32.totalorder %s18, 1
      %s792 = scalar_select %p791, %s18, 1
      %p793 = scmp.lt.s32.totalorder %s19, 0
      %s794 = scalar_select %p793, %s19, 0
      %s795 = smul.addr %s792, 24
      %s796 = sadd.s32 %s794, %s795
      %s797 = smul.addr %s796, 4
      %s798 = scalar_lea.vmem %s3, %s797
      // Predicated region
      $region33: #{attention_forward.2} parent=31 // pred_check
        %p799 = pneg %p116
      $region34: #{attention_forward.2} parent=31 // pred_check_branch
        %801 = sbr.rel (%p799) target = $region36
      $region35: #{attention_forward.2} parent=31 // pred_region
        _
      $region36: #{attention_forward.2} parent=31 // pred_fallthru
        _
    $region32: #{attention_forward.2} parent=5 // pred_fallthru
      _
    %p802 = scmp.le.s32.totalorder 2, %s9
    // Predicated region
    $region37: #{attention_forward.2} parent=5 // pred_check
      %p803 = pneg %p802
    $region38: #{attention_forward.2} parent=5 // pred_check_branch
      %805 = sbr.rel (%p803) target = $region40
    $region39: #{attention_forward.2} parent=5 // pred_region
      %s806 = ssub.s32 %s9, 2
      // Predicated region
      $region41: #{attention_forward.2} parent=39 // pred_check
        %p807 = pneg %p122
      $region42: #{attention_forward.2} parent=39 // pred_check_branch
        %809 = sbr.rel (%p807) target = $region44
      $region43: #{attention_forward.2} parent=39 // pred_region
        %p810 = scmp.lt.s32.totalorder %s20, 1
        %s811 = scalar_select %p810, %s20, 1
        %p812 = scmp.lt.s32.totalorder %s21, 0
        %s813 = scalar_select %p812, %s21, 0
        %s814 = smul.addr %s811, 24
        %s815 = sadd.s32 %s813, %s814
        %s816 = smul.addr %s815, 4
        %s817 = scalar_lea.vmem %s3, %s816
      $region44: #{attention_forward.2} parent=39 // pred_fallthru
        _
    $region40: #{attention_forward.2} parent=5 // pred_fallthru
      _
  $region6: #{attention_forward.2} parent=0 // loop_footer
    %s13 = sadd.s32 1, %s9
  $region7: #{attention_forward.2} parent=0 // loop_footer_branch
    %8 = sbr.rel target = $region3
  $region8: #{attention_forward.2} parent=0 // loop_exit
    _

// kernel: attention_forward.3
$region0: #{attention_forward.3}
  #allocation0 [shape = 'u32[]', space=smem, size = 0x4, offset = 0x4, fixed_abs, tag = 'smem constant byte address 0x4 - core index']
  #allocation1 [shape = 'u32[144,128]{1,0:T(1,128)}', space=vmem, size = 0x12000, scoped, tag = 'internal scratch']
  #allocation2 [shape = 'f32[8,32]{1,0:T(8,128)}', space=vmem, size = 0x1000, scoped, tag = 'scratch operand']
  %s0 = inlined_call_operand.vmem [shape: bf16[2,3,8,8,64], index: 0, kind: input, shape index: {}, may-alias: {0,1,2}]
  %s1 = inlined_call_operand.vmem [shape: bf16[2,3,8,8,64], index: 1, kind: input, shape index: {}, may-alias: {0,1,2}]
  %s2 = inlined_call_operand.vmem [shape: bf16[2,3,8,8,64], index: 2, kind: input, shape index: {}, may-alias: {0,1,2}]
  %s3 = inlined_call_operand.vmem [shape: bf16[8,64,32], index: 3, kind: input, shape index: {}]
  %s4 = inlined_call_operand.vmem [shape: f32[1,32], index: 4, kind: input, shape index: {}]
  %s5 = inlined_call_operand.hbm [shape: f32[2,8,32], index: 5, kind: output, shape index: {}]
  %s6 = sld [smem:[#allocation0]]
  $region53: #{attention_forward.3} parent=0
    _
  %s8 = ssub.s32 1, %s6
  %s9 = scalar_select 0, %s8, %s6
  $region1: #{attention_forward.3} parent=0
    #allocation3 [shape = 'u8[8192]{0}', space=vmem, size = 0x2000, scoped, tag = 'output window, operand 0']
    #allocation4 [shape = 's32[2]{0}', space=sflag, size = 0x8, scoped, tag = 'scoped memory for attention_forward.3']
    %10 = vsyncpa [#allocation4], 0
    %s11 = scalar_lea.sflag [#allocation4], 1
    %12 = vsyncpa %s11, 0
    loop: start=0, step=1, limit=4
    $region2: #{attention_forward.3} parent=1 // loop_pre_header
      _
    $region3: #{attention_forward.3} parent=1 // loop_header
      %s14 = sphi 0, %s18
      %p15 = scmp.ge.s32.totalorder %s14, 4
      %s21 = sphi 0, %s33
      %s22 = sphi 0, %s29
      %s23 = sphi 0, %s21
      %s24 = sphi 0, %s22
      %s25 = sphi 0, %s23
      %s26 = sphi 0, %s24
      %s38 = sphi 0, %s40
      %s41 = sphi 0, %s38
      %s42 = sphi 0, %s41
      %s58 = sphi 0, %s42
      %s64 = sphi 0, %s66
      %s67 = sphi 0, %s64
      %s68 = sphi 0, %s67
      %s84 = sphi 0, %s68
      %s90 = sphi 0, %s92
      %s93 = sphi 0, %s90
      %s94 = sphi 0, %s93
      %s110 = sphi 0, %s94
      %s114 = sphi 0, %s114
      %s116 = sphi 0, %s114
      %s117 = sphi 0, %s116
      %s131 = sphi 0, %s117
      %s135 = sphi 0, %s135
      %s137 = sphi 0, %s135
      %s138 = sphi 0, %s137
      %s152 = sphi 0, %s138
      %s160 = sphi 0, %s162
      %s163 = sphi 0, %s160
      %s164 = sphi 0, %s163
      %s180 = sphi 0, %s164
    $region4: #{attention_forward.3} parent=1 // loop_header_branch
      %17 = sbr.rel (%p15) target = $region8
    $region5: #{attention_forward.3} parent=1 // loop_body
      %s19 = ssub.s32 %s14, 1
      %s20 = ssub.s32 %s14, 2
      %s27 = sadd.s32 1, %s22
      %p28 = scmp.ge.s32.totalorder %s27, 1
      %s29 = scalar_select %p28, 0, %s27
      %s30 = sadd.s32 1, %s21
      %s31 = scalar_select %p28, %s30, %s21
      %p32 = scmp.ge.s32.totalorder %s31, 2
      %s33 = scalar_select %p32, 0, %s31
      %s34 = ssub.s32 %s21, %s33
      %s35 = ssub.s32 %s22, %s29
      %s36 = sor.u32 %s34, %s35
      %p37 = scmp.eq.s32.totalorder %s36, 0
      %s39 = sadd.s32 %s38, 1
      %s40 = scalar_select %p37, %s38, %s39
      %p43 = pneg %p37
      %p44 = scmp.eq.s32.totalorder %s14, 1
      %p45 = por %p43, %p44
      %p46 = scmp.ne.s32.totalorder %s38, %s41
      %p47 = scmp.eq.s32.totalorder %s14, 0
      %p48 = por %p46, %p47
      %p49 = scmp.ne.s32.totalorder %s38, %s41
      %p50 = scmp.eq.s32.totalorder %s19, 1
      %p51 = por %p49, %p50
      %p52 = scmp.ne.s32.totalorder %s41, %s42
      %p53 = scmp.eq.s32.totalorder %s19, 0
      %p54 = por %p52, %p53
      %p55 = scmp.ne.s32.totalorder %s41, %s42
      %p56 = scmp.eq.s32.totalorder %s20, 1
      %p57 = por %p55, %p56
      %p59 = scmp.ne.s32.totalorder %s42, %s58
      %p60 = scmp.eq.s32.totalorder %s20, 0
      %p61 = por %p59, %p60
      %s62 = ssub.s32 %s21, %s33
      %p63 = scmp.eq.s32.totalorder %s62, 0
      %s65 = sadd.s32 %s64, 1
      %s66 = scalar_select %p63, %s64, %s65
      %p69 = pneg %p63
      %p70 = scmp.eq.s32.totalorder %s14, 1
      %p71 = por %p69, %p70
      %p72 = scmp.ne.s32.totalorder %s64, %s67
      %p73 = scmp.eq.s32.totalorder %s14, 0
      %p74 = por %p72, %p73
      %p75 = scmp.ne.s32.totalorder %s64, %s67
      %p76 = scmp.eq.s32.totalorder %s19, 1
      %p77 = por %p75, %p76
      %p78 = scmp.ne.s32.totalorder %s67, %s68
      %p79 = scmp.eq.s32.totalorder %s19, 0
      %p80 = por %p78, %p79
      %p81 = scmp.ne.s32.totalorder %s67, %s68
      %p82 = scmp.eq.s32.totalorder %s20, 1
      %p83 = por %p81, %p82
      %p85 = scmp.ne.s32.totalorder %s68, %s84
      %p86 = scmp.eq.s32.totalorder %s20, 0
      %p87 = por %p85, %p86
      %s88 = ssub.s32 %s21, %s33
      %p89 = scmp.eq.s32.totalorder %s88, 0
      %s91 = sadd.s32 %s90, 1
      %s92 = scalar_select %p89, %s90, %s91
      %p95 = pneg %p89
      %p96 = scmp.eq.s32.totalorder %s14, 1
      %p97 = por %p95, %p96
      %p98 = scmp.ne.s32.totalorder %s90, %s93
      %p99 = scmp.eq.s32.totalorder %s14, 0
      %p100 = por %p98, %p99
      %p101 = scmp.ne.s32.totalorder %s90, %s93
      %p102 = scmp.eq.s32.totalorder %s19, 1
      %p103 = por %p101, %p102
      %p104 = scmp.ne.s32.totalorder %s93, %s94
      %p105 = scmp.eq.s32.totalorder %s19, 0
      %p106 = por %p104, %p105
      %p107 = scmp.ne.s32.totalorder %s93, %s94
      %p108 = scmp.eq.s32.totalorder %s20, 1
      %p109 = por %p107, %p108
      %p111 = scmp.ne.s32.totalorder %s94, %s110
      %p112 = scmp.eq.s32.totalorder %s20, 0
      %p113 = por %p111, %p112
      %s115 = sadd.s32 %s114, 1
      %p118 = scmp.eq.s32.totalorder %s14, 1
      %p119 = scmp.ne.s32.totalorder %s114, %s116
      %p120 = scmp.eq.s32.totalorder %s14, 0
      %p121 = por %p119, %p120
      %p122 = scmp.ne.s32.totalorder %s114, %s116
      %p123 = scmp.eq.s32.totalorder %s19, 1
      %p124 = por %p122, %p123
      %p125 = scmp.ne.s32.totalorder %s116, %s117
      %p126 = scmp.eq.s32.totalorder %s19, 0
      %p127 = por %p125, %p126
      %p128 = scmp.ne.s32.totalorder %s116, %s117
      %p129 = scmp.eq.s32.totalorder %s20, 1
      %p130 = por %p128, %p129
      %p132 = scmp.ne.s32.totalorder %s117, %s131
      %p133 = scmp.eq.s32.totalorder %s20, 0
      %p134 = por %p132, %p133
      %s136 = sadd.s32 %s135, 1
      %p139 = scmp.eq.s32.totalorder %s14, 1
      %p140 = scmp.ne.s32.totalorder %s135, %s137
      %p141 = scmp.eq.s32.totalorder %s14, 0
      %p142 = por %p140, %p141
      %p143 = scmp.ne.s32.totalorder %s135, %s137
      %p144 = scmp.eq.s32.totalorder %s19, 1
      %p145 = por %p143, %p144
      %p146 = scmp.ne.s32.totalorder %s137, %s138
      %p147 = scmp.eq.s32.totalorder %s19, 0
      %p148 = por %p146, %p147
      %p149 = scmp.ne.s32.totalorder %s137, %s138
      %p150 = scmp.eq.s32.totalorder %s20, 1
      %p151 = por %p149, %p150
      %p153 = scmp.ne.s32.totalorder %s138, %s152
      %p154 = scmp.eq.s32.totalorder %s20, 0
      %p155 = por %p153, %p154
      %s156 = ssub.s32 %s21, %s33
      %s157 = ssub.s32 %s22, %s29
      %s158 = sor.u32 %s156, %s157
      %p159 = scmp.eq.s32.totalorder %s158, 0
      %s161 = sadd.s32 %s160, 1
      %s162 = scalar_select %p159, %s160, %s161
      %p165 = pneg %p159
      %p166 = scmp.eq.s32.totalorder %s14, 1
      %p167 = por %p165, %p166
      %p168 = scmp.ne.s32.totalorder %s160, %s163
      %p169 = scmp.eq.s32.totalorder %s14, 0
      %p170 = por %p168, %p169
      %p171 = scmp.ne.s32.totalorder %s160, %s163
      %p172 = scmp.eq.s32.totalorder %s19, 1
      %p173 = por %p171, %p172
      %p174 = scmp.ne.s32.totalorder %s163, %s164
      %p175 = scmp.eq.s32.totalorder %s19, 0
      %p176 = por %p174, %p175
      %p177 = scmp.ne.s32.totalorder %s163, %s164
      %p178 = scmp.eq.s32.totalorder %s20, 1
      %p179 = por %p177, %p178
      %p181 = scmp.ne.s32.totalorder %s164, %s180
      %p182 = scmp.eq.s32.totalorder %s20, 0
      %p183 = por %p181, %p182
      %p184 = scmp.le.s32.totalorder 1, %s14
      %p185 = scmp.lt.s32.totalorder %s14, 3
      %p186 = pnand %p184, %p185
      %p187 = pneg %p186
      // Predicated region
      $region9: #{attention_forward.3} parent=5 // pred_check
        _
      $region10: #{attention_forward.3} parent=5 // pred_check_branch
        %189 = sbr.rel (%p186) target = $region12
      $region11: #{attention_forward.3} parent=5 // pred_region
        %s190 = ssub.s32 %s14, 1
        // Predicated region
        $region13: #{attention_forward.3} parent=11 // pred_check
          %p191 = pneg %p127
        $region14: #{attention_forward.3} parent=11 // pred_check_branch
          %193 = sbr.rel (%p191) target = $region16
        $region15: #{attention_forward.3} parent=11 // pred_region
          _
        $region16: #{attention_forward.3} parent=11 // pred_fallthru
          _
        // Predicated region
        $region17: #{attention_forward.3} parent=11 // pred_check
          %p194 = pneg %p148
        $region18: #{attention_forward.3} parent=11 // pred_check_branch
          %196 = sbr.rel (%p194) target = $region20
        $region19: #{attention_forward.3} parent=11 // pred_region
          _
        $region20: #{attention_forward.3} parent=11 // pred_fallthru
          _
      $region12: #{attention_forward.3} parent=5 // pred_fallthru
        _
      %p197 = scmp.lt.s32.totalorder %s14, 2
      // Predicated region
      $region21: #{attention_forward.3} parent=5 // pred_check
        %p198 = pneg %p197
      $region22: #{attention_forward.3} parent=5 // pred_check_branch
        %200 = sbr.rel (%p198) target = $region24
      $region23: #{attention_forward.3} parent=5 // pred_region
        // Predicated region
        $region25: #{attention_forward.3} parent=23 // pred_check
          %p201 = pneg %p48
        $region26: #{attention_forward.3} parent=23 // pred_check_branch
          %203 = sbr.rel (%p201) target = $region28
        $region27: #{attention_forward.3} parent=23 // pred_region
          %p204 = scmp.lt.s32.totalorder %s21, 1
          %s205 = scalar_select %p204, %s21, 1
          %p206 = scmp.lt.s32.totalorder %s22, 0
          %s207 = scalar_select %p206, %s22, 0
          %s208 = smul.addr %s205, 24
          %s209 = sadd.s32 %s207, %s208
          %s210 = smul.addr %s209, 4
          %s211 = scalar_lea.vmem %s0, %s210
        $region28: #{attention_forward.3} parent=23 // pred_fallthru
          _
        // Predicated region
        $region29: #{attention_forward.3} parent=23 // pred_check
          %p212 = pneg %p74
        $region30: #{attention_forward.3} parent=23 // pred_check_branch
          %214 = sbr.rel (%p212) target = $region32
        $region31: #{attention_forward.3} parent=23 // pred_region
          %p215 = scmp.lt.s32.totalorder %s21, 1
          %s216 = scalar_select %p215, %s21, 1
          %s217 = smul.addr %s216, 24
          %s218 = sadd.s32 8, %s217
          %s219 = smul.addr %s218, 4
          %s220 = scalar_lea.vmem %s1, %s219
        $region32: #{attention_forward.3} parent=23 // pred_fallthru
          _
        // Predicated region
        $region33: #{attention_forward.3} parent=23 // pred_check
          %p221 = pneg %p100
        $region34: #{attention_forward.3} parent=23 // pred_check_branch
          %223 = sbr.rel (%p221) target = $region36
        $region35: #{attention_forward.3} parent=23 // pred_region
          %p224 = scmp.lt.s32.totalorder %s21, 1
          %s225 = scalar_select %p224, %s21, 1
          %s226 = smul.addr %s225, 24
          %s227 = sadd.s32 16, %s226
          %s228 = smul.addr %s227, 4
          %s229 = scalar_lea.vmem %s2, %s228
        $region36: #{attention_forward.3} parent=23 // pred_fallthru
          _
      $region24: #{attention_forward.3} parent=5 // pred_fallthru
        _
      %p230 = scmp.le.s32.totalorder 1, %s14
      %p231 = scmp.lt.s32.totalorder %s14, 3
      %p232 = pnand %p230, %p231
      %p233 = pneg %p232
      // Predicated region
      $region37: #{attention_forward.3} parent=5 // pred_check
        _
      $region38: #{attention_forward.3} parent=5 // pred_check_branch
        %235 = sbr.rel (%p232) target = $region40
      $region39: #{attention_forward.3} parent=5 // pred_region
        %s236 = ssub.s32 %s14, 1
        %p237 = scmp.lt.s32.totalorder %s23, 1
        %s238 = scalar_select %p237, %s23, 1
        %p239 = scmp.lt.s32.totalorder %s24, 0
        %s240 = scalar_select %p239, %s24, 0
        %s241 = smul.addr %s238, 24
        %s242 = sadd.s32 %s240, %s241
        %s243 = smul.addr %s242, 4
        %s244 = scalar_lea.vmem %s0, %s243
        %p245 = pneg %p54
        %p246 = pneg %p51
        %p247 = scmp.lt.s32.totalorder %s23, 1
        %s248 = scalar_select %p247, %s23, 1
        %s249 = smul.addr %s248, 24
        %s250 = sadd.s32 8, %s249
        %s251 = smul.addr %s250, 4
        %s252 = scalar_lea.vmem %s1, %s251
        %p253 = pneg %p80
        %p254 = pneg %p77
        %p255 = scmp.lt.s32.totalorder %s23, 1
        %s256 = scalar_select %p255, %s23, 1
        %s257 = smul.addr %s256, 24
        %s258 = sadd.s32 16, %s257
        %s259 = smul.addr %s258, 4
        %s260 = scalar_lea.vmem %s2, %s259
        %p261 = pneg %p106
        %p262 = pneg %p103
        %p263 = pneg %p127
        %p264 = pneg %p124
        %p265 = pneg %p148
        %p266 = pneg %p145
        %p267 = pneg %p176
        %p268 = pneg %p173
        %s269 = sand.u32 %s163, 1
        %s270 = scalar_lea.sflag [#allocation4], %s269
        %s271 = sand.u32 %s163, 1
        %s272 = smul.addr %s271, 8
        %s273 = scalar_lea.vmem [#allocation3], %s272
        %p274 = scmp.lt.s32.totalorder %s23, 1
        %s275 = scalar_select %p274, %s23, 1
        %p276 = scmp.lt.s32.totalorder %s24, 0
        %s277 = scalar_select %p276, %s24, 0
        %s278 = smul.addr %s275, 24
        %s279 = sadd.s32 %s277, %s278
        %s280 = smul.addr %s279, 4
        %s281 = scalar_lea.vmem %s0, %s280
        %p282 = scmp.lt.s32.totalorder %s23, 1
        %s283 = scalar_select %p282, %s23, 1
        %s284 = smul.addr %s283, 24
        %s285 = sadd.s32 8, %s284
        %s286 = smul.addr %s285, 4
        %s287 = scalar_lea.vmem %s1, %s286
        %p288 = scmp.lt.s32.totalorder %s23, 1
        %s289 = scalar_select %p288, %s23, 1
        %s290 = smul.addr %s289, 24
        %s291 = sadd.s32 16, %s290
        %s292 = smul.addr %s291, 4
        %s293 = scalar_lea.vmem %s2, %s292
        %vm296 = vcmask 261120
        %297 = vst.msk [vmem:[#allocation2] sm:$0xff] %vm296, 0.0
        %v298 = vld [vmem:[%s281] sm:$0xf]
        %v299 = vmul.bf16 %v298, 1040203264
        %v300 = vld [vmem:[%s287] sm:$0xf]
        %vm301 = vcmask 523264
        %v303 = vsel %vm301, %v299, 0
        %v306 = vsel %vm301, %v300, 0
        %308 = vmatprep.subr.bf16.mxu0 0
        %309 = vmatpush1.bf16.xpose.msra.mxu0 %v306
        %310 = vmatprep.subr.bf16.mxu0 0
        %311 = vmatpush1.bf16.xpose.msra.mxu0 0
        %312 = vmatprep.subr.bf16.mxu0 0
        %313 = vmatpush1.bf16.xpose.msra.mxu0 0
        %314 = vmatprep.subr.bf16.mxu0 0
        %315 = vmatpush1.bf16.xpose.msra.mxu0 0
        %316 = vmatprep.subr.bf16.mxu0 0
        %317 = vmatpush1.bf16.xpose.msra.mxu0 0
        %318 = vmatprep.subr.bf16.mxu0 0
        %319 = vmatpush1.bf16.xpose.msra.mxu0 0
        %320 = vmatprep.subr.bf16.mxu0 0
        %321 = vmatpush1.bf16.xpose.msra.mxu0 0
        %322 = vmatprep.subr.bf16.mxu0 0
        %323 = vmatpush1.bf16.xpose.msra.mxu0 0
        %324 = vmatprep.subr.bf16.mxu0 0
        %325 = vmatpush1.bf16.xpose.msra.mxu0 0
        %326 = vmatprep.subr.bf16.mxu0 0
        %327 = vmatpush1.bf16.xpose.msra.mxu0 0
        %328 = vmatprep.subr.bf16.mxu0 0
        %329 = vmatpush1.bf16.xpose.msra.mxu0 0
        %330 = vmatprep.subr.bf16.mxu0 0
        %331 = vmatpush1.bf16.xpose.msra.mxu0 0
        %332 = vmatprep.subr.bf16.mxu0 0
        %333 = vmatpush1.bf16.xpose.msra.mxu0 0
        %334 = vmatprep.subr.bf16.mxu0 0
        %335 = vmatpush1.bf16.xpose.msra.mxu0 0
        %336 = vmatprep.subr.bf16.mxu0 0
        %337 = vmatpush1.bf16.xpose.msra.mxu0 0
        %338 = vmatprep.subr.bf16.mxu0 0
        %339 = vmatpush1.bf16.xpose.msra.mxu0 0
        %340 = vmatprep.mubr.bf16.mxu0 0
        %341 = vmatmul.mubr.bf16.gmra.mrb[0].mxu0 %v303
        %v342 = vpop.f32.mrb[0].mxu0
        %v343 = vadd.f32 0.0, %v342
        %v344 = vpop.f32.mrb[0].mxu0
        %v345 = vpop.f32.mrb[0].mxu0
        %v346 = vpop.f32.mrb[0].mxu0
        %347 = vdwg.mxu0
        %vm348 = vcmask 64512
        %v349 = vsel %vm348, %v343, -inf
        %350 = vmax.xlane.f32.xlu0 %v349
        %v351 = vpop.xlane.xlu0 %350
        %v352 = vsub.f32 %v343, %v351
        %v353 = vmul.f32 %v352, 1.442695
        %v354 = vpow.pop %v353
        %v355 = vsel %vm348, %v354, 0.0
        %356 = vadd.xlane.f32.xlu0 %v355
        %v357 = vpop.xlane.xlu0 %356
        %v358 = vrcp.pop %v357
        %v359 = vmul.f32 %v354, %v358
        %v360 = vpack.c.bf16 %v359, %v359
        %v361 = vld [vmem:[%s293] sm:$0xf]
        %v363 = vsel %vm348, %v360, 0
        %vm365 = vcmask 1043456
        %v367 = vsel %vm365, %v361, 0
        %369 = vmatprep.subr.bf16.mxu0 0
        %370 = vmatpush1.bf16.msra.mxu0 %v367
        %371 = vmatprep.subr.bf16.mxu0 0
        %372 = vmatpush1.bf16.msra.mxu0 0
        %373 = vmatprep.subr.bf16.mxu0 0
        %374 = vmatpush1.bf16.msra.mxu0 0
        %375 = vmatprep.subr.bf16.mxu0 0
        %376 = vmatpush1.bf16.msra.mxu0 0
        %377 = vmatprep.subr.bf16.mxu0 0
        %378 = vmatpush1.bf16.msra.mxu0 0
        %379 = vmatprep.subr.bf16.mxu0 0
        %380 = vmatpush1.bf16.msra.mxu0 0
        %381 = vmatprep.subr.bf16.mxu0 0
        %382 = vmatpush1.bf16.msra.mxu0 0
        %383 = vmatprep.subr.bf16.mxu0 0
        %384 = vmatpush1.bf16.msra.mxu0 0
        %385 = vmatprep.subr.bf16.mxu0 0
        %386 = vmatpush1.bf16.msra.mxu0 0
        %387 = vmatprep.subr.bf16.mxu0 0
        %388 = vmatpush1.bf16.msra.mxu0 0
        %389 = vmatprep.subr.bf16.mxu0 0
        %390 = vmatpush1.bf16.msra.mxu0 0
        %391 = vmatprep.subr.bf16.mxu0 0
        %392 = vmatpush1.bf16.msra.mxu0 0
        %393 = vmatprep.subr.bf16.mxu0 0
        %394 = vmatpush1.bf16.msra.mxu0 0
        %395 = vmatprep.subr.bf16.mxu0 0
        %396 = vmatpush1.bf16.msra.mxu0 0
        %397 = vmatprep.subr.bf16.mxu0 0
        %398 = vmatpush1.bf16.msra.mxu0 0
        %399 = vmatprep.subr.bf16.mxu0 0
        %400 = vmatpush1.bf16.msra.mxu0 0
        %401 = vmatprep.mubr.bf16.mxu0 0
        %402 = vmatmul.mubr.bf16.gmra.mrb[0].mxu0 %v363
        %v403 = vpop.f32.mrb[0].mxu0
        %v404 = vadd.f32 0.0, %v403
        %v405 = vpop.f32.mrb[0].mxu0
        %v406 = vpop.f32.mrb[0].mxu0
        %v407 = vpop.f32.mrb[0].mxu0
        %408 = vdwg.mxu0
        %v409 = vld [vmem:[#allocation2] sm:$0xff]
        %v410 = vpack.c.bf16 %v404, %v404
        %v411 = vld [vmem:[%s3] sm:$0xf]
        %v412 = vld [vmem:[%s3 + $0x4] sm:$0xf]
        %v413 = vld [vmem:[%s3 + $0x8] sm:$0xf]
        %v414 = vld [vmem:[%s3 + $0xc] sm:$0xf]
        %v415 = vld [vmem:[%s3 + $0x10] sm:$0xf]
        %v416 = vld [vmem:[%s3 + $0x14] sm:$0xf]
        %v417 = vld [vmem:[%s3 + $0x18] sm:$0xf]
        %v418 = vld [vmem:[%s3 + $0x1c] sm:$0xf]
        %v427 = vunpack.c.l.b16 %v411
        %v428 = vunpack.c.l.b16 %v412
        %v429 = vunpack.c.l.b16 %v413
        %v430 = vunpack.c.l.b16 %v414
        %v431 = vunpack.c.l.b16 %v415
        %v432 = vunpack.c.l.b16 %v416
        %v433 = vunpack.c.l.b16 %v417
        %v434 = vunpack.c.l.b16 %v418
        %v435 = vpack.c.b16 %v428, %v427
        %v436 = vpack.c.b16 %v430, %v429
        %v437 = vpack.c.b16 %v432, %v431
        %v438 = vpack.c.b16 %v434, %v433
        %v444 = vsel %vm301, %v410, 0
        %446 = vmatprep.subr.bf16.mxu0 0
        %447 = vmatpush1.bf16.msra.mxu0 %v435
        %448 = vmatprep.subr.bf16.mxu0 0
        %449 = vmatpush1.bf16.msra.mxu0 %v436
        %450 = vmatprep.subr.bf16.mxu0 0
        %451 = vmatpush1.bf16.msra.mxu0 %v437
        %452 = vmatprep.subr.bf16.mxu0 0
        %453 = vmatpush1.bf16.msra.mxu0 %v438
        %454 = vmatprep.subr.bf16.mxu0 0
        %455 = vmatpush1.bf16.msra.mxu0 0
        %456 = vmatprep.subr.bf16.mxu0 0
        %457 = vmatpush1.bf16.msra.mxu0 0
        %458 = vmatprep.subr.bf16.mxu0 0
        %459 = vmatpush1.bf16.msra.mxu0 0
        %460 = vmatprep.subr.bf16.mxu0 0
        %461 = vmatpush1.bf16.msra.mxu0 0
        %462 = vmatprep.subr.bf16.mxu0 0
        %463 = vmatpush1.bf16.msra.mxu0 0
        %464 = vmatprep.subr.bf16.mxu0 0
        %465 = vmatpush1.bf16.msra.mxu0 0
        %466 = vmatprep.subr.bf16.mxu0 0
        %467 = vmatpush1.bf16.msra.mxu0 0
        %468 = vmatprep.subr.bf16.mxu0 0
        %469 = vmatpush1.bf16.msra.mxu0 0
        %470 = vmatprep.subr.bf16.mxu0 0
        %471 = vmatpush1.bf16.msra.mxu0 0
        %472 = vmatprep.subr.bf16.mxu0 0
        %473 = vmatpush1.bf16.msra.mxu0 0
        %474 = vmatprep.subr.bf16.mxu0 0
        %475 = vmatpush1.bf16.msra.mxu0 0
        %476 = vmatprep.subr.bf16.mxu0 0
        %477 = vmatpush1.bf16.msra.mxu0 0
        %478 = vmatprep.mubr.bf16.mxu0 0
        %479 = vmatmul.mubr.bf16.gmra.mrb[0].mxu0 %v444
        %v480 = vpop.f32.mrb[0].mxu0
        %v481 = vadd.f32 0.0, %v480
        %v482 = vpop.f32.mrb[0].mxu0
        %v483 = vpop.f32.mrb[0].mxu0
        %v484 = vpop.f32.mrb[0].mxu0
        %485 = vdwg.mxu0
        %v486 = vadd.f32 %v409, %v481
        %487 = vst.msk [vmem:[#allocation2] sm:$0xff] %vm296, %v486
        %s488 = scalar_lea.vmem %s281, 4
        %v489 = vld [vmem:[%s488] sm:$0xf]
        %v490 = vmul.bf16 %v489, 1040203264
        %s491 = scalar_lea.vmem %s287, 4
        %v492 = vld [vmem:[%s491] sm:$0xf]
        %v494 = vsel %vm301, %v490, 0
        %v497 = vsel %vm301, %v492, 0
        %499 = vmatprep.subr.bf16.mxu0 0
        %500 = vmatpush1.bf16.xpose.msra.mxu0 %v497
        %501 = vmatprep.subr.bf16.mxu0 0
        %502 = vmatpush1.bf16.xpose.msra.mxu0 0
        %503 = vmatprep.subr.bf16.mxu0 0
        %504 = vmatpush1.bf16.xpose.msra.mxu0 0
        %505 = vmatprep.subr.bf16.mxu0 0
        %506 = vmatpush1.bf16.xpose.msra.mxu0 0
        %507 = vmatprep.subr.bf16.mxu0 0
        %508 = vmatpush1.bf16.xpose.msra.mxu0 0
        %509 = vmatprep.subr.bf16.mxu0 0
        %510 = vmatpush1.bf16.xpose.msra.mxu0 0
        %511 = vmatprep.subr.bf16.mxu0 0
        %512 = vmatpush1.bf16.xpose.msra.mxu0 0
        %513 = vmatprep.subr.bf16.mxu0 0
        %514 = vmatpush1.bf16.xpose.msra.mxu0 0
        %515 = vmatprep.subr.bf16.mxu0 0
        %516 = vmatpush1.bf16.xpose.msra.mxu0 0
        %517 = vmatprep.subr.bf16.mxu0 0
        %518 = vmatpush1.bf16.xpose.msra.mxu0 0
        %519 = vmatprep.subr.bf16.mxu0 0
        %520 = vmatpush1.bf16.xpose.msra.mxu0 0
        %521 = vmatprep.subr.bf16.mxu0 0
        %522 = vmatpush1.bf16.xpose.msra.mxu0 0
        %523 = vmatprep.subr.bf16.mxu0 0
        %524 = vmatpush1.bf16.xpose.msra.mxu0 0
        %525 = vmatprep.subr.bf16.mxu0 0
        %526 = vmatpush1.bf16.xpose.msra.mxu0 0
        %527 = vmatprep.subr.bf16.mxu0 0
        %528 = vmatpush1.bf16.xpose.msra.mxu0 0
        %529 = vmatprep.subr.bf16.mxu0 0
        %530 = vmatpush1.bf16.xpose.msra.mxu0 0
        %531 = vmatprep.mubr.bf16.mxu0 0
        %532 = vmatmul.mubr.bf16.gmra.mrb[0].mxu0 %v494
        %v533 = vpop.f32.mrb[0].mxu0
        %v534 = vadd.f32 0.0, %v533
        %v535 = vpop.f32.mrb[0].mxu0
        %v536 = vpop.f32.mrb[0].mxu0
        %v537 = vpop.f32.mrb[0].mxu0
        %538 = vdwg.mxu0
        %v539 = vsel %vm348, %v534, -inf
        %540 = vmax.xlane.f32.xlu0 %v539
        %v541 = vpop.xlane.xlu0 %540
        %v542 = vsub.f32 %v534, %v541
        %v543 = vmul.f32 %v542, 1.442695
        %v544 = vpow.pop %v543
        %v545 = vsel %vm348, %v544, 0.0
        %546 = vadd.xlane.f32.xlu0 %v545
        %v547 = vpop.xlane.xlu0 %546
        %v548 = vrcp.pop %v547
        %v549 = vmul.f32 %v544, %v548
        %v550 = vpack.c.bf16 %v549, %v549
        %s551 = scalar_lea.vmem %s293, 4
        %v552 = vld [vmem:[%s551] sm:$0xf]
        %v554 = vsel %vm348, %v550, 0
        %v557 = vsel %vm365, %v552, 0
        %559 = vmatprep.subr.bf16.mxu0 0
        %560 = vmatpush1.bf16.msra.mxu0 %v557
        %561 = vmatprep.subr.bf16.mxu0 0
        %562 = vmatpush1.bf16.msra.mxu0 0
        %563 = vmatprep.subr.bf16.mxu0 0
        %564 = vmatpush1.bf16.msra.mxu0 0
        %565 = vmatprep.subr.bf16.mxu0 0
        %566 = vmatpush1.bf16.msra.mxu0 0
        %567 = vmatprep.subr.bf16.mxu0 0
        %568 = vmatpush1.bf16.msra.mxu0 0
        %569 = vmatprep.subr.bf16.mxu0 0
        %570 = vmatpush1.bf16.msra.mxu0 0
        %571 = vmatprep.subr.bf16.mxu0 0
        %572 = vmatpush1.bf16.msra.mxu0 0
        %573 = vmatprep.subr.bf16.mxu0 0
        %574 = vmatpush1.bf16.msra.mxu0 0
        %575 = vmatprep.subr.bf16.mxu0 0
        %576 = vmatpush1.bf16.msra.mxu0 0
        %577 = vmatprep.subr.bf16.mxu0 0
        %578 = vmatpush1.bf16.msra.mxu0 0
        %579 = vmatprep.subr.bf16.mxu0 0
        %580 = vmatpush1.bf16.msra.mxu0 0
        %581 = vmatprep.subr.bf16.mxu0 0
        %582 = vmatpush1.bf16.msra.mxu0 0
        %583 = vmatprep.subr.bf16.mxu0 0
        %584 = vmatpush1.bf16.msra.mxu0 0
        %585 = vmatprep.subr.bf16.mxu0 0
        %586 = vmatpush1.bf16.msra.mxu0 0
        %587 = vmatprep.subr.bf16.mxu0 0
        %588 = vmatpush1.bf16.msra.mxu0 0
        %589 = vmatprep.subr.bf16.mxu0 0
        %590 = vmatpush1.bf16.msra.mxu0 0
        %591 = vmatprep.mubr.bf16.mxu0 0
        %592 = vmatmul.mubr.bf16.gmra.mrb[0].mxu0 %v554
        %v593 = vpop.f32.mrb[0].mxu0
        %v594 = vadd.f32 0.0, %v593
        %v595 = vpop.f32.mrb[0].mxu0
        %v596 = vpop.f32.mrb[0].mxu0
        %v597 = vpop.f32.mrb[0].mxu0
        %598 = vdwg.mxu0
        %v599 = vld [vmem:[#allocation2] sm:$0xff]
        %v600 = vpack.c.bf16 %v594, %v594
        %s601 = scalar_lea.vmem %s3, 32
        %v602 = vld [vmem:[%s601] sm:$0xf]
        %v603 = vld [vmem:[%s601 + $0x4] sm:$0xf]
        %v604 = vld [vmem:[%s601 + $0x8] sm:$0xf]
        %v605 = vld [vmem:[%s601 + $0xc] sm:$0xf]
        %v606 = vld [vmem:[%s601 + $0x10] sm:$0xf]
        %v607 = vld [vmem:[%s601 + $0x14] sm:$0xf]
        %v608 = vld [vmem:[%s601 + $0x18] sm:$0xf]
        %v609 = vld [vmem:[%s601 + $0x1c] sm:$0xf]
        %v618 = vunpack.c.l.b16 %v602
        %v619 = vunpack.c.l.b16 %v603
        %v620 = vunpack.c.l.b16 %v604
        %v621 = vunpack.c.l.b16 %v605
        %v622 = vunpack.c.l.b16 %v606
        %v623 = vunpack.c.l.b16 %v607
        %v624 = vunpack.c.l.b16 %v608
        %v625 = vunpack.c.l.b16 %v609
        %v626 = vpack.c.b16 %v619, %v618
        %v627 = vpack.c.b16 %v621, %v620
        %v628 = vpack.c.b16 %v623, %v622
        %v629 = vpack.c.b16 %v625, %v624
        %v635 = vsel %vm301, %v600, 0
        %637 = vmatprep.subr.bf16.mxu0 0
        %638 = vmatpush1.bf16.msra.mxu0 %v626
        %639 = vmatprep.subr.bf16.mxu0 0
        %640 = vmatpush1.bf16.msra.mxu0 %v627
        %641 = vmatprep.subr.bf16.mxu0 0
        %642 = vmatpush1.bf16.msra.mxu0 %v628
        %643 = vmatprep.subr.bf16.mxu0 0
        %644 = vmatpush1.bf16.msra.mxu0 %v629
        %645 = vmatprep.subr.bf16.mxu0 0
        %646 = vmatpush1.bf16.msra.mxu0 0
        %647 = vmatprep.subr.bf16.mxu0 0
        %648 = vmatpush1.bf16.msra.mxu0 0
        %649 = vmatprep.subr.bf16.mxu0 0
        %650 = vmatpush1.bf16.msra.mxu0 0
        %651 = vmatprep.subr.bf16.mxu0 0
        %652 = vmatpush1.bf16.msra.mxu0 0
        %653 = vmatprep.subr.bf16.mxu0 0
        %654 = vmatpush1.bf16.msra.mxu0 0
        %655 = vmatprep.subr.bf16.mxu0 0
        %656 = vmatpush1.bf16.msra.mxu0 0
        %657 = vmatprep.subr.bf16.mxu0 0
        %658 = vmatpush1.bf16.msra.mxu0 0
        %659 = vmatprep.subr.bf16.mxu0 0
        %660 = vmatpush1.bf16.msra.mxu0 0
        %661 = vmatprep.subr.bf16.mxu0 0
        %662 = vmatpush1.bf16.msra.mxu0 0
        %663 = vmatprep.subr.bf16.mxu0 0
        %664 = vmatpush1.bf16.msra.mxu0 0
        %665 = vmatprep.subr.bf16.mxu0 0
        %666 = vmatpush1.bf16.msra.mxu0 0
        %667 = vmatprep.subr.bf16.mxu0 0
        %668 = vmatpush1.bf16.msra.mxu0 0
        %669 = vmatprep.mubr.bf16.mxu0 0
        %670 = vmatmul.mubr.bf16.gmra.mrb[0].mxu0 %v635
        %v671 = vpop.f32.mrb[0].mxu0
        %v672 = vadd.f32 0.0, %v671
        %v673 = vpop.f32.mrb[0].mxu0
        %v674 = vpop.f32.mrb[0].mxu0
        %v675 = vpop.f32.mrb[0].mxu0
        %676 = vdwg.mxu0
        %v677 = vadd.f32 %v599, %v672
        %678 = vst.msk [vmem:[#allocation2] sm:$0xff] %vm296, %v677
        %s679 = scalar_lea.vmem %s281, 8
        %v680 = vld [vmem:[%s679] sm:$0xf]
        %v681 = vmul.bf16 %v680, 1040203264
        %s682 = scalar_lea.vmem %s287, 8
        %v683 = vld [vmem:[%s682] sm:$0xf]
        %v685 = vsel %vm301, %v681, 0
        %v688 = vsel %vm301, %v683, 0
        %690 = vmatprep.subr.bf16.mxu0 0
        %691 = vmatpush1.bf16.xpose.msra.mxu0 %v688
        %692 = vmatprep.subr.bf16.mxu0 0
        %693 = vmatpush1.bf16.xpose.msra.mxu0 0
        %694 = vmatprep.subr.bf16.mxu0 0
        %695 = vmatpush1.bf16.xpose.msra.mxu0 0
        %696 = vmatprep.subr.bf16.mxu0 0
        %697 = vmatpush1.bf16.xpose.msra.mxu0 0
        %698 = vmatprep.subr.bf16.mxu0 0
        %699 = vmatpush1.bf16.xpose.msra.mxu0 0
        %700 = vmatprep.subr.bf16.mxu0 0
        %701 = vmatpush1.bf16.xpose.msra.mxu0 0
        %702 = vmatprep.subr.bf16.mxu0 0
        %703 = vmatpush1.bf16.xpose.msra.mxu0 0
        %704 = vmatprep.subr.bf16.mxu0 0
        %705 = vmatpush1.bf16.xpose.msra.mxu0 0
        %706 = vmatprep.subr.bf16.mxu0 0
        %707 = vmatpush1.bf16.xpose.msra.mxu0 0
        %708 = vmatprep.subr.bf16.mxu0 0
        %709 = vmatpush1.bf16.xpose.msra.mxu0 0
        %710 = vmatprep.subr.bf16.mxu0 0
        %711 = vmatpush1.bf16.xpose.msra.mxu0 0
        %712 = vmatprep.subr.bf16.mxu0 0
        %713 = vmatpush1.bf16.xpose.msra.mxu0 0
        %714 = vmatprep.subr.bf16.mxu0 0
        %715 = vmatpush1.bf16.xpose.msra.mxu0 0
        %716 = vmatprep.subr.bf16.mxu0 0
        %717 = vmatpush1.bf16.xpose.msra.mxu0 0
        %718 = vmatprep.subr.bf16.mxu0 0
        %719 = vmatpush1.bf16.xpose.msra.mxu0 0
        %720 = vmatprep.subr.bf16.mxu0 0
        %721 = vmatpush1.bf16.xpose.msra.mxu0 0
        %722 = vmatprep.mubr.bf16.mxu0 0
        %723 = vmatmul.mubr.bf16.gmra.mrb[0].mxu0 %v685
        %v724 = vpop.f32.mrb[0].mxu0
        %v725 = vadd.f32 0.0, %v724
        %v726 = vpop.f32.mrb[0].mxu0
        %v727 = vpop.f32.mrb[0].mxu0
        %v728 = vpop.f32.mrb[0].mxu0
        %729 = vdwg.mxu0
        %v730 = vsel %vm348, %v725, -inf
        %731 = vmax.xlane.f32.xlu0 %v730
        %v732 = vpop.xlane.xlu0 %731
        %v733 = vsub.f32 %v725, %v732
        %v734 = vmul.f32 %v733, 1.442695
        %v735 = vpow.pop %v734
        %v736 = vsel %vm348, %v735, 0.0
        %737 = vadd.xlane.f32.xlu0 %v736
        %v738 = vpop.xlane.xlu0 %737
        %v739 = vrcp.pop %v738
        %v740 = vmul.f32 %v735, %v739
        %v741 = vpack.c.bf16 %v740, %v740
        %s742 = scalar_lea.vmem %s293, 8
        %v743 = vld [vmem:[%s742] sm:$0xf]
        %v745 = vsel %vm348, %v741, 0
        %v748 = vsel %vm365, %v743, 0
        %750 = vmatprep.subr.bf16.mxu0 0
        %751 = vmatpush1.bf16.msra.mxu0 %v748
        %752 = vmatprep.subr.bf16.mxu0 0
        %753 = vmatpush1.bf16.msra.mxu0 0
        %754 = vmatprep.subr.bf16.mxu0 0
        %755 = vmatpush1.bf16.msra.mxu0 0
        %756 = vmatprep.subr.bf16.mxu0 0
        %757 = vmatpush1.bf16.msra.mxu0 0
        %758 = vmatprep.subr.bf16.mxu0 0
        %759 = vmatpush1.bf16.msra.mxu0 0
        %760 = vmatprep.subr.bf16.mxu0 0
        %761 = vmatpush1.bf16.msra.mxu0 0
        %762 = vmatprep.subr.bf16.mxu0 0
        %763 = vmatpush1.bf16.msra.mxu0 0
        %764 = vmatprep.subr.bf16.mxu0 0
        %765 = vmatpush1.bf16.msra.mxu0 0
        %766 = vmatprep.subr.bf16.mxu0 0
        %767 = vmatpush1.bf16.msra.mxu0 0
        %768 = vmatprep.subr.bf16.mxu0 0
        %769 = vmatpush1.bf16.msra.mxu0 0
        %770 = vmatprep.subr.bf16.mxu0 0
        %771 = vmatpush1.bf16.msra.mxu0 0
        %772 = vmatprep.subr.bf16.mxu0 0
        %773 = vmatpush1.bf16.msra.mxu0 0
        %774 = vmatprep.subr.bf16.mxu0 0
        %775 = vmatpush1.bf16.msra.mxu0 0
        %776 = vmatprep.subr.bf16.mxu0 0
        %777 = vmatpush1.bf16.msra.mxu0 0
        %778 = vmatprep.subr.bf16.mxu0 0
        %779 = vmatpush1.bf16.msra.mxu0 0
        %780 = vmatprep.subr.bf16.mxu0 0
        %781 = vmatpush1.bf16.msra.mxu0 0
        %782 = vmatprep.mubr.bf16.mxu0 0
        %783 = vmatmul.mubr.bf16.gmra.mrb[0].mxu0 %v745
        %v784 = vpop.f32.mrb[0].mxu0
        %v785 = vadd.f32 0.0, %v784
        %v786 = vpop.f32.mrb[0].mxu0
        %v787 = vpop.f32.mrb[0].mxu0
        %v788 = vpop.f32.mrb[0].mxu0
        %789 = vdwg.mxu0
        %v790 = vld [vmem:[#allocation2] sm:$0xff]
        %v791 = vpack.c.bf16 %v785, %v785
        %s792 = scalar_lea.vmem %s3, 64
        %v793 = vld [vmem:[%s792] sm:$0xf]
        %v794 = vld [vmem:[%s792 + $0x4] sm:$0xf]
        %v795 = vld [vmem:[%s792 + $0x8] sm:$0xf]
        %v796 = vld [vmem:[%s792 + $0xc] sm:$0xf]
        %v797 = vld [vmem:[%s792 + $0x10] sm:$0xf]
        %v798 = vld [vmem:[%s792 + $0x14] sm:$0xf]
        %v799 = vld [vmem:[%s792 + $0x18] sm:$0xf]
        %v800 = vld [vmem:[%s792 + $0x1c] sm:$0xf]
        %v809 = vunpack.c.l.b16 %v793
        %v810 = vunpack.c.l.b16 %v794
        %v811 = vunpack.c.l.b16 %v795
        %v812 = vunpack.c.l.b16 %v796
        %v813 = vunpack.c.l.b16 %v797
        %v814 = vunpack.c.l.b16 %v798
        %v815 = vunpack.c.l.b16 %v799
        %v816 = vunpack.c.l.b16 %v800
        %v817 = vpack.c.b16 %v810, %v809
        %v818 = vpack.c.b16 %v812, %v811
        %v819 = vpack.c.b16 %v814, %v813
        %v820 = vpack.c.b16 %v816, %v815
        %v826 = vsel %vm301, %v791, 0
        %828 = vmatprep.subr.bf16.mxu0 0
        %829 = vmatpush1.bf16.msra.mxu0 %v817
        %830 = vmatprep.subr.bf16.mxu0 0
        %831 = vmatpush1.bf16.msra.mxu0 %v818
        %832 = vmatprep.subr.bf16.mxu0 0
        %833 = vmatpush1.bf16.msra.mxu0 %v819
        %834 = vmatprep.subr.bf16.mxu0 0
        %835 = vmatpush1.bf16.msra.mxu0 %v820
        %836 = vmatprep.subr.bf16.mxu0 0
        %837 = vmatpush1.bf16.msra.mxu0 0
        %838 = vmatprep.subr.bf16.mxu0 0
        %839 = vmatpush1.bf16.msra.mxu0 0
        %840 = vmatprep.subr.bf16.mxu0 0
        %841 = vmatpush1.bf16.msra.mxu0 0
        %842 = vmatprep.subr.bf16.mxu0 0
        %843 = vmatpush1.bf16.msra.mxu0 0
        %844 = vmatprep.subr.bf16.mxu0 0
        %845 = vmatpush1.bf16.msra.mxu0 0
        %846 = vmatprep.subr.bf16.mxu0 0
        %847 = vmatpush1.bf16.msra.mxu0 0
        %848 = vmatprep.subr.bf16.mxu0 0
        %849 = vmatpush1.bf16.msra.mxu0 0
        %850 = vmatprep.subr.bf16.mxu0 0
        %851 = vmatpush1.bf16.msra.mxu0 0
        %852 = vmatprep.subr.bf16.mxu0 0
        %853 = vmatpush1.bf16.msra.mxu0 0
        %854 = vmatprep.subr.bf16.mxu0 0
        %855 = vmatpush1.bf16.msra.mxu0 0
        %856 = vmatprep.subr.bf16.mxu0 0
        %857 = vmatpush1.bf16.msra.mxu0 0
        %858 = vmatprep.subr.bf16.mxu0 0
        %859 = vmatpush1.bf16.msra.mxu0 0
        %860 = vmatprep.mubr.bf16.mxu0 0
        %861 = vmatmul.mubr.bf16.gmra.mrb[0].mxu0 %v826
        %v862 = vpop.f32.mrb[0].mxu0
        %v863 = vadd.f32 0.0, %v862
        %v864 = vpop.f32.mrb[0].mxu0
        %v865 = vpop.f32.mrb[0].mxu0
        %v866 = vpop.f32.mrb[0].mxu0
        %867 = vdwg.mxu0
        %v868 = vadd.f32 %v790, %v863
        %869 = vst.msk [vmem:[#allocation2] sm:$0xff] %vm296, %v868
        %s870 = scalar_lea.vmem %s281, 12
        %v871 = vld [vmem:[%s870] sm:$0xf]
        %v872 = vmul.bf16 %v871, 1040203264
        %s873 = scalar_lea.vmem %s287, 12
        %v874 = vld [vmem:[%s873] sm:$0xf]
        %v876 = vsel %vm301, %v872, 0
        %v879 = vsel %vm301, %v874, 0
        %881 = vmatprep.subr.bf16.mxu0 0
        %882 = vmatpush1.bf16.xpose.msra.mxu0 %v879
        %883 = vmatprep.subr.bf16.mxu0 0
        %884 = vmatpush1.bf16.xpose.msra.mxu0 0
        %885 = vmatprep.subr.bf16.mxu0 0
        %886 = vmatpush1.bf16.xpose.msra.mxu0 0
        %887 = vmatprep.subr.bf16.mxu0 0
        %888 = vmatpush1.bf16.xpose.msra.mxu0 0
        %889 = vmatprep.subr.bf16.mxu0 0
        %890 = vmatpush1.bf16.xpose.msra.mxu0 0
        %891 = vmatprep.subr.bf16.mxu0 0
        %892 = vmatpush1.bf16.xpose.msra.mxu0 0
        %893 = vmatprep.subr.bf16.mxu0 0
        %894 = vmatpush1.bf16.xpose.msra.mxu0 0
        %895 = vmatprep.subr.bf16.mxu0 0
        %896 = vmatpush1.bf16.xpose.msra.mxu0 0
        %897 = vmatprep.subr.bf16.mxu0 0
        %898 = vmatpush1.bf16.xpose.msra.mxu0 0
        %899 = vmatprep.subr.bf16.mxu0 0
        %900 = vmatpush1.bf16.xpose.msra.mxu0 0
        %901 = vmatprep.subr.bf16.mxu0 0
        %902 = vmatpush1.bf16.xpose.msra.mxu0 0
        %903 = vmatprep.subr.bf16.mxu0 0
        %904 = vmatpush1.bf16.xpose.msra.mxu0 0
        %905 = vmatprep.subr.bf16.mxu0 0
        %906 = vmatpush1.bf16.xpose.msra.mxu0 0
        %907 = vmatprep.subr.bf16.mxu0 0
        %908 = vmatpush1.bf16.xpose.msra.mxu0 0
        %909 = vmatprep.subr.bf16.mxu0 0
        %910 = vmatpush1.bf16.xpose.msra.mxu0 0
        %911 = vmatprep.subr.bf16.mxu0 0
        %912 = vmatpush1.bf16.xpose.msra.mxu0 0
        %913 = vmatprep.mubr.bf16.mxu0 0
        %914 = vmatmul.mubr.bf16.gmra.mrb[0].mxu0 %v876
        %v915 = vpop.f32.mrb[0].mxu0
        %v916 = vadd.f32 0.0, %v915
        %v917 = vpop.f32.mrb[0].mxu0
        %v918 = vpop.f32.mrb[0].mxu0
        %v919 = vpop.f32.mrb[0].mxu0
        %920 = vdwg.mxu0
        %v921 = vsel %vm348, %v916, -inf
        %922 = vmax.xlane.f32.xlu0 %v921
        %v923 = vpop.xlane.xlu0 %922
        %v924 = vsub.f32 %v916, %v923
        %v925 = vmul.f32 %v924, 1.442695
        %v926 = vpow.pop %v925
        %v927 = vsel %vm348, %v926, 0.0
        %928 = vadd.xlane.f32.xlu0 %v927
        %v929 = vpop.xlane.xlu0 %928
        %v930 = vrcp.pop %v929
        %v931 = vmul.f32 %v926, %v930
        %v932 = vpack.c.bf16 %v931, %v931
        %s933 = scalar_lea.vmem %s293, 12
        %v934 = vld [vmem:[%s933] sm:$0xf]
        %v936 = vsel %vm348, %v932, 0
        %v939 = vsel %vm365, %v934, 0
        %941 = vmatprep.subr.bf16.mxu0 0
        %942 = vmatpush1.bf16.msra.mxu0 %v939
        %943 = vmatprep.subr.bf16.mxu0 0
        %944 = vmatpush1.bf16.msra.mxu0 0
        %945 = vmatprep.subr.bf16.mxu0 0
        %946 = vmatpush1.bf16.msra.mxu0 0
        %947 = vmatprep.subr.bf16.mxu0 0
        %948 = vmatpush1.bf16.msra.mxu0 0
        %949 = vmatprep.subr.bf16.mxu0 0
        %950 = vmatpush1.bf16.msra.mxu0 0
        %951 = vmatprep.subr.bf16.mxu0 0
        %952 = vmatpush1.bf16.msra.mxu0 0
        %953 = vmatprep.subr.bf16.mxu0 0
        %954 = vmatpush1.bf16.msra.mxu0 0
        %955 = vmatprep.subr.bf16.mxu0 0
        %956 = vmatpush1.bf16.msra.mxu0 0
        %957 = vmatprep.subr.bf16.mxu0 0
        %958 = vmatpush1.bf16.msra.mxu0 0
        %959 = vmatprep.subr.bf16.mxu0 0
        %960 = vmatpush1.bf16.msra.mxu0 0
        %961 = vmatprep.subr.bf16.mxu0 0
        %962 = vmatpush1.bf16.msra.mxu0 0
        %963 = vmatprep.subr.bf16.mxu0 0
        %964 = vmatpush1.bf16.msra.mxu0 0
        %965 = vmatprep.subr.bf16.mxu0 0
        %966 = vmatpush1.bf16.msra.mxu0 0
        %967 = vmatprep.subr.bf16.mxu0 0
        %968 = vmatpush1.bf16.msra.mxu0 0
        %969 = vmatprep.subr.bf16.mxu0 0
        %970 = vmatpush1.bf16.msra.mxu0 0
        %971 = vmatprep.subr.bf16.mxu0 0
        %972 = vmatpush1.bf16.msra.mxu0 0
        %973 = vmatprep.mubr.bf16.mxu0 0
        %974 = vmatmul.mubr.bf16.gmra.mrb[0].mxu0 %v936
        %v975 = vpop.f32.mrb[0].mxu0
        %v976 = vadd.f32 0.0, %v975
        %v977 = vpop.f32.mrb[0].mxu0
        %v978 = vpop.f32.mrb[0].mxu0
        %v979 = vpop.f32.mrb[0].mxu0
        %980 = vdwg.mxu0
        %v981 = vld [vmem:[#allocation2] sm:$0xff]
        %v982 = vpack.c.bf16 %v976, %v976
        %s983 = scalar_lea.vmem %s3, 96
        %v984 = vld [vmem:[%s983] sm:$0xf]
        %v985 = vld [vmem:[%s983 + $0x4] sm:$0xf]
        %v986 = vld [vmem:[%s983 + $0x8] sm:$0xf]
        %v987 = vld [vmem:[%s983 + $0xc] sm:$0xf]
        %v988 = vld [vmem:[%s983 + $0x10] sm:$0xf]
        %v989 = vld [vmem:[%s983 + $0x14] sm:$0xf]
        %v990 = vld [vmem:[%s983 + $0x18] sm:$0xf]
        %v991 = vld [vmem:[%s983 + $0x1c] sm:$0xf]
        %v1000 = vunpack.c.l.b16 %v984
        %v1001 = vunpack.c.l.b16 %v985
        %v1002 = vunpack.c.l.b16 %v986
        %v1003 = vunpack.c.l.b16 %v987
        %v1004 = vunpack.c.l.b16 %v988
        %v1005 = vunpack.c.l.b16 %v989
        %v1006 = vunpack.c.l.b16 %v990
        %v1007 = vunpack.c.l.b16 %v991
        %v1008 = vpack.c.b16 %v1001, %v1000
        %v1009 = vpack.c.b16 %v1003, %v1002
        %v1010 = vpack.c.b16 %v1005, %v1004
        %v1011 = vpack.c.b16 %v1007, %v1006
        %v1017 = vsel %vm301, %v982, 0
        %1019 = vmatprep.subr.bf16.mxu0 0
        %1020 = vmatpush1.bf16.msra.mxu0 %v1008
        %1021 = vmatprep.subr.bf16.mxu0 0
        %1022 = vmatpush1.bf16.msra.mxu0 %v1009
        %1023 = vmatprep.subr.bf16.mxu0 0
        %1024 = vmatpush1.bf16.msra.mxu0 %v1010
        %1025 = vmatprep.subr.bf16.mxu0 0
        %1026 = vmatpush1.bf16.msra.mxu0 %v1011
        %1027 = vmatprep.subr.bf16.mxu0 0
        %1028 = vmatpush1.bf16.msra.mxu0 0
        %1029 = vmatprep.subr.bf16.mxu0 0
        %1030 = vmatpush1.bf16.msra.mxu0 0
        %1031 = vmatprep.subr.bf16.mxu0 0
        %1032 = vmatpush1.bf16.msra.mxu0 0
        %1033 = vmatprep.subr.bf16.mxu0 0
        %1034 = vmatpush1.bf16.msra.mxu0 0
        %1035 = vmatprep.subr.bf16.mxu0 0
        %1036 = vmatpush1.bf16.msra.mxu0 0
        %1037 = vmatprep.subr.bf16.mxu0 0
        %1038 = vmatpush1.bf16.msra.mxu0 0
        %1039 = vmatprep.subr.bf16.mxu0 0
        %1040 = vmatpush1.bf16.msra.mxu0 0
        %1041 = vmatprep.subr.bf16.mxu0 0
        %1042 = vmatpush1.bf16.msra.mxu0 0
        %1043 = vmatprep.subr.bf16.mxu0 0
        %1044 = vmatpush1.bf16.msra.mxu0 0
        %1045 = vmatprep.subr.bf16.mxu0 0
        %1046 = vmatpush1.bf16.msra.mxu0 0
        %1047 = vmatprep.subr.bf16.mxu0 0
        %1048 = vmatpush1.bf16.msra.mxu0 0
        %1049 = vmatprep.subr.bf16.mxu0 0
        %1050 = vmatpush1.bf16.msra.mxu0 0
        %1051 = vmatprep.mubr.bf16.mxu0 0
        %1052 = vmatmul.mubr.bf16.gmra.mrb[0].mxu0 %v1017
        %v1053 = vpop.f32.mrb[0].mxu0
        %v1054 = vadd.f32 0.0, %v1053
        %v1055 = vpop.f32.mrb[0].mxu0
        %v1056 = vpop.f32.mrb[0].mxu0
        %v1057 = vpop.f32.mrb[0].mxu0
        %1058 = vdwg.mxu0
        %v1059 = vadd.f32 %v981, %v1054
        %1060 = vst.msk [vmem:[#allocation2] sm:$0xff] %vm296, %v1059
        %s1061 = scalar_lea.vmem %s281, 16
        %v1062 = vld [vmem:[%s1061] sm:$0xf]
        %v1063 = vmul.bf16 %v1062, 1040203264
        %s1064 = scalar_lea.vmem %s287, 16
        %v1065 = vld [vmem:[%s1064] sm:$0xf]
        %v1067 = vsel %vm301, %v1063, 0
        %v1070 = vsel %vm301, %v1065, 0
        %1072 = vmatprep.subr.bf16.mxu0 0
        %1073 = vmatpush1.bf16.xpose.msra.mxu0 %v1070
        %1074 = vmatprep.subr.bf16.mxu0 0
        %1075 = vmatpush1.bf16.xpose.msra.mxu0 0
        %1076 = vmatprep.subr.bf16.mxu0 0
        %1077 = vmatpush1.bf16.xpose.msra.mxu0 0
        %1078 = vmatprep.subr.bf16.mxu0 0
        %1079 = vmatpush1.bf16.xpose.msra.mxu0 0
        %1080 = vmatprep.subr.bf16.mxu0 0
        %1081 = vmatpush1.bf16.xpose.msra.mxu0 0
        %1082 = vmatprep.subr.bf16.mxu0 0
        %1083 = vmatpush1.bf16.xpose.msra.mxu0 0
        %1084 = vmatprep.subr.bf16.mxu0 0
        %1085 = vmatpush1.bf16.xpose.msra.mxu0 0
        %1086 = vmatprep.subr.bf16.mxu0 0
        %1087 = vmatpush1.bf16.xpose.msra.mxu0 0
        %1088 = vmatprep.subr.bf16.mxu0 0
        %1089 = vmatpush1.bf16.xpose.msra.mxu0 0
        %1090 = vmatprep.subr.bf16.mxu0 0
        %1091 = vmatpush1.bf16.xpose.msra.mxu0 0
        %1092 = vmatprep.subr.bf16.mxu0 0
        %1093 = vmatpush1.bf16.xpose.msra.mxu0 0
        %1094 = vmatprep.subr.bf16.mxu0 0
        %1095 = vmatpush1.bf16.xpose.msra.mxu0 0
        %1096 = vmatprep.subr.bf16.mxu0 0
        %1097 = vmatpush1.bf16.xpose.msra.mxu0 0
        %1098 = vmatprep.subr.bf16.mxu0 0
        %1099 = vmatpush1.bf16.xpose.msra.mxu0 0
        %1100 = vmatprep.subr.bf16.mxu0 0
        %1101 = vmatpush1.bf16.xpose.msra.mxu0 0
        %1102 = vmatprep.subr.bf16.mxu0 0
        %1103 = vmatpush1.bf16.xpose.msra.mxu0 0
        %1104 = vmatprep.mubr.bf16.mxu0 0
        %1105 = vmatmul.mubr.bf16.gmra.mrb[0].mxu0 %v1067
        %v1106 = vpop.f32.mrb[0].mxu0
        %v1107 = vadd.f32 0.0, %v1106
        %v1108 = vpop.f32.mrb[0].mxu0
        %v1109 = vpop.f32.mrb[0].mxu0
        %v1110 = vpop.f32.mrb[0].mxu0
        %1111 = vdwg.mxu0
        %v1112 = vsel %vm348, %v1107, -inf
        %1113 = vmax.xlane.f32.xlu0 %v1112
        %v1114 = vpop.xlane.xlu0 %1113
        %v1115 = vsub.f32 %v1107, %v1114
        %v1116 = vmul.f32 %v1115, 1.442695
        %v1117 = vpow.pop %v1116
        %v1118 = vsel %vm348, %v1117, 0.0
        %1119 = vadd.xlane.f32.xlu0 %v1118
        %v1120 = vpop.xlane.xlu0 %1119
        %v1121 = vrcp.pop %v1120
        %v1122 = vmul.f32 %v1117, %v1121
        %v1123 = vpack.c.bf16 %v1122, %v1122
        %s1124 = scalar_lea.vmem %s293, 16
        %v1125 = vld [vmem:[%s1124] sm:$0xf]
        %v1127 = vsel %vm348, %v1123, 0
        %v1130 = vsel %vm365, %v1125, 0
        %1132 = vmatprep.subr.bf16.mxu0 0
        %1133 = vmatpush1.bf16.msra.mxu0 %v1130
        %1134 = vmatprep.subr.bf16.mxu0 0
        %1135 = vmatpush1.bf16.msra.mxu0 0
        %1136 = vmatprep.subr.bf16.mxu0 0
        %1137 = vmatpush1.bf16.msra.mxu0 0
        %1138 = vmatprep.subr.bf16.mxu0 0
        %1139 = vmatpush1.bf16.msra.mxu0 0
        %1140 = vmatprep.subr.bf16.mxu0 0
        %1141 = vmatpush1.bf16.msra.mxu0 0
        %1142 = vmatprep.subr.bf16.mxu0 0
        %1143 = vmatpush1.bf16.msra.mxu0 0
        %1144 = vmatprep.subr.bf16.mxu0 0
        %1145 = vmatpush1.bf16.msra.mxu0 0
        %1146 = vmatprep.subr.bf16.mxu0 0
        %1147 = vmatpush1.bf16.msra.mxu0 0
        %1148 = vmatprep.subr.bf16.mxu0 0
        %1149 = vmatpush1.bf16.msra.mxu0 0
        %1150 = vmatprep.subr.bf16.mxu0 0
        %1151 = vmatpush1.bf16.msra.mxu0 0
        %1152 = vmatprep.subr.bf16.mxu0 0
        %1153 = vmatpush1.bf16.msra.mxu0 0
        %1154 = vmatprep.subr.bf16.mxu0 0
        %1155 = vmatpush1.bf16.msra.mxu0 0
        %1156 = vmatprep.subr.bf16.mxu0 0
        %1157 = vmatpush1.bf16.msra.mxu0 0
        %1158 = vmatprep.subr.bf16.mxu0 0
        %1159 = vmatpush1.bf16.msra.mxu0 0
        %1160 = vmatprep.subr.bf16.mxu0 0
        %1161 = vmatpush1.bf16.msra.mxu0 0
        %1162 = vmatprep.subr.bf16.mxu0 0
        %1163 = vmatpush1.bf16.msra.mxu0 0
        %1164 = vmatprep.mubr.bf16.mxu0 0
        %1165 = vmatmul.mubr.bf16.gmra.mrb[0].mxu0 %v1127
        %v1166 = vpop.f32.mrb[0].mxu0
        %v1167 = vadd.f32 0.0, %v1166
        %v1168 = vpop.f32.mrb[0].mxu0
        %v1169 = vpop.f32.mrb[0].mxu0
        %v1170 = vpop.f32.mrb[0].mxu0
        %1171 = vdwg.mxu0
        %v1172 = vld [vmem:[#allocation2] sm:$0xff]
        %v1173 = vpack.c.bf16 %v1167, %v1167
        %s1174 = scalar_lea.vmem %s3, 128
        %v1175 = vld [vmem:[%s1174] sm:$0xf]
        %v1176 = vld [vmem:[%s1174 + $0x4] sm:$0xf]
        %v1177 = vld [vmem:[%s1174 + $0x8] sm:$0xf]
        %v1178 = vld [vmem:[%s1174 + $0xc] sm:$0xf]
        %v1179 = vld [vmem:[%s1174 + $0x10] sm:$0xf]
        %v1180 = vld [vmem:[%s1174 + $0x14] sm:$0xf]
        %v1181 = vld [vmem:[%s1174 + $0x18] sm:$0xf]
        %v1182 = vld [vmem:[%s1174 + $0x1c] sm:$0xf]
        %v1191 = vunpack.c.l.b16 %v1175
        %v1192 = vunpack.c.l.b16 %v1176
        %v1193 = vunpack.c.l.b16 %v1177
        %v1194 = vunpack.c.l.b16 %v1178
        %v1195 = vunpack.c.l.b16 %v1179
        %v1196 = vunpack.c.l.b16 %v1180
        %v1197 = vunpack.c.l.b16 %v1181
        %v1198 = vunpack.c.l.b16 %v1182
        %v1199 = vpack.c.b16 %v1192, %v1191
        %v1200 = vpack.c.b16 %v1194, %v1193
        %v1201 = vpack.c.b16 %v1196, %v1195
        %v1202 = vpack.c.b16 %v1198, %v1197
        %v1208 = vsel %vm301, %v1173, 0
        %1210 = vmatprep.subr.bf16.mxu0 0
        %1211 = vmatpush1.bf16.msra.mxu0 %v1199
        %1212 = vmatprep.subr.bf16.mxu0 0
        %1213 = vmatpush1.bf16.msra.mxu0 %v1200
        %1214 = vmatprep.subr.bf16.mxu0 0
        %1215 = vmatpush1.bf16.msra.mxu0 %v1201
        %1216 = vmatprep.subr.bf16.mxu0 0
        %1217 = vmatpush1.bf16.msra.mxu0 %v1202
        %1218 = vmatprep.subr.bf16.mxu0 0
        %1219 = vmatpush1.bf16.msra.mxu0 0
        %1220 = vmatprep.subr.bf16.mxu0 0
        %1221 = vmatpush1.bf16.msra.mxu0 0
        %1222 = vmatprep.subr.bf16.mxu0 0
        %1223 = vmatpush1.bf16.msra.mxu0 0
        %1224 = vmatprep.subr.bf16.mxu0 0
        %1225 = vmatpush1.bf16.msra.mxu0 0
        %1226 = vmatprep.subr.bf16.mxu0 0
        %1227 = vmatpush1.bf16.msra.mxu0 0
        %1228 = vmatprep.subr.bf16.mxu0 0
        %1229 = vmatpush1.bf16.msra.mxu0 0
        %1230 = vmatprep.subr.bf16.mxu0 0
        %1231 = vmatpush1.bf16.msra.mxu0 0
        %1232 = vmatprep.subr.bf16.mxu0 0
        %1233 = vmatpush1.bf16.msra.mxu0 0
        %1234 = vmatprep.subr.bf16.mxu0 0
        %1235 = vmatpush1.bf16.msra.mxu0 0
        %1236 = vmatprep.subr.bf16.mxu0 0
        %1237 = vmatpush1.bf16.msra.mxu0 0
        %1238 = vmatprep.subr.bf16.mxu0 0
        %1239 = vmatpush1.bf16.msra.mxu0 0
        %1240 = vmatprep.subr.bf16.mxu0 0
        %1241 = vmatpush1.bf16.msra.mxu0 0
        %1242 = vmatprep.mubr.bf16.mxu0 0
        %1243 = vmatmul.mubr.bf16.gmra.mrb[0].mxu0 %v1208
        %v1244 = vpop.f32.mrb[0].mxu0
        %v1245 = vadd.f32 0.0, %v1244
        %v1246 = vpop.f32.mrb[0].mxu0
        %v1247 = vpop.f32.mrb[0].mxu0
        %v1248 = vpop.f32.mrb[0].mxu0
        %1249 = vdwg.mxu0
        %v1250 = vadd.f32 %v1172, %v1245
        %1251 = vst.msk [vmem:[#allocation2] sm:$0xff] %vm296, %v1250
        %s1252 = scalar_lea.vmem %s281, 20
        %v1253 = vld [vmem:[%s1252] sm:$0xf]
        %v1254 = vmul.bf16 %v1253, 1040203264
        %s1255 = scalar_lea.vmem %s287, 20
        %v1256 = vld [vmem:[%s1255] sm:$0xf]
        %v1258 = vsel %vm301, %v1254, 0
        %v1261 = vsel %vm301, %v1256, 0
        %1263 = vmatprep.subr.bf16.mxu0 0
        %1264 = vmatpush1.bf16.xpose.msra.mxu0 %v1261
        %1265 = vmatprep.subr.bf16.mxu0 0
        %1266 = vmatpush1.bf16.xpose.msra.mxu0 0
        %1267 = vmatprep.subr.bf16.mxu0 0
        %1268 = vmatpush1.bf16.xpose.msra.mxu0 0
        %1269 = vmatprep.subr.bf16.mxu0 0
        %1270 = vmatpush1.bf16.xpose.msra.mxu0 0
        %1271 = vmatprep.subr.bf16.mxu0 0
        %1272 = vmatpush1.bf16.xpose.msra.mxu0 0
        %1273 = vmatprep.subr.bf16.mxu0 0
        %1274 = vmatpush1.bf16.xpose.msra.mxu0 0
        %1275 = vmatprep.subr.bf16.mxu0 0
        %1276 = vmatpush1.bf16.xpose.msra.mxu0 0
        %1277 = vmatprep.subr.bf16.mxu0 0
        %1278 = vmatpush1.bf16.xpose.msra.mxu0 0
        %1279 = vmatprep.subr.bf16.mxu0 0
        %1280 = vmatpush1.bf16.xpose.msra.mxu0 0
        %1281 = vmatprep.subr.bf16.mxu0 0
        %1282 = vmatpush1.bf16.xpose.msra.mxu0 0
        %1283 = vmatprep.subr.bf16.mxu0 0
        %1284 = vmatpush1.bf16.xpose.msra.mxu0 0
        %1285 = vmatprep.subr.bf16.mxu0 0
        %1286 = vmatpush1.bf16.xpose.msra.mxu0 0
        %1287 = vmatprep.subr.bf16.mxu0 0
        %1288 = vmatpush1.bf16.xpose.msra.mxu0 0
        %1289 = vmatprep.subr.bf16.mxu0 0
        %1290 = vmatpush1.bf16.xpose.msra.mxu0 0
        %1291 = vmatprep.subr.bf16.mxu0 0
        %1292 = vmatpush1.bf16.xpose.msra.mxu0 0
        %1293 = vmatprep.subr.bf16.mxu0 0
        %1294 = vmatpush1.bf16.xpose.msra.mxu0 0
        %1295 = vmatprep.mubr.bf16.mxu0 0
        %1296 = vmatmul.mubr.bf16.gmra.mrb[0].mxu0 %v1258
        %v1297 = vpop.f32.mrb[0].mxu0
        %v1298 = vadd.f32 0.0, %v1297
        %v1299 = vpop.f32.mrb[0].mxu0
        %v1300 = vpop.f32.mrb[0].mxu0
        %v1301 = vpop.f32.mrb[0].mxu0
        %1302 = vdwg.mxu0
        %v1303 = vsel %vm348, %v1298, -inf
        %1304 = vmax.xlane.f32.xlu0 %v1303
        %v1305 = vpop.xlane.xlu0 %1304
        %v1306 = vsub.f32 %v1298, %v1305
        %v1307 = vmul.f32 %v1306, 1.442695
        %v1308 = vpow.pop %v1307
        %v1309 = vsel %vm348, %v1308, 0.0
        %1310 = vadd.xlane.f32.xlu0 %v1309
        %v1311 = vpop.xlane.xlu0 %1310
        %v1312 = vrcp.pop %v1311
        %v1313 = vmul.f32 %v1308, %v1312
        %v1314 = vpack.c.bf16 %v1313, %v1313
        %s1315 = scalar_lea.vmem %s293, 20
        %v1316 = vld [vmem:[%s1315] sm:$0xf]
        %v1318 = vsel %vm348, %v1314, 0
        %v1321 = vsel %vm365, %v1316, 0
        %1323 = vmatprep.subr.bf16.mxu0 0
        %1324 = vmatpush1.bf16.msra.mxu0 %v1321
        %1325 = vmatprep.subr.bf16.mxu0 0
        %1326 = vmatpush1.bf16.msra.mxu0 0
        %1327 = vmatprep.subr.bf16.mxu0 0
        %1328 = vmatpush1.bf16.msra.mxu0 0
        %1329 = vmatprep.subr.bf16.mxu0 0
        %1330 = vmatpush1.bf16.msra.mxu0 0
        %1331 = vmatprep.subr.bf16.mxu0 0
        %1332 = vmatpush1.bf16.msra.mxu0 0
        %1333 = vmatprep.subr.bf16.mxu0 0
        %1334 = vmatpush1.bf16.msra.mxu0 0
        %1335 = vmatprep.subr.bf16.mxu0 0
        %1336 = vmatpush1.bf16.msra.mxu0 0
        %1337 = vmatprep.subr.bf16.mxu0 0
        %1338 = vmatpush1.bf16.msra.mxu0 0
        %1339 = vmatprep.subr.bf16.mxu0 0
        %1340 = vmatpush1.bf16.msra.mxu0 0
        %1341 = vmatprep.subr.bf16.mxu0 0
        %1342 = vmatpush1.bf16.msra.mxu0 0
        %1343 = vmatprep.subr.bf16.mxu0 0
        %1344 = vmatpush1.bf16.msra.mxu0 0
        %1345 = vmatprep.subr.bf16.mxu0 0
        %1346 = vmatpush1.bf16.msra.mxu0 0
        %1347 = vmatprep.subr.bf16.mxu0 0
        %1348 = vmatpush1.bf16.msra.mxu0 0
        %1349 = vmatprep.subr.bf16.mxu0 0
        %1350 = vmatpush1.bf16.msra.mxu0 0
        %1351 = vmatprep.subr.bf16.mxu0 0
        %1352 = vmatpush1.bf16.msra.mxu0 0
        %1353 = vmatprep.subr.bf16.mxu0 0
        %1354 = vmatpush1.bf16.msra.mxu0 0
        %1355 = vmatprep.mubr.bf16.mxu0 0
        %1356 = vmatmul.mubr.bf16.gmra.mrb[0].mxu0 %v1318
        %v1357 = vpop.f32.mrb[0].mxu0
        %v1358 = vadd.f32 0.0, %v1357
        %v1359 = vpop.f32.mrb[0].mxu0
        %v1360 = vpop.f32.mrb[0].mxu0
        %v1361 = vpop.f32.mrb[0].mxu0
        %1362 = vdwg.mxu0
        %v1363 = vld [vmem:[#allocation2] sm:$0xff]
        %v1364 = vpack.c.bf16 %v1358, %v1358
        %s1365 = scalar_lea.vmem %s3, 160
        %v1366 = vld [vmem:[%s1365] sm:$0xf]
        %v1367 = vld [vmem:[%s1365 + $0x4] sm:$0xf]
        %v1368 = vld [vmem:[%s1365 + $0x8] sm:$0xf]
        %v1369 = vld [vmem:[%s1365 + $0xc] sm:$0xf]
        %v1370 = vld [vmem:[%s1365 + $0x10] sm:$0xf]
        %v1371 = vld [vmem:[%s1365 + $0x14] sm:$0xf]
        %v1372 = vld [vmem:[%s1365 + $0x18] sm:$0xf]
        %v1373 = vld [vmem:[%s1365 + $0x1c] sm:$0xf]
        %v1382 = vunpack.c.l.b16 %v1366
        %v1383 = vunpack.c.l.b16 %v1367
        %v1384 = vunpack.c.l.b16 %v1368
        %v1385 = vunpack.c.l.b16 %v1369
        %v1386 = vunpack.c.l.b16 %v1370
        %v1387 = vunpack.c.l.b16 %v1371
        %v1388 = vunpack.c.l.b16 %v1372
        %v1389 = vunpack.c.l.b16 %v1373
        %v1390 = vpack.c.b16 %v1383, %v1382
        %v1391 = vpack.c.b16 %v1385, %v1384
        %v1392 = vpack.c.b16 %v1387, %v1386
        %v1393 = vpack.c.b16 %v1389, %v1388
        %v1399 = vsel %vm301, %v1364, 0
        %1401 = vmatprep.subr.bf16.mxu0 0
        %1402 = vmatpush1.bf16.msra.mxu0 %v1390
        %1403 = vmatprep.subr.bf16.mxu0 0
        %1404 = vmatpush1.bf16.msra.mxu0 %v1391
        %1405 = vmatprep.subr.bf16.mxu0 0
        %1406 = vmatpush1.bf16.msra.mxu0 %v1392
        %1407 = vmatprep.subr.bf16.mxu0 0
        %1408 = vmatpush1.bf16.msra.mxu0 %v1393
        %1409 = vmatprep.subr.bf16.mxu0 0
        %1410 = vmatpush1.bf16.msra.mxu0 0
        %1411 = vmatprep.subr.bf16.mxu0 0
        %1412 = vmatpush1.bf16.msra.mxu0 0
        %1413 = vmatprep.subr.bf16.mxu0 0
        %1414 = vmatpush1.bf16.msra.mxu0 0
        %1415 = vmatprep.subr.bf16.mxu0 0
        %1416 = vmatpush1.bf16.msra.mxu0 0
        %1417 = vmatprep.subr.bf16.mxu0 0
        %1418 = vmatpush1.bf16.msra.mxu0 0
        %1419 = vmatprep.subr.bf16.mxu0 0
        %1420 = vmatpush1.bf16.msra.mxu0 0
        %1421 = vmatprep.subr.bf16.mxu0 0
        %1422 = vmatpush1.bf16.msra.mxu0 0
        %1423 = vmatprep.subr.bf16.mxu0 0
        %1424 = vmatpush1.bf16.msra.mxu0 0
        %1425 = vmatprep.subr.bf16.mxu0 0
        %1426 = vmatpush1.bf16.msra.mxu0 0
        %1427 = vmatprep.subr.bf16.mxu0 0
        %1428 = vmatpush1.bf16.msra.mxu0 0
        %1429 = vmatprep.subr.bf16.mxu0 0
        %1430 = vmatpush1.bf16.msra.mxu0 0
        %1431 = vmatprep.subr.bf16.mxu0 0
        %1432 = vmatpush1.bf16.msra.mxu0 0
        %1433 = vmatprep.mubr.bf16.mxu0 0
        %1434 = vmatmul.mubr.bf16.gmra.mrb[0].mxu0 %v1399
        %v1435 = vpop.f32.mrb[0].mxu0
        %v1436 = vadd.f32 0.0, %v1435
        %v1437 = vpop.f32.mrb[0].mxu0
        %v1438 = vpop.f32.mrb[0].mxu0
        %v1439 = vpop.f32.mrb[0].mxu0
        %1440 = vdwg.mxu0
        %v1441 = vadd.f32 %v1363, %v1436
        %1442 = vst.msk [vmem:[#allocation2] sm:$0xff] %vm296, %v1441
        %s1443 = scalar_lea.vmem %s281, 24
        %v1444 = vld [vmem:[%s1443] sm:$0xf]
        %v1445 = vmul.bf16 %v1444, 1040203264
        %s1446 = scalar_lea.vmem %s287, 24
        %v1447 = vld [vmem:[%s1446] sm:$0xf]
        %v1449 = vsel %vm301, %v1445, 0
        %v1452 = vsel %vm301, %v1447, 0
        %1454 = vmatprep.subr.bf16.mxu0 0
        %1455 = vmatpush1.bf16.xpose.msra.mxu0 %v1452
        %1456 = vmatprep.subr.bf16.mxu0 0
        %1457 = vmatpush1.bf16.xpose.msra.mxu0 0
        %1458 = vmatprep.subr.bf16.mxu0 0
        %1459 = vmatpush1.bf16.xpose.msra.mxu0 0
        %1460 = vmatprep.subr.bf16.mxu0 0
        %1461 = vmatpush1.bf16.xpose.msra.mxu0 0
        %1462 = vmatprep.subr.bf16.mxu0 0
        %1463 = vmatpush1.bf16.xpose.msra.mxu0 0
        %1464 = vmatprep.subr.bf16.mxu0 0
        %1465 = vmatpush1.bf16.xpose.msra.mxu0 0
        %1466 = vmatprep.subr.bf16.mxu0 0
        %1467 = vmatpush1.bf16.xpose.msra.mxu0 0
        %1468 = vmatprep.subr.bf16.mxu0 0
        %1469 = vmatpush1.bf16.xpose.msra.mxu0 0
        %1470 = vmatprep.subr.bf16.mxu0 0
        %1471 = vmatpush1.bf16.xpose.msra.mxu0 0
        %1472 = vmatprep.subr.bf16.mxu0 0
        %1473 = vmatpush1.bf16.xpose.msra.mxu0 0
        %1474 = vmatprep.subr.bf16.mxu0 0
        %1475 = vmatpush1.bf16.xpose.msra.mxu0 0
        %1476 = vmatprep.subr.bf16.mxu0 0
        %1477 = vmatpush1.bf16.xpose.msra.mxu0 0
        %1478 = vmatprep.subr.bf16.mxu0 0
        %1479 = vmatpush1.bf16.xpose.msra.mxu0 0
        %1480 = vmatprep.subr.bf16.mxu0 0
        %1481 = vmatpush1.bf16.xpose.msra.mxu0 0
        %1482 = vmatprep.subr.bf16.mxu0 0
        %1483 = vmatpush1.bf16.xpose.msra.mxu0 0
        %1484 = vmatprep.subr.bf16.mxu0 0
        %1485 = vmatpush1.bf16.xpose.msra.mxu0 0
        %1486 = vmatprep.mubr.bf16.mxu0 0
        %1487 = vmatmul.mubr.bf16.gmra.mrb[0].mxu0 %v1449
        %v1488 = vpop.f32.mrb[0].mxu0
        %v1489 = vadd.f32 0.0, %v1488
        %v1490 = vpop.f32.mrb[0].mxu0
        %v1491 = vpop.f32.mrb[0].mxu0
        %v1492 = vpop.f32.mrb[0].mxu0
        %1493 = vdwg.mxu0
        %v1494 = vsel %vm348, %v1489, -inf
        %1495 = vmax.xlane.f32.xlu0 %v1494
        %v1496 = vpop.xlane.xlu0 %1495
        %v1497 = vsub.f32 %v1489, %v1496
        %v1498 = vmul.f32 %v1497, 1.442695
        %v1499 = vpow.pop %v1498
        %v1500 = vsel %vm348, %v1499, 0.0
        %1501 = vadd.xlane.f32.xlu0 %v1500
        %v1502 = vpop.xlane.xlu0 %1501
        %v1503 = vrcp.pop %v1502
        %v1504 = vmul.f32 %v1499, %v1503
        %v1505 = vpack.c.bf16 %v1504, %v1504
        %s1506 = scalar_lea.vmem %s293, 24
        %v1507 = vld [vmem:[%s1506] sm:$0xf]
        %v1509 = vsel %vm348, %v1505, 0
        %v1512 = vsel %vm365, %v1507, 0
        %1514 = vmatprep.subr.bf16.mxu0 0
        %1515 = vmatpush1.bf16.msra.mxu0 %v1512
        %1516 = vmatprep.subr.bf16.mxu0 0
        %1517 = vmatpush1.bf16.msra.mxu0 0
        %1518 = vmatprep.subr.bf16.mxu0 0
        %1519 = vmatpush1.bf16.msra.mxu0 0
        %1520 = vmatprep.subr.bf16.mxu0 0
        %1521 = vmatpush1.bf16.msra.mxu0 0
        %1522 = vmatprep.subr.bf16.mxu0 0
        %1523 = vmatpush1.bf16.msra.mxu0 0
        %1524 = vmatprep.subr.bf16.mxu0 0
        %1525 = vmatpush1.bf16.msra.mxu0 0
        %1526 = vmatprep.subr.bf16.mxu0 0
        %1527 = vmatpush1.bf16.msra.mxu0 0
        %1528 = vmatprep.subr.bf16.mxu0 0
        %1529 = vmatpush1.bf16.msra.mxu0 0
        %1530 = vmatprep.subr.bf16.mxu0 0
        %1531 = vmatpush1.bf16.msra.mxu0 0
        %1532 = vmatprep.subr.bf16.mxu0 0
        %1533 = vmatpush1.bf16.msra.mxu0 0
        %1534 = vmatprep.subr.bf16.mxu0 0
        %1535 = vmatpush1.bf16.msra.mxu0 0
        %1536 = vmatprep.subr.bf16.mxu0 0
        %1537 = vmatpush1.bf16.msra.mxu0 0
        %1538 = vmatprep.subr.bf16.mxu0 0
        %1539 = vmatpush1.bf16.msra.mxu0 0
        %1540 = vmatprep.subr.bf16.mxu0 0
        %1541 = vmatpush1.bf16.msra.mxu0 0
        %1542 = vmatprep.subr.bf16.mxu0 0
        %1543 = vmatpush1.bf16.msra.mxu0 0
        %1544 = vmatprep.subr.bf16.mxu0 0
        %1545 = vmatpush1.bf16.msra.mxu0 0
        %1546 = vmatprep.mubr.bf16.mxu0 0
        %1547 = vmatmul.mubr.bf16.gmra.mrb[0].mxu0 %v1509
        %v1548 = vpop.f32.mrb[0].mxu0
        %v1549 = vadd.f32 0.0, %v1548
        %v1550 = vpop.f32.mrb[0].mxu0
        %v1551 = vpop.f32.mrb[0].mxu0
        %v1552 = vpop.f32.mrb[0].mxu0
        %1553 = vdwg.mxu0
        %v1554 = vld [vmem:[#allocation2] sm:$0xff]
        %v1555 = vpack.c.bf16 %v1549, %v1549
        %s1556 = scalar_lea.vmem %s3, 192
        %v1557 = vld [vmem:[%s1556] sm:$0xf]
        %v1558 = vld [vmem:[%s1556 + $0x4] sm:$0xf]
        %v1559 = vld [vmem:[%s1556 + $0x8] sm:$0xf]
        %v1560 = vld [vmem:[%s1556 + $0xc] sm:$0xf]
        %v1561 = vld [vmem:[%s1556 + $0x10] sm:$0xf]
        %v1562 = vld [vmem:[%s1556 + $0x14] sm:$0xf]
        %v1563 = vld [vmem:[%s1556 + $0x18] sm:$0xf]
        %v1564 = vld [vmem:[%s1556 + $0x1c] sm:$0xf]
        %v1573 = vunpack.c.l.b16 %v1557
        %v1574 = vunpack.c.l.b16 %v1558
        %v1575 = vunpack.c.l.b16 %v1559
        %v1576 = vunpack.c.l.b16 %v1560
        %v1577 = vunpack.c.l.b16 %v1561
        %v1578 = vunpack.c.l.b16 %v1562
        %v1579 = vunpack.c.l.b16 %v1563
        %v1580 = vunpack.c.l.b16 %v1564
        %v1581 = vpack.c.b16 %v1574, %v1573
        %v1582 = vpack.c.b16 %v1576, %v1575
        %v1583 = vpack.c.b16 %v1578, %v1577
        %v1584 = vpack.c.b16 %v1580, %v1579
        %v1590 = vsel %vm301, %v1555, 0
        %1592 = vmatprep.subr.bf16.mxu0 0
        %1593 = vmatpush1.bf16.msra.mxu0 %v1581
        %1594 = vmatprep.subr.bf16.mxu0 0
        %1595 = vmatpush1.bf16.msra.mxu0 %v1582
        %1596 = vmatprep.subr.bf16.mxu0 0
        %1597 = vmatpush1.bf16.msra.mxu0 %v1583
        %1598 = vmatprep.subr.bf16.mxu0 0
        %1599 = vmatpush1.bf16.msra.mxu0 %v1584
        %1600 = vmatprep.subr.bf16.mxu0 0
        %1601 = vmatpush1.bf16.msra.mxu0 0
        %1602 = vmatprep.subr.bf16.mxu0 0
        %1603 = vmatpush1.bf16.msra.mxu0 0
        %1604 = vmatprep.subr.bf16.mxu0 0
        %1605 = vmatpush1.bf16.msra.mxu0 0
        %1606 = vmatprep.subr.bf16.mxu0 0
        %1607 = vmatpush1.bf16.msra.mxu0 0
        %1608 = vmatprep.subr.bf16.mxu0 0
        %1609 = vmatpush1.bf16.msra.mxu0 0
        %1610 = vmatprep.subr.bf16.mxu0 0
        %1611 = vmatpush1.bf16.msra.mxu0 0
        %1612 = vmatprep.subr.bf16.mxu0 0
        %1613 = vmatpush1.bf16.msra.mxu0 0
        %1614 = vmatprep.subr.bf16.mxu0 0
        %1615 = vmatpush1.bf16.msra.mxu0 0
        %1616 = vmatprep.subr.bf16.mxu0 0
        %1617 = vmatpush1.bf16.msra.mxu0 0
        %1618 = vmatprep.subr.bf16.mxu0 0
        %1619 = vmatpush1.bf16.msra.mxu0 0
        %1620 = vmatprep.subr.bf16.mxu0 0
        %1621 = vmatpush1.bf16.msra.mxu0 0
        %1622 = vmatprep.subr.bf16.mxu0 0
        %1623 = vmatpush1.bf16.msra.mxu0 0
        %1624 = vmatprep.mubr.bf16.mxu0 0
        %1625 = vmatmul.mubr.bf16.gmra.mrb[0].mxu0 %v1590
        %v1626 = vpop.f32.mrb[0].mxu0
        %v1627 = vadd.f32 0.0, %v1626
        %v1628 = vpop.f32.mrb[0].mxu0
        %v1629 = vpop.f32.mrb[0].mxu0
        %v1630 = vpop.f32.mrb[0].mxu0
        %1631 = vdwg.mxu0
        %v1632 = vadd.f32 %v1554, %v1627
        %1633 = vst.msk [vmem:[#allocation2] sm:$0xff] %vm296, %v1632
        %s1634 = scalar_lea.vmem %s281, 28
        %v1635 = vld [vmem:[%s1634] sm:$0xf]
        %v1636 = vmul.bf16 %v1635, 1040203264
        %s1637 = scalar_lea.vmem %s287, 28
        %v1638 = vld [vmem:[%s1637] sm:$0xf]
        %v1640 = vsel %vm301, %v1636, 0
        %v1643 = vsel %vm301, %v1638, 0
        %1645 = vmatprep.subr.bf16.mxu0 0
        %1646 = vmatpush1.bf16.xpose.msra.mxu0 %v1643
        %1647 = vmatprep.subr.bf16.mxu0 0
        %1648 = vmatpush1.bf16.xpose.msra.mxu0 0
        %1649 = vmatprep.subr.bf16.mxu0 0
        %1650 = vmatpush1.bf16.xpose.msra.mxu0 0
        %1651 = vmatprep.subr.bf16.mxu0 0
        %1652 = vmatpush1.bf16.xpose.msra.mxu0 0
        %1653 = vmatprep.subr.bf16.mxu0 0
        %1654 = vmatpush1.bf16.xpose.msra.mxu0 0
        %1655 = vmatprep.subr.bf16.mxu0 0
        %1656 = vmatpush1.bf16.xpose.msra.mxu0 0
        %1657 = vmatprep.subr.bf16.mxu0 0
        %1658 = vmatpush1.bf16.xpose.msra.mxu0 0
        %1659 = vmatprep.subr.bf16.mxu0 0
        %1660 = vmatpush1.bf16.xpose.msra.mxu0 0
        %1661 = vmatprep.subr.bf16.mxu0 0
        %1662 = vmatpush1.bf16.xpose.msra.mxu0 0
        %1663 = vmatprep.subr.bf16.mxu0 0
        %1664 = vmatpush1.bf16.xpose.msra.mxu0 0
        %1665 = vmatprep.subr.bf16.mxu0 0
        %1666 = vmatpush1.bf16.xpose.msra.mxu0 0
        %1667 = vmatprep.subr.bf16.mxu0 0
        %1668 = vmatpush1.bf16.xpose.msra.mxu0 0
        %1669 = vmatprep.subr.bf16.mxu0 0
        %1670 = vmatpush1.bf16.xpose.msra.mxu0 0
        %1671 = vmatprep.subr.bf16.mxu0 0
        %1672 = vmatpush1.bf16.xpose.msra.mxu0 0
        %1673 = vmatprep.subr.bf16.mxu0 0
        %1674 = vmatpush1.bf16.xpose.msra.mxu0 0
        %1675 = vmatprep.subr.bf16.mxu0 0
        %1676 = vmatpush1.bf16.xpose.msra.mxu0 0
        %1677 = vmatprep.mubr.bf16.mxu0 0
        %1678 = vmatmul.mubr.bf16.gmra.mrb[0].mxu0 %v1640
        %v1679 = vpop.f32.mrb[0].mxu0
        %v1680 = vadd.f32 0.0, %v1679
        %v1681 = vpop.f32.mrb[0].mxu0
        %v1682 = vpop.f32.mrb[0].mxu0
        %v1683 = vpop.f32.mrb[0].mxu0
        %1684 = vdwg.mxu0
        %v1685 = vsel %vm348, %v1680, -inf
        %1686 = vmax.xlane.f32.xlu0 %v1685
        %v1687 = vpop.xlane.xlu0 %1686
        %v1688 = vsub.f32 %v1680, %v1687
        %v1689 = vmul.f32 %v1688, 1.442695
        %v1690 = vpow.pop %v1689
        %v1691 = vsel %vm348, %v1690, 0.0
        %1692 = vadd.xlane.f32.xlu0 %v1691
        %v1693 = vpop.xlane.xlu0 %1692
        %v1694 = vrcp.pop %v1693
        %v1695 = vmul.f32 %v1690, %v1694
        %v1696 = vpack.c.bf16 %v1695, %v1695
        %s1697 = scalar_lea.vmem %s293, 28
        %v1698 = vld [vmem:[%s1697] sm:$0xf]
        %v1700 = vsel %vm348, %v1696, 0
        %v1703 = vsel %vm365, %v1698, 0
        %1705 = vmatprep.subr.bf16.mxu0 0
        %1706 = vmatpush1.bf16.msra.mxu0 %v1703
        %1707 = vmatprep.subr.bf16.mxu0 0
        %1708 = vmatpush1.bf16.msra.mxu0 0
        %1709 = vmatprep.subr.bf16.mxu0 0
        %1710 = vmatpush1.bf16.msra.mxu0 0
        %1711 = vmatprep.subr.bf16.mxu0 0
        %1712 = vmatpush1.bf16.msra.mxu0 0
        %1713 = vmatprep.subr.bf16.mxu0 0
        %1714 = vmatpush1.bf16.msra.mxu0 0
        %1715 = vmatprep.subr.bf16.mxu0 0
        %1716 = vmatpush1.bf16.msra.mxu0 0
        %1717 = vmatprep.subr.bf16.mxu0 0
        %1718 = vmatpush1.bf16.msra.mxu0 0
        %1719 = vmatprep.subr.bf16.mxu0 0
        %1720 = vmatpush1.bf16.msra.mxu0 0
        %1721 = vmatprep.subr.bf16.mxu0 0
        %1722 = vmatpush1.bf16.msra.mxu0 0
        %1723 = vmatprep.subr.bf16.mxu0 0
        %1724 = vmatpush1.bf16.msra.mxu0 0
        %1725 = vmatprep.subr.bf16.mxu0 0
        %1726 = vmatpush1.bf16.msra.mxu0 0
        %1727 = vmatprep.subr.bf16.mxu0 0
        %1728 = vmatpush1.bf16.msra.mxu0 0
        %1729 = vmatprep.subr.bf16.mxu0 0
        %1730 = vmatpush1.bf16.msra.mxu0 0
        %1731 = vmatprep.subr.bf16.mxu0 0
        %1732 = vmatpush1.bf16.msra.mxu0 0
        %1733 = vmatprep.subr.bf16.mxu0 0
        %1734 = vmatpush1.bf16.msra.mxu0 0
        %1735 = vmatprep.subr.bf16.mxu0 0
        %1736 = vmatpush1.bf16.msra.mxu0 0
        %1737 = vmatprep.mubr.bf16.mxu0 0
        %1738 = vmatmul.mubr.bf16.gmra.mrb[0].mxu0 %v1700
        %v1739 = vpop.f32.mrb[0].mxu0
        %v1740 = vadd.f32 0.0, %v1739
        %v1741 = vpop.f32.mrb[0].mxu0
        %v1742 = vpop.f32.mrb[0].mxu0
        %v1743 = vpop.f32.mrb[0].mxu0
        %1744 = vdwg.mxu0
        %v1745 = vld [vmem:[#allocation2] sm:$0xff]
        %v1746 = vpack.c.bf16 %v1740, %v1740
        %s1747 = scalar_lea.vmem %s3, 224
        %v1748 = vld [vmem:[%s1747] sm:$0xf]
        %v1749 = vld [vmem:[%s1747 + $0x4] sm:$0xf]
        %v1750 = vld [vmem:[%s1747 + $0x8] sm:$0xf]
        %v1751 = vld [vmem:[%s1747 + $0xc] sm:$0xf]
        %v1752 = vld [vmem:[%s1747 + $0x10] sm:$0xf]
        %v1753 = vld [vmem:[%s1747 + $0x14] sm:$0xf]
        %v1754 = vld [vmem:[%s1747 + $0x18] sm:$0xf]
        %v1755 = vld [vmem:[%s1747 + $0x1c] sm:$0xf]
        %v1764 = vunpack.c.l.b16 %v1748
        %v1765 = vunpack.c.l.b16 %v1749
        %v1766 = vunpack.c.l.b16 %v1750
        %v1767 = vunpack.c.l.b16 %v1751
        %v1768 = vunpack.c.l.b16 %v1752
        %v1769 = vunpack.c.l.b16 %v1753
        %v1770 = vunpack.c.l.b16 %v1754
        %v1771 = vunpack.c.l.b16 %v1755
        %v1772 = vpack.c.b16 %v1765, %v1764
        %v1773 = vpack.c.b16 %v1767, %v1766
        %v1774 = vpack.c.b16 %v1769, %v1768
        %v1775 = vpack.c.b16 %v1771, %v1770
        %v1781 = vsel %vm301, %v1746, 0
        %1783 = vmatprep.subr.bf16.mxu0 0
        %1784 = vmatpush1.bf16.msra.mxu0 %v1772
        %1785 = vmatprep.subr.bf16.mxu0 0
        %1786 = vmatpush1.bf16.msra.mxu0 %v1773
        %1787 = vmatprep.subr.bf16.mxu0 0
        %1788 = vmatpush1.bf16.msra.mxu0 %v1774
        %1789 = vmatprep.subr.bf16.mxu0 0
        %1790 = vmatpush1.bf16.msra.mxu0 %v1775
        %1791 = vmatprep.subr.bf16.mxu0 0
        %1792 = vmatpush1.bf16.msra.mxu0 0
        %1793 = vmatprep.subr.bf16.mxu0 0
        %1794 = vmatpush1.bf16.msra.mxu0 0
        %1795 = vmatprep.subr.bf16.mxu0 0
        %1796 = vmatpush1.bf16.msra.mxu0 0
        %1797 = vmatprep.subr.bf16.mxu0 0
        %1798 = vmatpush1.bf16.msra.mxu0 0
        %1799 = vmatprep.subr.bf16.mxu0 0
        %1800 = vmatpush1.bf16.msra.mxu0 0
        %1801 = vmatprep.subr.bf16.mxu0 0
        %1802 = vmatpush1.bf16.msra.mxu0 0
        %1803 = vmatprep.subr.bf16.mxu0 0
        %1804 = vmatpush1.bf16.msra.mxu0 0
        %1805 = vmatprep.subr.bf16.mxu0 0
        %1806 = vmatpush1.bf16.msra.mxu0 0
        %1807 = vmatprep.subr.bf16.mxu0 0
        %1808 = vmatpush1.bf16.msra.mxu0 0
        %1809 = vmatprep.subr.bf16.mxu0 0
        %1810 = vmatpush1.bf16.msra.mxu0 0
        %1811 = vmatprep.subr.bf16.mxu0 0
        %1812 = vmatpush1.bf16.msra.mxu0 0
        %1813 = vmatprep.subr.bf16.mxu0 0
        %1814 = vmatpush1.bf16.msra.mxu0 0
        %1815 = vmatprep.mubr.bf16.mxu0 0
        %1816 = vmatmul.mubr.bf16.gmra.mrb[0].mxu0 %v1781
        %v1817 = vpop.f32.mrb[0].mxu0
        %v1818 = vadd.f32 0.0, %v1817
        %v1819 = vpop.f32.mrb[0].mxu0
        %v1820 = vpop.f32.mrb[0].mxu0
        %v1821 = vpop.f32.mrb[0].mxu0
        %1822 = vdwg.mxu0
        %v1823 = vadd.f32 %v1745, %v1818
        %1824 = vst.msk [vmem:[#allocation2] sm:$0xff] %vm296, %v1823
        %v1825 = vld [vmem:[#allocation2] sm:$0xff]
        %v1826 = vld [vmem:[%s4] sm:$0x1]
        %v1828 = vlaneseq
        %v1829 = vshrl.u32 %v1828, 7
        %v1830 = vsub.s32 0, %v1829
        %v1831 = vrot.slane %v1826, %v1830
        %v1833 = vadd.f32 %v1825, %v1831
        %1834 = vst.msk [vmem:[%s273] sm:$0xff] %vm296, %v1833
        %s1835 = sand.u32 %s163, 1
        %s1836 = scalar_lea.sflag [#allocation4], %s1835
        %s1837 = sand.u32 %s163, 1
        %s1838 = smul.addr %s1837, 8
        %s1839 = scalar_lea.vmem [#allocation3], %s1838
        // Predicated region
        $region41: #{attention_forward.3} parent=39 // pred_check
          %p1840 = pneg %p173
        $region42: #{attention_forward.3} parent=39 // pred_check_branch
          %1842 = sbr.rel (%p1840) target = $region44
        $region43: #{attention_forward.3} parent=39 // pred_region
          %s1844 = ssub.s32 128, 128
          %1845 = vsyncadd %s1836, %s1844
          %s1846 = sadd.s32 %s24, %s23
          %s1847 = smul.addr %s1846, 128
          %s1848 = scalar_lea.hbm %s5, %s1847
          %s1850 = sshll.u32 %s1839, 4
          %s1851 = int_to_ptr.vmem [resolvable:$true] %s1850
          %1853 = dma.vmem_to_hbm [thread:$0]  %s1851, 128, %s1848, %s1836
        $region44: #{attention_forward.3} parent=39 // pred_fallthru
          _
      $region40: #{attention_forward.3} parent=5 // pred_fallthru
        _
      %p1854 = scmp.le.s32.totalorder 2, %s14
      // Predicated region
      $region45: #{attention_forward.3} parent=5 // pred_check
        %p1855 = pneg %p1854
      $region46: #{attention_forward.3} parent=5 // pred_check_branch
        %1857 = sbr.rel (%p1855) target = $region48
      $region47: #{attention_forward.3} parent=5 // pred_region
        %s1858 = ssub.s32 %s14, 2
        // Predicated region
        $region49: #{attention_forward.3} parent=47 // pred_check
          %p1859 = pneg %p179
        $region50: #{attention_forward.3} parent=47 // pred_check_branch
          %1861 = sbr.rel (%p1859) target = $region52
        $region51: #{attention_forward.3} parent=47 // pred_region
          %s1862 = sand.u32 %s164, 1
          %s1863 = scalar_lea.sflag [#allocation4], %s1862
          %s1864 = sand.u32 %s164, 1
          %s1865 = smul.addr %s1864, 8
          %s1866 = scalar_lea.vmem [#allocation3], %s1865
          %1867 = dma.done %s1863, 128
        $region52: #{attention_forward.3} parent=47 // pred_fallthru
          _
      $region48: #{attention_forward.3} parent=5 // pred_fallthru
        _
    $region6: #{attention_forward.3} parent=1 // loop_footer
      %s18 = sadd.s32 1, %s14
    $region7: #{attention_forward.3} parent=1 // loop_footer_branch
      %13 = sbr.rel target = $region3
    $region8: #{attention_forward.3} parent=1 // loop_exit
      _
    %1868 = vsyncpa [#allocation4], 1
    %s1869 = scalar_lea.sflag [#allocation4], 1
    %1870 = vsyncpa %s1869, 1

</llo_original>
